<compile_context>
chip_gen: v5e
topology: v5e:2x2
jax: 0.10.0
libtpu: 0.0.40
codegen_flags: <defaults>
</compile_context>

<pallas_src>
import jax
import jax.numpy as jnp
import numpy as np
from jax.experimental import pallas as pl
from jax.experimental.pallas import tpu as pltpu

LANE = 128


def _round_up(x, m):
    return ((x + m - 1) // m) * m


def _double_conv_kernel(x_ref, w1_ref, s1_ref, w2_ref, s2_ref, o_ref,
                        xpad_ref, y1pad_ref):
    """Fused (3x3 conv + folded BN + ReLU) x 2 for one batch element.

    x_ref:     (1, H, W, Cinp)      bf16 input, channels zero-padded to 128*k
    w1_ref:    (3, 3*Cinp, Coutp)   bf16 stage-1 weights (BN scale folded), rows = (kx, cin)
    s1_ref:    (1, Coutp)           f32 folded shift = bias*scale + beta - mean*scale
    w2_ref:    (3, 3*Coutp, Coutp)  bf16 stage-2 weights
    s2_ref:    (1, Coutp)           f32 folded shift
    o_ref:     (1, H, W, Coutp)     f32 output
    xpad_ref:  (H+2, W+2, Cinp)     f32 VMEM scratch (zero border = pad=1)
    y1pad_ref: (H+2, W+2, Coutp)    f32 VMEM scratch for stage-1 activations
    """
    _, H, W, Coutp = o_ref.shape

    def conv3x3(src_ref, w_ref, shift):
        cin = src_ref.shape[-1]
        acc = jnp.zeros((H * W, Coutp), dtype=jnp.float32)
        # One MXU push per kernel row; K = 3*cin (384 when cin == 128).
        for dy in range(3):
            taps = [
                src_ref[dy:dy + H, dx:dx + W, :].reshape(H * W, cin)
                for dx in range(3)
            ]
            patch = jnp.concatenate(taps, axis=-1).astype(jnp.bfloat16)
            acc = acc + jnp.dot(patch, w_ref[dy],
                                preferred_element_type=jnp.float32)
        # Folded conv-bias + BatchNorm shift, then ReLU — all in f32.
        return jnp.maximum(acc + shift, 0.0)

    # ---- Stage 1: zero-pad input inside VMEM (no wrapper-side jnp.pad HBM pass).
    xpad_ref[...] = jnp.zeros_like(xpad_ref)
    xpad_ref[1:H + 1, 1:W + 1, :] = x_ref[0].astype(xpad_ref.dtype)
    y1 = conv3x3(xpad_ref, w1_ref, s1_ref[...])          # (H*W, Coutp) f32

    # ---- Stage 2 consumes stage 1 straight from VMEM (no HBM round trip).
    y1pad_ref[...] = jnp.zeros_like(y1pad_ref)
    y1pad_ref[1:H + 1, 1:W + 1, :] = y1.reshape(H, W, Coutp).astype(y1pad_ref.dtype)
    y2 = conv3x3(y1pad_ref, w2_ref, s2_ref[...])

    o_ref[0] = y2.reshape(H, W, Coutp).astype(o_ref.dtype)


def _fold_conv_bn(w_hwio, bias, bn_scale, bn_shift, cin_p, cout_p):
    """Fold BN scale/shift + conv bias into (w', s'), pad channels, pack for the kernel."""
    cin, cout = w_hwio.shape[2], w_hwio.shape[3]
    w = w_hwio * bn_scale[None, None, None, :]          # fold BN scale into weights (f32)
    s = bias * bn_scale + bn_shift                      # fold conv bias into BN shift
    w = jnp.pad(w, ((0, 0), (0, 0), (0, cin_p - cin), (0, cout_p - cout)))
    s = jnp.pad(s, (0, cout_p - cout))
    # (3, 3, cin_p, cout_p) -> (3, 3*cin_p, cout_p); row order (kx, cin) matches the
    # kernel's [dx=0 | dx=1 | dx=2] lane-concatenated patch.
    w = w.reshape(3, 3 * cin_p, cout_p).astype(jnp.bfloat16)
    return w, s.reshape(1, cout_p).astype(jnp.float32)


@jax.jit
def double_conv(x_nchw, p1, p2):
    """Public entry: NCHW in, NCHW out (matches the PyTorch module)."""
    N, Cin, H, W = x_nchw.shape
    Cout = p1[0].shape[-1]
    cin_p = max(LANE, _round_up(Cin, LANE))
    cout_p = max(LANE, _round_up(Cout, LANE))

    x = jnp.transpose(x_nchw, (0, 2, 3, 1))                          # NCHW -> NHWC
    x = jnp.pad(x, ((0, 0), (0, 0), (0, 0), (0, cin_p - Cin)))       # lane-dense channels
    x = x.astype(jnp.bfloat16)                                       # halve HBM traffic

    w1, s1 = _fold_conv_bn(*p1, cin_p, cout_p)
    w2, s2 = _fold_conv_bn(*p2, cout_p, cout_p)

    out = pl.pallas_call(
        _double_conv_kernel,
        out_shape=jax.ShapeDtypeStruct((N, H, W, cout_p), jnp.float32),
        grid_spec=pltpu.PrefetchScalarGridSpec(
            num_scalar_prefetch=0,
            grid=(N,),
            in_specs=[
                pl.BlockSpec((1, H, W, cin_p), lambda n: (n, 0, 0, 0)),
                pl.BlockSpec((3, 3 * cin_p, cout_p), lambda n: (0, 0, 0)),
                pl.BlockSpec((1, cout_p), lambda n: (0, 0)),
                pl.BlockSpec((3, 3 * cout_p, cout_p), lambda n: (0, 0, 0)),
                pl.BlockSpec((1, cout_p), lambda n: (0, 0)),
            ],
            out_specs=pl.BlockSpec((1, H, W, cout_p), lambda n: (n, 0, 0, 0)),
            scratch_shapes=[
                pltpu.VMEM((H + 2, W + 2, cin_p), jnp.float32),
                pltpu.VMEM((H + 2, W + 2, cout_p), jnp.float32),
            ]),
        compiler_params=pltpu.CompilerParams(
            dimension_semantics=("parallel",)),
    )(x, w1, s1, w2, s2)

    out = out[..., :Cout]                                            # drop lane padding
    return jnp.transpose(out, (0, 3, 1, 2))                          # NHWC -> NCHW


def init_double_conv_params(key, in_ch, out_ch):
    """Deterministic parameter init matching the PyTorch module's shapes."""
    ks = jax.random.split(key, 12)
    eps = 1e-5

    def conv_params(kw, kb, cin, cout):
        fan_in = cin * 3 * 3
        bound = 1.0 / np.sqrt(fan_in)
        # PyTorch stores (Cout, Cin, 3, 3); convert to HWIO (3, 3, Cin, Cout).
        w_oihw = jax.random.uniform(kw, (cout, cin, 3, 3), jnp.float32, -bound, bound)
        w_hwio = jnp.transpose(w_oihw, (2, 3, 1, 0))
        b = jax.random.uniform(kb, (cout,), jnp.float32, -bound, bound)
        return w_hwio, b

    def bn_params(kg, kb, km, kv, c):
        gamma = jax.random.uniform(kg, (c,), jnp.float32, 0.5, 1.5)
        beta = jax.random.uniform(kb, (c,), jnp.float32, -0.5, 0.5)
        mean = jax.random.uniform(km, (c,), jnp.float32, -0.5, 0.5)
        var = jax.random.uniform(kv, (c,), jnp.float32, 0.5, 1.5)
        scale = gamma / jnp.sqrt(var + eps)
        shift = beta - mean * scale
        return scale, shift

    w1, b1 = conv_params(ks[0], ks[1], in_ch, out_ch)
    s1, t1 = bn_params(ks[2], ks[3], ks[4], ks[5], out_ch)
    w2, b2 = conv_params(ks[6], ks[7], out_ch, out_ch)
    s2, t2 = bn_params(ks[8], ks[9], ks[10], ks[11], out_ch)
    return (w1, b1, s1, t1), (w2, b2, s2, t2)


def _reference_double_conv(x_nchw, p1, p2):
    """Plain-JAX f32 reference for correctness checking."""
    def block(x, w_hwio, b, scale, shift):
        y = jax.lax.conv_general_dilated(
            x, w_hwio, window_strides=(1, 1), padding="SAME",
            dimension_numbers=("NCHW", "HWIO", "NCHW"))
        y = y + b[None, :, None, None]
        y = y * scale[None, :, None, None] + shift[None, :, None, None]
        return jnp.maximum(y, 0.0)
    return block(block(x_nchw, *p1), *p2)


if __name__ == "__main__":
    N, in_ch, out_ch, H, W = 2, 4, 8, 16, 16
    key = jax.random.PRNGKey(0)
    kx, kp = jax.random.split(key)

    x = jax.random.normal(kx, (N, in_ch, H, W), jnp.float32)
    p1, p2 = init_double_conv_params(kp, in_ch, out_ch)

    out = double_conv(x, p1, p2)
    out = jax.block_until_ready(out)

    ref = _reference_double_conv(x, p1, p2)
    # Tolerance relaxed vs. the f32 reference because the kernel runs the MXU in bf16
    # (f32 accumulation); observed error is ~1e-2 across the two chained convs.
    np.testing.assert_allclose(np.asarray(out), np.asarray(ref),
                               rtol=5e-2, atol=5e-2)
    print("KERNEL_OK")
</pallas_src>

<mosaic_0001>
module attributes {stable_mosaic.version = 11 : i64} {
  func.func @_double_conv_kernel(%arg0: i32, %arg1: memref<1x16x16x128xbf16, #tpu.memory_space<vmem>>, %arg2: memref<3x384x128xbf16, #tpu.memory_space<vmem>>, %arg3: memref<1x128xf32, #tpu.memory_space<vmem>>, %arg4: memref<3x384x128xbf16, #tpu.memory_space<vmem>>, %arg5: memref<1x128xf32, #tpu.memory_space<vmem>>, %arg6: memref<1x16x16x128xf32, #tpu.memory_space<vmem>>, %arg7: memref<18x18x128xf32, #tpu.memory_space<vmem>>, %arg8: memref<18x18x128xf32, #tpu.memory_space<vmem>>) attributes {dimension_semantics = [#tpu.dimension_semantics<parallel>], iteration_bounds = array<i64: 2>, scalar_prefetch = 0 : i64, scratch_operands = 2 : i64, tpu.core_type = #tpu.core_type<tc>, window_params = [{transform_indices = @transform_0, window_bounds = array<i64: 1, 16, 16, 128>}, {pipeline_mode = #tpu.pipeline_mode<synchronous>, transform_indices = @transform_1, window_bounds = array<i64: 3, 384, 128>}, {pipeline_mode = #tpu.pipeline_mode<synchronous>, transform_indices = @transform_2, window_bounds = array<i64: 1, 128>}, {pipeline_mode = #tpu.pipeline_mode<synchronous>, transform_indices = @transform_3, window_bounds = array<i64: 3, 384, 128>}, {pipeline_mode = #tpu.pipeline_mode<synchronous>, transform_indices = @transform_4, window_bounds = array<i64: 1, 128>}, {transform_indices = @transform_5, window_bounds = array<i64: 1, 16, 16, 128>}]} {
    %cst = arith.constant 0.000000e+00 : f32
    %0 = vector.broadcast %cst : f32 to vector<18x18x128xf32>
    %c0 = arith.constant 0 : index
    %c0_0 = arith.constant 0 : index
    %c0_1 = arith.constant 0 : index
    %1 = vector.load %arg7[%c0, %c0_0, %c0_1] : memref<18x18x128xf32, #tpu.memory_space<vmem>>, vector<18x18x128xf32>
    tpu.vector_store %arg7[%c0, %c0_0, %c0_1], %0 {strides = array<i32>} : memref<18x18x128xf32, #tpu.memory_space<vmem>>, vector<18x18x128xf32>,
    %c0_2 = arith.constant 0 : index
    %c0_3 = arith.constant 0 : index
    %c0_4 = arith.constant 0 : index
    %c0_5 = arith.constant 0 : index
    %2 = vector.load %arg1[%c0_2, %c0_3, %c0_4, %c0_5] : memref<1x16x16x128xbf16, #tpu.memory_space<vmem>>, vector<1x16x16x128xbf16>
    %3 = vector.shape_cast %2 : vector<1x16x16x128xbf16> to vector<16x16x128xbf16>
    %4 = arith.extf %3 : vector<16x16x128xbf16> to vector<16x16x128xf32>
    %c1 = arith.constant 1 : index
    %c1_6 = arith.constant 1 : index
    %c0_7 = arith.constant 0 : index
    %5 = vector.load %arg7[%c1, %c1_6, %c0_7] : memref<18x18x128xf32, #tpu.memory_space<vmem>>, vector<16x16x128xf32>
    tpu.vector_store %arg7[%c1, %c1_6, %c0_7], %4 {strides = array<i32>} : memref<18x18x128xf32, #tpu.memory_space<vmem>>, vector<16x16x128xf32>,
    %c0_8 = arith.constant 0 : index
    %c0_9 = arith.constant 0 : index
    %6 = vector.load %arg3[%c0_8, %c0_9] : memref<1x128xf32, #tpu.memory_space<vmem>>, vector<1x128xf32>
    %cst_10 = arith.constant 0.000000e+00 : f32
    %7 = vector.broadcast %cst_10 : f32 to vector<256x128xf32>
    %c0_11 = arith.constant 0 : index
    %c0_12 = arith.constant 0 : index
    %c0_13 = arith.constant 0 : index
    %8 = vector.load %arg7[%c0_11, %c0_12, %c0_13] : memref<18x18x128xf32, #tpu.memory_space<vmem>>, vector<16x16x128xf32>
    %9 = vector.shape_cast %8 : vector<16x16x128xf32> to vector<256x128xf32>
    %c0_14 = arith.constant 0 : index
    %c1_15 = arith.constant 1 : index
    %c0_16 = arith.constant 0 : index
    %10 = vector.load %arg7[%c0_14, %c1_15, %c0_16] : memref<18x18x128xf32, #tpu.memory_space<vmem>>, vector<16x16x128xf32>
    %11 = vector.shape_cast %10 : vector<16x16x128xf32> to vector<256x128xf32>
    %c0_17 = arith.constant 0 : index
    %c2 = arith.constant 2 : index
    %c0_18 = arith.constant 0 : index
    %12 = vector.load %arg7[%c0_17, %c2, %c0_18] : memref<18x18x128xf32, #tpu.memory_space<vmem>>, vector<16x16x128xf32>
    %13 = vector.shape_cast %12 : vector<16x16x128xf32> to vector<256x128xf32>
    %14 = tpu.concatenate %9, %11, %13 in 1 : vector<256x128xf32>, vector<256x128xf32>, vector<256x128xf32> -> vector<256x384xf32>
    %15 = arith.truncf %14 : vector<256x384xf32> to vector<256x384xbf16>
    %c0_19 = arith.constant 0 : index
    %c0_20 = arith.constant 0 : index
    %c0_21 = arith.constant 0 : index
    %16 = vector.load %arg2[%c0_19, %c0_20, %c0_21] : memref<3x384x128xbf16, #tpu.memory_space<vmem>>, vector<1x384x128xbf16>
    %17 = vector.shape_cast %16 : vector<1x384x128xbf16> to vector<384x128xbf16>
    %cst_22 = arith.constant dense<0.000000e+00> : vector<256x128xf32>
    %18 = tpu.matmul %15, %17, %cst_22 {dimension_numbers = #tpu.dot_dimension_numbers<[1], [0], [0], [1], [0, 0, 1, 1], [], []>} : vector<256x384xbf16>, vector<384x128xbf16>, vector<256x128xf32> -> vector<256x128xf32>
    %19 = arith.addf %7, %18 : vector<256x128xf32>
    %c1_23 = arith.constant 1 : index
    %c0_24 = arith.constant 0 : index
    %c0_25 = arith.constant 0 : index
    %20 = vector.load %arg7[%c1_23, %c0_24, %c0_25] : memref<18x18x128xf32, #tpu.memory_space<vmem>>, vector<16x16x128xf32>
    %21 = vector.shape_cast %20 : vector<16x16x128xf32> to vector<256x128xf32>
    %c1_26 = arith.constant 1 : index
    %c1_27 = arith.constant 1 : index
    %c0_28 = arith.constant 0 : index
    %22 = vector.load %arg7[%c1_26, %c1_27, %c0_28] : memref<18x18x128xf32, #tpu.memory_space<vmem>>, vector<16x16x128xf32>
    %23 = vector.shape_cast %22 : vector<16x16x128xf32> to vector<256x128xf32>
    %c1_29 = arith.constant 1 : index
    %c2_30 = arith.constant 2 : index
    %c0_31 = arith.constant 0 : index
    %24 = vector.load %arg7[%c1_29, %c2_30, %c0_31] : memref<18x18x128xf32, #tpu.memory_space<vmem>>, vector<16x16x128xf32>
    %25 = vector.shape_cast %24 : vector<16x16x128xf32> to vector<256x128xf32>
    %26 = tpu.concatenate %21, %23, %25 in 1 : vector<256x128xf32>, vector<256x128xf32>, vector<256x128xf32> -> vector<256x384xf32>
    %27 = arith.truncf %26 : vector<256x384xf32> to vector<256x384xbf16>
    %c1_32 = arith.constant 1 : index
    %c0_33 = arith.constant 0 : index
    %c0_34 = arith.constant 0 : index
    %28 = vector.load %arg2[%c1_32, %c0_33, %c0_34] : memref<3x384x128xbf16, #tpu.memory_space<vmem>>, vector<1x384x128xbf16>
    %29 = vector.shape_cast %28 : vector<1x384x128xbf16> to vector<384x128xbf16>
    %cst_35 = arith.constant dense<0.000000e+00> : vector<256x128xf32>
    %30 = tpu.matmul %27, %29, %cst_35 {dimension_numbers = #tpu.dot_dimension_numbers<[1], [0], [0], [1], [0, 0, 1, 1], [], []>} : vector<256x384xbf16>, vector<384x128xbf16>, vector<256x128xf32> -> vector<256x128xf32>
    %31 = arith.addf %19, %30 : vector<256x128xf32>
    %c2_36 = arith.constant 2 : index
    %c0_37 = arith.constant 0 : index
    %c0_38 = arith.constant 0 : index
    %32 = vector.load %arg7[%c2_36, %c0_37, %c0_38] : memref<18x18x128xf32, #tpu.memory_space<vmem>>, vector<16x16x128xf32>
    %33 = vector.shape_cast %32 : vector<16x16x128xf32> to vector<256x128xf32>
    %c2_39 = arith.constant 2 : index
    %c1_40 = arith.constant 1 : index
    %c0_41 = arith.constant 0 : index
    %34 = vector.load %arg7[%c2_39, %c1_40, %c0_41] : memref<18x18x128xf32, #tpu.memory_space<vmem>>, vector<16x16x128xf32>
    %35 = vector.shape_cast %34 : vector<16x16x128xf32> to vector<256x128xf32>
    %c2_42 = arith.constant 2 : index
    %c2_43 = arith.constant 2 : index
    %c0_44 = arith.constant 0 : index
    %36 = vector.load %arg7[%c2_42, %c2_43, %c0_44] : memref<18x18x128xf32, #tpu.memory_space<vmem>>, vector<16x16x128xf32>
    %37 = vector.shape_cast %36 : vector<16x16x128xf32> to vector<256x128xf32>
    %38 = tpu.concatenate %33, %35, %37 in 1 : vector<256x128xf32>, vector<256x128xf32>, vector<256x128xf32> -> vector<256x384xf32>
    %39 = arith.truncf %38 : vector<256x384xf32> to vector<256x384xbf16>
    %c2_45 = arith.constant 2 : index
    %c0_46 = arith.constant 0 : index
    %c0_47 = arith.constant 0 : index
    %40 = vector.load %arg2[%c2_45, %c0_46, %c0_47] : memref<3x384x128xbf16, #tpu.memory_space<vmem>>, vector<1x384x128xbf16>
    %41 = vector.shape_cast %40 : vector<1x384x128xbf16> to vector<384x128xbf16>
    %cst_48 = arith.constant dense<0.000000e+00> : vector<256x128xf32>
    %42 = tpu.matmul %39, %41, %cst_48 {dimension_numbers = #tpu.dot_dimension_numbers<[1], [0], [0], [1], [0, 0, 1, 1], [], []>} : vector<256x384xbf16>, vector<384x128xbf16>, vector<256x128xf32> -> vector<256x128xf32>
    %43 = arith.addf %31, %42 : vector<256x128xf32>
    %44 = vector.broadcast %6 : vector<1x128xf32> to vector<256x128xf32>
    %45 = arith.addf %43, %44 : vector<256x128xf32>
    %cst_49 = arith.constant 0.000000e+00 : f32
    %46 = vector.broadcast %cst_49 : f32 to vector<256x128xf32>
    %47 = arith.maximumf %45, %46 : vector<256x128xf32>
    %cst_50 = arith.constant 0.000000e+00 : f32
    %48 = vector.broadcast %cst_50 : f32 to vector<18x18x128xf32>
    %c0_51 = arith.constant 0 : index
    %c0_52 = arith.constant 0 : index
    %c0_53 = arith.constant 0 : index
    %49 = vector.load %arg8[%c0_51, %c0_52, %c0_53] : memref<18x18x128xf32, #tpu.memory_space<vmem>>, vector<18x18x128xf32>
    tpu.vector_store %arg8[%c0_51, %c0_52, %c0_53], %48 {strides = array<i32>} : memref<18x18x128xf32, #tpu.memory_space<vmem>>, vector<18x18x128xf32>,
    %50 = vector.shape_cast %47 : vector<256x128xf32> to vector<16x16x128xf32>
    %c1_54 = arith.constant 1 : index
    %c1_55 = arith.constant 1 : index
    %c0_56 = arith.constant 0 : index
    %51 = vector.load %arg8[%c1_54, %c1_55, %c0_56] : memref<18x18x128xf32, #tpu.memory_space<vmem>>, vector<16x16x128xf32>
    tpu.vector_store %arg8[%c1_54, %c1_55, %c0_56], %50 {strides = array<i32>} : memref<18x18x128xf32, #tpu.memory_space<vmem>>, vector<16x16x128xf32>,
    %c0_57 = arith.constant 0 : index
    %c0_58 = arith.constant 0 : index
    %52 = vector.load %arg5[%c0_57, %c0_58] : memref<1x128xf32, #tpu.memory_space<vmem>>, vector<1x128xf32>
    %cst_59 = arith.constant 0.000000e+00 : f32
    %53 = vector.broadcast %cst_59 : f32 to vector<256x128xf32>
    %c0_60 = arith.constant 0 : index
    %c0_61 = arith.constant 0 : index
    %c0_62 = arith.constant 0 : index
    %54 = vector.load %arg8[%c0_60, %c0_61, %c0_62] : memref<18x18x128xf32, #tpu.memory_space<vmem>>, vector<16x16x128xf32>
    %55 = vector.shape_cast %54 : vector<16x16x128xf32> to vector<256x128xf32>
    %c0_63 = arith.constant 0 : index
    %c1_64 = arith.constant 1 : index
    %c0_65 = arith.constant 0 : index
    %56 = vector.load %arg8[%c0_63, %c1_64, %c0_65] : memref<18x18x128xf32, #tpu.memory_space<vmem>>, vector<16x16x128xf32>
    %57 = vector.shape_cast %56 : vector<16x16x128xf32> to vector<256x128xf32>
    %c0_66 = arith.constant 0 : index
    %c2_67 = arith.constant 2 : index
    %c0_68 = arith.constant 0 : index
    %58 = vector.load %arg8[%c0_66, %c2_67, %c0_68] : memref<18x18x128xf32, #tpu.memory_space<vmem>>, vector<16x16x128xf32>
    %59 = vector.shape_cast %58 : vector<16x16x128xf32> to vector<256x128xf32>
    %60 = tpu.concatenate %55, %57, %59 in 1 : vector<256x128xf32>, vector<256x128xf32>, vector<256x128xf32> -> vector<256x384xf32>
    %61 = arith.truncf %60 : vector<256x384xf32> to vector<256x384xbf16>
    %c0_69 = arith.constant 0 : index
    %c0_70 = arith.constant 0 : index
    %c0_71 = arith.constant 0 : index
    %62 = vector.load %arg4[%c0_69, %c0_70, %c0_71] : memref<3x384x128xbf16, #tpu.memory_space<vmem>>, vector<1x384x128xbf16>
    %63 = vector.shape_cast %62 : vector<1x384x128xbf16> to vector<384x128xbf16>
    %cst_72 = arith.constant dense<0.000000e+00> : vector<256x128xf32>
    %64 = tpu.matmul %61, %63, %cst_72 {dimension_numbers = #tpu.dot_dimension_numbers<[1], [0], [0], [1], [0, 0, 1, 1], [], []>} : vector<256x384xbf16>, vector<384x128xbf16>, vector<256x128xf32> -> vector<256x128xf32>
    %65 = arith.addf %53, %64 : vector<256x128xf32>
    %c1_73 = arith.constant 1 : index
    %c0_74 = arith.constant 0 : index
    %c0_75 = arith.constant 0 : index
    %66 = vector.load %arg8[%c1_73, %c0_74, %c0_75] : memref<18x18x128xf32, #tpu.memory_space<vmem>>, vector<16x16x128xf32>
    %67 = vector.shape_cast %66 : vector<16x16x128xf32> to vector<256x128xf32>
    %c1_76 = arith.constant 1 : index
    %c1_77 = arith.constant 1 : index
    %c0_78 = arith.constant 0 : index
    %68 = vector.load %arg8[%c1_76, %c1_77, %c0_78] : memref<18x18x128xf32, #tpu.memory_space<vmem>>, vector<16x16x128xf32>
    %69 = vector.shape_cast %68 : vector<16x16x128xf32> to vector<256x128xf32>
    %c1_79 = arith.constant 1 : index
    %c2_80 = arith.constant 2 : index
    %c0_81 = arith.constant 0 : index
    %70 = vector.load %arg8[%c1_79, %c2_80, %c0_81] : memref<18x18x128xf32, #tpu.memory_space<vmem>>, vector<16x16x128xf32>
    %71 = vector.shape_cast %70 : vector<16x16x128xf32> to vector<256x128xf32>
    %72 = tpu.concatenate %67, %69, %71 in 1 : vector<256x128xf32>, vector<256x128xf32>, vector<256x128xf32> -> vector<256x384xf32>
    %73 = arith.truncf %72 : vector<256x384xf32> to vector<256x384xbf16>
    %c1_82 = arith.constant 1 : index
    %c0_83 = arith.constant 0 : index
    %c0_84 = arith.constant 0 : index
    %74 = vector.load %arg4[%c1_82, %c0_83, %c0_84] : memref<3x384x128xbf16, #tpu.memory_space<vmem>>, vector<1x384x128xbf16>
    %75 = vector.shape_cast %74 : vector<1x384x128xbf16> to vector<384x128xbf16>
    %cst_85 = arith.constant dense<0.000000e+00> : vector<256x128xf32>
    %76 = tpu.matmul %73, %75, %cst_85 {dimension_numbers = #tpu.dot_dimension_numbers<[1], [0], [0], [1], [0, 0, 1, 1], [], []>} : vector<256x384xbf16>, vector<384x128xbf16>, vector<256x128xf32> -> vector<256x128xf32>
    %77 = arith.addf %65, %76 : vector<256x128xf32>
    %c2_86 = arith.constant 2 : index
    %c0_87 = arith.constant 0 : index
    %c0_88 = arith.constant 0 : index
    %78 = vector.load %arg8[%c2_86, %c0_87, %c0_88] : memref<18x18x128xf32, #tpu.memory_space<vmem>>, vector<16x16x128xf32>
    %79 = vector.shape_cast %78 : vector<16x16x128xf32> to vector<256x128xf32>
    %c2_89 = arith.constant 2 : index
    %c1_90 = arith.constant 1 : index
    %c0_91 = arith.constant 0 : index
    %80 = vector.load %arg8[%c2_89, %c1_90, %c0_91] : memref<18x18x128xf32, #tpu.memory_space<vmem>>, vector<16x16x128xf32>
    %81 = vector.shape_cast %80 : vector<16x16x128xf32> to vector<256x128xf32>
    %c2_92 = arith.constant 2 : index
    %c2_93 = arith.constant 2 : index
    %c0_94 = arith.constant 0 : index
    %82 = vector.load %arg8[%c2_92, %c2_93, %c0_94] : memref<18x18x128xf32, #tpu.memory_space<vmem>>, vector<16x16x128xf32>
    %83 = vector.shape_cast %82 : vector<16x16x128xf32> to vector<256x128xf32>
    %84 = tpu.concatenate %79, %81, %83 in 1 : vector<256x128xf32>, vector<256x128xf32>, vector<256x128xf32> -> vector<256x384xf32>
    %85 = arith.truncf %84 : vector<256x384xf32> to vector<256x384xbf16>
    %c2_95 = arith.constant 2 : index
    %c0_96 = arith.constant 0 : index
    %c0_97 = arith.constant 0 : index
    %86 = vector.load %arg4[%c2_95, %c0_96, %c0_97] : memref<3x384x128xbf16, #tpu.memory_space<vmem>>, vector<1x384x128xbf16>
    %87 = vector.shape_cast %86 : vector<1x384x128xbf16> to vector<384x128xbf16>
    %cst_98 = arith.constant dense<0.000000e+00> : vector<256x128xf32>
    %88 = tpu.matmul %85, %87, %cst_98 {dimension_numbers = #tpu.dot_dimension_numbers<[1], [0], [0], [1], [0, 0, 1, 1], [], []>} : vector<256x384xbf16>, vector<384x128xbf16>, vector<256x128xf32> -> vector<256x128xf32>
    %89 = arith.addf %77, %88 : vector<256x128xf32>
    %90 = vector.broadcast %52 : vector<1x128xf32> to vector<256x128xf32>
    %91 = arith.addf %89, %90 : vector<256x128xf32>
    %cst_99 = arith.constant 0.000000e+00 : f32
    %92 = vector.broadcast %cst_99 : f32 to vector<256x128xf32>
    %93 = arith.maximumf %91, %92 : vector<256x128xf32>
    %94 = vector.shape_cast %93 : vector<256x128xf32> to vector<16x16x128xf32>
    %c0_100 = arith.constant 0 : index
    %c0_101 = arith.constant 0 : index
    %c0_102 = arith.constant 0 : index
    %c0_103 = arith.constant 0 : index
    %95 = vector.load %arg6[%c0_100, %c0_101, %c0_102, %c0_103] : memref<1x16x16x128xf32, #tpu.memory_space<vmem>>, vector<1x16x16x128xf32>
    %96 = vector.shape_cast %95 : vector<1x16x16x128xf32> to vector<16x16x128xf32>
    %97 = vector.shape_cast %94 : vector<16x16x128xf32> to vector<1x16x16x128xf32>
    tpu.vector_store %arg6[%c0_100, %c0_101, %c0_102, %c0_103], %97 {strides = array<i32>} : memref<1x16x16x128xf32, #tpu.memory_space<vmem>>, vector<1x16x16x128xf32>,
    return
  }
  func.func @transform_0(%arg0: i32) -> (i32, i32, i32, i32) {
    %c0_i32 = arith.constant 0 : i32
    %c0_i32_0 = arith.constant 0 : i32
    %c0_i32_1 = arith.constant 0 : i32
    %c0_i32_2 = arith.constant 0 : i32
    return %arg0, %c0_i32, %c0_i32_0, %c0_i32_1 : i32, i32, i32, i32
  }
  func.func @transform_1(%arg0: i32) -> (i32, i32, i32) {
    %c0_i32 = arith.constant 0 : i32
    %c0_i32_0 = arith.constant 0 : i32
    %c0_i32_1 = arith.constant 0 : i32
    %c0_i32_2 = arith.constant 0 : i32
    return %c0_i32, %c0_i32_0, %c0_i32_1 : i32, i32, i32
  }
  func.func @transform_2(%arg0: i32) -> (i32, i32) {
    %c0_i32 = arith.constant 0 : i32
    %c0_i32_0 = arith.constant 0 : i32
    %c0_i32_1 = arith.constant 0 : i32
    return %c0_i32, %c0_i32_0 : i32, i32
  }
  func.func @transform_3(%arg0: i32) -> (i32, i32, i32) {
    %c0_i32 = arith.constant 0 : i32
    %c0_i32_0 = arith.constant 0 : i32
    %c0_i32_1 = arith.constant 0 : i32
    %c0_i32_2 = arith.constant 0 : i32
    return %c0_i32, %c0_i32_0, %c0_i32_1 : i32, i32, i32
  }
  func.func @transform_4(%arg0: i32) -> (i32, i32) {
    %c0_i32 = arith.constant 0 : i32
    %c0_i32_0 = arith.constant 0 : i32
    %c0_i32_1 = arith.constant 0 : i32
    return %c0_i32, %c0_i32_0 : i32, i32
  }
  func.func @transform_5(%arg0: i32) -> (i32, i32, i32, i32) {
    %c0_i32 = arith.constant 0 : i32
    %c0_i32_0 = arith.constant 0 : i32
    %c0_i32_1 = arith.constant 0 : i32
    %c0_i32_2 = arith.constant 0 : i32
    return %arg0, %c0_i32, %c0_i32_0, %c0_i32_1 : i32, i32, i32, i32
  }
}

</mosaic_0001>

<llo_original>
// kernel: double_conv.1
$region0: #{double_conv.1}
  #allocation0 [shape = 'u32[]', space=smem, size = 0x4, offset = 0x4, fixed_abs, tag = 'smem constant byte address 0x4 - core index']
  #allocation1 [shape = 'u32[72,128]{1,0:T(1,128)}', space=vmem, size = 0x9000, scoped, tag = 'internal scratch']
  #allocation2 [shape = 'f32[18,18,128]{2,1,0:T(8,128)}', space=vmem, size = 0x36000, scoped, tag = 'scratch operand']
  #allocation3 [shape = 'f32[18,18,128]{2,1,0:T(8,128)}', space=vmem, size = 0x36000, scoped, tag = 'scratch operand']
  %s0 = inlined_call_operand.vmem [shape: bf16[2,16,16,128], index: 0, kind: input, shape index: {}]
  %s1 = inlined_call_operand.vmem [shape: bf16[3,384,128], index: 1, kind: input, shape index: {}]
  %s2 = inlined_call_operand.vmem [shape: f32[1,128], index: 2, kind: input, shape index: {}]
  %s3 = inlined_call_operand.vmem [shape: bf16[3,384,128], index: 3, kind: input, shape index: {}]
  %s4 = inlined_call_operand.vmem [shape: f32[1,128], index: 4, kind: input, shape index: {}]
  %s5 = inlined_call_operand.vmem [shape: f32[2,16,16,128], index: 5, kind: output, shape index: {}]
  %s6 = sld [smem:[#allocation0]]
  $region53: #{double_conv.1} parent=0
    _
  %s8 = ssub.s32 1, %s6
  %s9 = scalar_select 0, %s8, %s6
  loop: start=0, step=1, limit=4
  $region2: #{double_conv.1} parent=0 // loop_pre_header
    _
  $region3: #{double_conv.1} parent=0 // loop_header
    %s11 = sphi 0, %s15
    %p12 = scmp.ge.s32.totalorder %s11, 4
    %s21 = sphi 0, %s23
    %s24 = sphi 0, %s21
    %s25 = sphi 0, %s24
    %s41 = sphi 0, %s25
    %s45 = sphi 0, %s45
    %s47 = sphi 0, %s45
    %s48 = sphi 0, %s47
    %s62 = sphi 0, %s48
    %s66 = sphi 0, %s66
    %s68 = sphi 0, %s66
    %s69 = sphi 0, %s68
    %s83 = sphi 0, %s69
    %s87 = sphi 0, %s87
    %s89 = sphi 0, %s87
    %s90 = sphi 0, %s89
    %s104 = sphi 0, %s90
    %s108 = sphi 0, %s108
    %s110 = sphi 0, %s108
    %s111 = sphi 0, %s110
    %s125 = sphi 0, %s111
    %s131 = sphi 0, %s133
    %s134 = sphi 0, %s131
    %s135 = sphi 0, %s134
    %s151 = sphi 0, %s135
  $region4: #{double_conv.1} parent=0 // loop_header_branch
    %14 = sbr.rel (%p12) target = $region8
  $region5: #{double_conv.1} parent=0 // loop_body
    %s16 = ssub.s32 %s11, 1
    %s17 = ssub.s32 %s11, 2
    %s18 = sadd.s32 %s11, 1
    %s19 = ssub.s32 %s11, %s18
    %p20 = scmp.eq.s32.totalorder %s19, 0
    %s22 = sadd.s32 %s21, 1
    %s23 = scalar_select %p20, %s21, %s22
    %p26 = pneg %p20
    %p27 = scmp.eq.s32.totalorder %s11, 1
    %p28 = por %p26, %p27
    %p29 = scmp.ne.s32.totalorder %s21, %s24
    %p30 = scmp.eq.s32.totalorder %s11, 0
    %p31 = por %p29, %p30
    %p32 = scmp.ne.s32.totalorder %s21, %s24
    %p33 = scmp.eq.s32.totalorder %s16, 1
    %p34 = por %p32, %p33
    %p35 = scmp.ne.s32.totalorder %s24, %s25
    %p36 = scmp.eq.s32.totalorder %s16, 0
    %p37 = por %p35, %p36
    %p38 = scmp.ne.s32.totalorder %s24, %s25
    %p39 = scmp.eq.s32.totalorder %s17, 1
    %p40 = por %p38, %p39
    %p42 = scmp.ne.s32.totalorder %s25, %s41
    %p43 = scmp.eq.s32.totalorder %s17, 0
    %p44 = por %p42, %p43
    %s46 = sadd.s32 %s45, 1
    %p49 = scmp.eq.s32.totalorder %s11, 1
    %p50 = scmp.ne.s32.totalorder %s45, %s47
    %p51 = scmp.eq.s32.totalorder %s11, 0
    %p52 = por %p50, %p51
    %p53 = scmp.ne.s32.totalorder %s45, %s47
    %p54 = scmp.eq.s32.totalorder %s16, 1
    %p55 = por %p53, %p54
    %p56 = scmp.ne.s32.totalorder %s47, %s48
    %p57 = scmp.eq.s32.totalorder %s16, 0
    %p58 = por %p56, %p57
    %p59 = scmp.ne.s32.totalorder %s47, %s48
    %p60 = scmp.eq.s32.totalorder %s17, 1
    %p61 = por %p59, %p60
    %p63 = scmp.ne.s32.totalorder %s48, %s62
    %p64 = scmp.eq.s32.totalorder %s17, 0
    %p65 = por %p63, %p64
    %s67 = sadd.s32 %s66, 1
    %p70 = scmp.eq.s32.totalorder %s11, 1
    %p71 = scmp.ne.s32.totalorder %s66, %s68
    %p72 = scmp.eq.s32.totalorder %s11, 0
    %p73 = por %p71, %p72
    %p74 = scmp.ne.s32.totalorder %s66, %s68
    %p75 = scmp.eq.s32.totalorder %s16, 1
    %p76 = por %p74, %p75
    %p77 = scmp.ne.s32.totalorder %s68, %s69
    %p78 = scmp.eq.s32.totalorder %s16, 0
    %p79 = por %p77, %p78
    %p80 = scmp.ne.s32.totalorder %s68, %s69
    %p81 = scmp.eq.s32.totalorder %s17, 1
    %p82 = por %p80, %p81
    %p84 = scmp.ne.s32.totalorder %s69, %s83
    %p85 = scmp.eq.s32.totalorder %s17, 0
    %p86 = por %p84, %p85
    %s88 = sadd.s32 %s87, 1
    %p91 = scmp.eq.s32.totalorder %s11, 1
    %p92 = scmp.ne.s32.totalorder %s87, %s89
    %p93 = scmp.eq.s32.totalorder %s11, 0
    %p94 = por %p92, %p93
    %p95 = scmp.ne.s32.totalorder %s87, %s89
    %p96 = scmp.eq.s32.totalorder %s16, 1
    %p97 = por %p95, %p96
    %p98 = scmp.ne.s32.totalorder %s89, %s90
    %p99 = scmp.eq.s32.totalorder %s16, 0
    %p100 = por %p98, %p99
    %p101 = scmp.ne.s32.totalorder %s89, %s90
    %p102 = scmp.eq.s32.totalorder %s17, 1
    %p103 = por %p101, %p102
    %p105 = scmp.ne.s32.totalorder %s90, %s104
    %p106 = scmp.eq.s32.totalorder %s17, 0
    %p107 = por %p105, %p106
    %s109 = sadd.s32 %s108, 1
    %p112 = scmp.eq.s32.totalorder %s11, 1
    %p113 = scmp.ne.s32.totalorder %s108, %s110
    %p114 = scmp.eq.s32.totalorder %s11, 0
    %p115 = por %p113, %p114
    %p116 = scmp.ne.s32.totalorder %s108, %s110
    %p117 = scmp.eq.s32.totalorder %s16, 1
    %p118 = por %p116, %p117
    %p119 = scmp.ne.s32.totalorder %s110, %s111
    %p120 = scmp.eq.s32.totalorder %s16, 0
    %p121 = por %p119, %p120
    %p122 = scmp.ne.s32.totalorder %s110, %s111
    %p123 = scmp.eq.s32.totalorder %s17, 1
    %p124 = por %p122, %p123
    %p126 = scmp.ne.s32.totalorder %s111, %s125
    %p127 = scmp.eq.s32.totalorder %s17, 0
    %p128 = por %p126, %p127
    %s129 = ssub.s32 %s11, %s18
    %p130 = scmp.eq.s32.totalorder %s129, 0
    %s132 = sadd.s32 %s131, 1
    %s133 = scalar_select %p130, %s131, %s132
    %p136 = pneg %p130
    %p137 = scmp.eq.s32.totalorder %s11, 1
    %p138 = por %p136, %p137
    %p139 = scmp.ne.s32.totalorder %s131, %s134
    %p140 = scmp.eq.s32.totalorder %s11, 0
    %p141 = por %p139, %p140
    %p142 = scmp.ne.s32.totalorder %s131, %s134
    %p143 = scmp.eq.s32.totalorder %s16, 1
    %p144 = por %p142, %p143
    %p145 = scmp.ne.s32.totalorder %s134, %s135
    %p146 = scmp.eq.s32.totalorder %s16, 0
    %p147 = por %p145, %p146
    %p148 = scmp.ne.s32.totalorder %s134, %s135
    %p149 = scmp.eq.s32.totalorder %s17, 1
    %p150 = por %p148, %p149
    %p152 = scmp.ne.s32.totalorder %s135, %s151
    %p153 = scmp.eq.s32.totalorder %s17, 0
    %p154 = por %p152, %p153
    %p155 = scmp.le.s32.totalorder 1, %s11
    %p156 = scmp.lt.s32.totalorder %s11, 3
    %p157 = pnand %p155, %p156
    %p158 = pneg %p157
    // Predicated region
    $region9: #{double_conv.1} parent=5 // pred_check
      _
    $region10: #{double_conv.1} parent=5 // pred_check_branch
      %160 = sbr.rel (%p157) target = $region12
    $region11: #{double_conv.1} parent=5 // pred_region
      %s161 = ssub.s32 %s11, 1
      // Predicated region
      $region13: #{double_conv.1} parent=11 // pred_check
        %p162 = pneg %p58
      $region14: #{double_conv.1} parent=11 // pred_check_branch
        %164 = sbr.rel (%p162) target = $region16
      $region15: #{double_conv.1} parent=11 // pred_region
        _
      $region16: #{double_conv.1} parent=11 // pred_fallthru
        _
      // Predicated region
      $region17: #{double_conv.1} parent=11 // pred_check
        %p165 = pneg %p79
      $region18: #{double_conv.1} parent=11 // pred_check_branch
        %167 = sbr.rel (%p165) target = $region20
      $region19: #{double_conv.1} parent=11 // pred_region
        _
      $region20: #{double_conv.1} parent=11 // pred_fallthru
        _
      // Predicated region
      $region21: #{double_conv.1} parent=11 // pred_check
        %p168 = pneg %p100
      $region22: #{double_conv.1} parent=11 // pred_check_branch
        %170 = sbr.rel (%p168) target = $region24
      $region23: #{double_conv.1} parent=11 // pred_region
        _
      $region24: #{double_conv.1} parent=11 // pred_fallthru
        _
      // Predicated region
      $region25: #{double_conv.1} parent=11 // pred_check
        %p171 = pneg %p121
      $region26: #{double_conv.1} parent=11 // pred_check_branch
        %173 = sbr.rel (%p171) target = $region28
      $region27: #{double_conv.1} parent=11 // pred_region
        _
      $region28: #{double_conv.1} parent=11 // pred_fallthru
        _
    $region12: #{double_conv.1} parent=5 // pred_fallthru
      _
    %p174 = scmp.lt.s32.totalorder %s11, 2
    // Predicated region
    $region29: #{double_conv.1} parent=5 // pred_check
      %p175 = pneg %p174
    $region30: #{double_conv.1} parent=5 // pred_check_branch
      %177 = sbr.rel (%p175) target = $region32
    $region31: #{double_conv.1} parent=5 // pred_region
      // Predicated region
      $region33: #{double_conv.1} parent=31 // pred_check
        %p178 = pneg %p31
      $region34: #{double_conv.1} parent=31 // pred_check_branch
        %180 = sbr.rel (%p178) target = $region36
      $region35: #{double_conv.1} parent=31 // pred_region
        %p181 = scmp.lt.s32.totalorder %s11, 1
        %s182 = scalar_select %p181, %s11, 1
        %s183 = smul.addr %s182, 32
        %s184 = smul.addr %s183, 4
        %s185 = scalar_lea.vmem %s0, %s184
      $region36: #{double_conv.1} parent=31 // pred_fallthru
        _
    $region32: #{double_conv.1} parent=5 // pred_fallthru
      _
    %p186 = scmp.le.s32.totalorder 1, %s11
    %p187 = scmp.lt.s32.totalorder %s11, 3
    %p188 = pnand %p186, %p187
    %p189 = pneg %p188
    // Predicated region
    $region37: #{double_conv.1} parent=5 // pred_check
      _
    $region38: #{double_conv.1} parent=5 // pred_check_branch
      %191 = sbr.rel (%p188) target = $region40
    $region39: #{double_conv.1} parent=5 // pred_region
      %s192 = ssub.s32 %s11, 1
      %p193 = scmp.lt.s32.totalorder %s16, 1
      %s194 = scalar_select %p193, %s16, 1
      %s195 = smul.addr %s194, 32
      %s196 = smul.addr %s195, 4
      %s197 = scalar_lea.vmem %s0, %s196
      %p198 = pneg %p37
      %p199 = pneg %p34
      %p200 = pneg %p58
      %p201 = pneg %p55
      %p202 = pneg %p79
      %p203 = pneg %p76
      %p204 = pneg %p100
      %p205 = pneg %p97
      %p206 = pneg %p121
      %p207 = pneg %p118
      %p208 = pneg %p147
      %p209 = pneg %p144
      %p210 = scmp.lt.s32.totalorder %s16, 1
      %s211 = scalar_select %p210, %s16, 1
      %s212 = smul.addr %s211, 32
      %s213 = smul.addr %s212, 8
      %s214 = scalar_lea.vmem %s5, %s213
      %p215 = scmp.lt.s32.totalorder %s16, 1
      %s216 = scalar_select %p215, %s16, 1
      %s217 = smul.addr %s216, 32
      %s218 = smul.addr %s217, 4
      %s219 = scalar_lea.vmem %s0, %s218
      %p220 = scmp.lt.s32.totalorder %s16, 1
      %s221 = scalar_select %p220, %s16, 1
      %s222 = smul.addr %s221, 32
      %s223 = smul.addr %s222, 8
      %s224 = scalar_lea.vmem %s5, %s223
      %225 = vst [vmem:[#allocation2] sm:$0xff] 0.0
      %226 = vst [vmem:[#allocation2 + $0x8] sm:$0xff] 0.0
      %227 = vst [vmem:[#allocation2 + $0x10] sm:$0x3] 0.0
      %228 = vst [vmem:[#allocation2 + $0x18] sm:$0xff] 0.0
      %229 = vst [vmem:[#allocation2 + $0x20] sm:$0xff] 0.0
      %230 = vst [vmem:[#allocation2 + $0x28] sm:$0x3] 0.0
      %231 = vst [vmem:[#allocation2 + $0x30] sm:$0xff] 0.0
      %232 = vst [vmem:[#allocation2 + $0x38] sm:$0xff] 0.0
      %233 = vst [vmem:[#allocation2 + $0x40] sm:$0x3] 0.0
      %234 = vst [vmem:[#allocation2 + $0x48] sm:$0xff] 0.0
      %235 = vst [vmem:[#allocation2 + $0x50] sm:$0xff] 0.0
      %236 = vst [vmem:[#allocation2 + $0x58] sm:$0x3] 0.0
      %237 = vst [vmem:[#allocation2 + $0x60] sm:$0xff] 0.0
      %238 = vst [vmem:[#allocation2 + $0x68] sm:$0xff] 0.0
      %239 = vst [vmem:[#allocation2 + $0x70] sm:$0x3] 0.0
      %240 = vst [vmem:[#allocation2 + $0x78] sm:$0xff] 0.0
      %241 = vst [vmem:[#allocation2 + $0x80] sm:$0xff] 0.0
      %242 = vst [vmem:[#allocation2 + $0x88] sm:$0x3] 0.0
      %243 = vst [vmem:[#allocation2 + $0x90] sm:$0xff] 0.0
      %244 = vst [vmem:[#allocation2 + $0x98] sm:$0xff] 0.0
      %245 = vst [vmem:[#allocation2 + $0xa0] sm:$0x3] 0.0
      %246 = vst [vmem:[#allocation2 + $0xa8] sm:$0xff] 0.0
      %247 = vst [vmem:[#allocation2 + $0xb0] sm:$0xff] 0.0
      %248 = vst [vmem:[#allocation2 + $0xb8] sm:$0x3] 0.0
      %249 = vst [vmem:[#allocation2 + $0xc0] sm:$0xff] 0.0
      %250 = vst [vmem:[#allocation2 + $0xc8] sm:$0xff] 0.0
      %251 = vst [vmem:[#allocation2 + $0xd0] sm:$0x3] 0.0
      %252 = vst [vmem:[#allocation2 + $0xd8] sm:$0xff] 0.0
      %253 = vst [vmem:[#allocation2 + $0xe0] sm:$0xff] 0.0
      %254 = vst [vmem:[#allocation2 + $0xe8] sm:$0x3] 0.0
      %255 = vst [vmem:[#allocation2 + $0xf0] sm:$0xff] 0.0
      %256 = vst [vmem:[#allocation2 + $0xf8] sm:$0xff] 0.0
      %257 = vst [vmem:[#allocation2 + $0x100] sm:$0x3] 0.0
      %258 = vst [vmem:[#allocation2 + $0x108] sm:$0xff] 0.0
      %259 = vst [vmem:[#allocation2 + $0x110] sm:$0xff] 0.0
      %260 = vst [vmem:[#allocation2 + $0x118] sm:$0x3] 0.0
      %261 = vst [vmem:[#allocation2 + $0x120] sm:$0xff] 0.0
      %262 = vst [vmem:[#allocation2 + $0x128] sm:$0xff] 0.0
      %263 = vst [vmem:[#allocation2 + $0x130] sm:$0x3] 0.0
      %264 = vst [vmem:[#allocation2 + $0x138] sm:$0xff] 0.0
      %265 = vst [vmem:[#allocation2 + $0x140] sm:$0xff] 0.0
      %266 = vst [vmem:[#allocation2 + $0x148] sm:$0x3] 0.0
      %267 = vst [vmem:[#allocation2 + $0x150] sm:$0xff] 0.0
      %268 = vst [vmem:[#allocation2 + $0x158] sm:$0xff] 0.0
      %269 = vst [vmem:[#allocation2 + $0x160] sm:$0x3] 0.0
      %270 = vst [vmem:[#allocation2 + $0x168] sm:$0xff] 0.0
      %271 = vst [vmem:[#allocation2 + $0x170] sm:$0xff] 0.0
      %272 = vst [vmem:[#allocation2 + $0x178] sm:$0x3] 0.0
      %273 = vst [vmem:[#allocation2 + $0x180] sm:$0xff] 0.0
      %274 = vst [vmem:[#allocation2 + $0x188] sm:$0xff] 0.0
      %275 = vst [vmem:[#allocation2 + $0x190] sm:$0x3] 0.0
      %276 = vst [vmem:[#allocation2 + $0x198] sm:$0xff] 0.0
      %277 = vst [vmem:[#allocation2 + $0x1a0] sm:$0xff] 0.0
      %278 = vst [vmem:[#allocation2 + $0x1a8] sm:$0x3] 0.0
      %v279 = vld [vmem:[%s219] sm:$0xf]
      %v280 = vld [vmem:[%s219 + $0x4] sm:$0xf]
      %v281 = vld [vmem:[%s219 + $0x8] sm:$0xf]
      %v282 = vld [vmem:[%s219 + $0xc] sm:$0xf]
      %v283 = vld [vmem:[%s219 + $0x10] sm:$0xf]
      %v284 = vld [vmem:[%s219 + $0x14] sm:$0xf]
      %v285 = vld [vmem:[%s219 + $0x18] sm:$0xf]
      %v286 = vld [vmem:[%s219 + $0x1c] sm:$0xf]
      %v287 = vld [vmem:[%s219 + $0x20] sm:$0xf]
      %v288 = vld [vmem:[%s219 + $0x24] sm:$0xf]
      %v289 = vld [vmem:[%s219 + $0x28] sm:$0xf]
      %v290 = vld [vmem:[%s219 + $0x2c] sm:$0xf]
      %v291 = vld [vmem:[%s219 + $0x30] sm:$0xf]
      %v292 = vld [vmem:[%s219 + $0x34] sm:$0xf]
      %v293 = vld [vmem:[%s219 + $0x38] sm:$0xf]
      %v294 = vld [vmem:[%s219 + $0x3c] sm:$0xf]
      %v295 = vld [vmem:[%s219 + $0x40] sm:$0xf]
      %v296 = vld [vmem:[%s219 + $0x44] sm:$0xf]
      %v297 = vld [vmem:[%s219 + $0x48] sm:$0xf]
      %v298 = vld [vmem:[%s219 + $0x4c] sm:$0xf]
      %v299 = vld [vmem:[%s219 + $0x50] sm:$0xf]
      %v300 = vld [vmem:[%s219 + $0x54] sm:$0xf]
      %v301 = vld [vmem:[%s219 + $0x58] sm:$0xf]
      %v302 = vld [vmem:[%s219 + $0x5c] sm:$0xf]
      %v303 = vld [vmem:[%s219 + $0x60] sm:$0xf]
      %v304 = vld [vmem:[%s219 + $0x64] sm:$0xf]
      %v305 = vld [vmem:[%s219 + $0x68] sm:$0xf]
      %v306 = vld [vmem:[%s219 + $0x6c] sm:$0xf]
      %v307 = vld [vmem:[%s219 + $0x70] sm:$0xf]
      %v308 = vld [vmem:[%s219 + $0x74] sm:$0xf]
      %v309 = vld [vmem:[%s219 + $0x78] sm:$0xf]
      %v310 = vld [vmem:[%s219 + $0x7c] sm:$0xf]
      %v311 = vunpack.c.l.bf16 %v279
      %v312 = vunpack.c.l.bf16 %v280
      %v313 = vunpack.c.l.bf16 %v281
      %v314 = vunpack.c.l.bf16 %v282
      %v315 = vunpack.c.l.bf16 %v283
      %v316 = vunpack.c.l.bf16 %v284
      %v317 = vunpack.c.l.bf16 %v285
      %v318 = vunpack.c.l.bf16 %v286
      %v319 = vunpack.c.l.bf16 %v287
      %v320 = vunpack.c.l.bf16 %v288
      %v321 = vunpack.c.l.bf16 %v289
      %v322 = vunpack.c.l.bf16 %v290
      %v323 = vunpack.c.l.bf16 %v291
      %v324 = vunpack.c.l.bf16 %v292
      %v325 = vunpack.c.l.bf16 %v293
      %v326 = vunpack.c.l.bf16 %v294
      %v327 = vunpack.c.l.bf16 %v295
      %v328 = vunpack.c.l.bf16 %v296
      %v329 = vunpack.c.l.bf16 %v297
      %v330 = vunpack.c.l.bf16 %v298
      %v331 = vunpack.c.l.bf16 %v299
      %v332 = vunpack.c.l.bf16 %v300
      %v333 = vunpack.c.l.bf16 %v301
      %v334 = vunpack.c.l.bf16 %v302
      %v335 = vunpack.c.l.bf16 %v303
      %v336 = vunpack.c.l.bf16 %v304
      %v337 = vunpack.c.l.bf16 %v305
      %v338 = vunpack.c.l.bf16 %v306
      %v339 = vunpack.c.l.bf16 %v307
      %v340 = vunpack.c.l.bf16 %v308
      %v341 = vunpack.c.l.bf16 %v309
      %v342 = vunpack.c.l.bf16 %v310
      %s343 = scalar_lea.vmem [#allocation2], 24
      %344 = vst [vmem:[%s343 + $0x1] sm:$0xff] %v311
      %345 = vst [vmem:[%s343 + $0x9] sm:$0xff] %v312
      %346 = vst [vmem:[%s343 + $0x19] sm:$0xff] %v313
      %347 = vst [vmem:[%s343 + $0x21] sm:$0xff] %v314
      %348 = vst [vmem:[%s343 + $0x31] sm:$0xff] %v315
      %349 = vst [vmem:[%s343 + $0x39] sm:$0xff] %v316
      %350 = vst [vmem:[%s343 + $0x49] sm:$0xff] %v317
      %351 = vst [vmem:[%s343 + $0x51] sm:$0xff] %v318
      %352 = vst [vmem:[%s343 + $0x61] sm:$0xff] %v319
      %353 = vst [vmem:[%s343 + $0x69] sm:$0xff] %v320
      %354 = vst [vmem:[%s343 + $0x79] sm:$0xff] %v321
      %355 = vst [vmem:[%s343 + $0x81] sm:$0xff] %v322
      %356 = vst [vmem:[%s343 + $0x91] sm:$0xff] %v323
      %357 = vst [vmem:[%s343 + $0x99] sm:$0xff] %v324
      %358 = vst [vmem:[%s343 + $0xa9] sm:$0xff] %v325
      %359 = vst [vmem:[%s343 + $0xb1] sm:$0xff] %v326
      %360 = vst [vmem:[%s343 + $0xc1] sm:$0xff] %v327
      %361 = vst [vmem:[%s343 + $0xc9] sm:$0xff] %v328
      %362 = vst [vmem:[%s343 + $0xd9] sm:$0xff] %v329
      %363 = vst [vmem:[%s343 + $0xe1] sm:$0xff] %v330
      %364 = vst [vmem:[%s343 + $0xf1] sm:$0xff] %v331
      %365 = vst [vmem:[%s343 + $0xf9] sm:$0xff] %v332
      %366 = vst [vmem:[%s343 + $0x109] sm:$0xff] %v333
      %367 = vst [vmem:[%s343 + $0x111] sm:$0xff] %v334
      %368 = vst [vmem:[%s343 + $0x121] sm:$0xff] %v335
      %369 = vst [vmem:[%s343 + $0x129] sm:$0xff] %v336
      %370 = vst [vmem:[%s343 + $0x139] sm:$0xff] %v337
      %371 = vst [vmem:[%s343 + $0x141] sm:$0xff] %v338
      %372 = vst [vmem:[%s343 + $0x151] sm:$0xff] %v339
      %373 = vst [vmem:[%s343 + $0x159] sm:$0xff] %v340
      %374 = vst [vmem:[%s343 + $0x169] sm:$0xff] %v341
      %375 = vst [vmem:[%s343 + $0x171] sm:$0xff] %v342
      %v376 = vld [vmem:[%s2] sm:$0x1]
      %v377 = vld [vmem:[#allocation2] sm:$0xff]
      %v378 = vld [vmem:[#allocation2 + $0x8] sm:$0xff]
      %v379 = vld [vmem:[#allocation2 + $0x18] sm:$0xff]
      %v380 = vld [vmem:[#allocation2 + $0x20] sm:$0xff]
      %v381 = vld [vmem:[#allocation2 + $0x30] sm:$0xff]
      %v382 = vld [vmem:[#allocation2 + $0x38] sm:$0xff]
      %v383 = vld [vmem:[#allocation2 + $0x48] sm:$0xff]
      %v384 = vld [vmem:[#allocation2 + $0x50] sm:$0xff]
      %v385 = vld [vmem:[#allocation2 + $0x60] sm:$0xff]
      %v386 = vld [vmem:[#allocation2 + $0x68] sm:$0xff]
      %v387 = vld [vmem:[#allocation2 + $0x78] sm:$0xff]
      %v388 = vld [vmem:[#allocation2 + $0x80] sm:$0xff]
      %v389 = vld [vmem:[#allocation2 + $0x90] sm:$0xff]
      %v390 = vld [vmem:[#allocation2 + $0x98] sm:$0xff]
      %v391 = vld [vmem:[#allocation2 + $0xa8] sm:$0xff]
      %v392 = vld [vmem:[#allocation2 + $0xb0] sm:$0xff]
      %v393 = vld [vmem:[#allocation2 + $0xc0] sm:$0xff]
      %v394 = vld [vmem:[#allocation2 + $0xc8] sm:$0xff]
      %v395 = vld [vmem:[#allocation2 + $0xd8] sm:$0xff]
      %v396 = vld [vmem:[#allocation2 + $0xe0] sm:$0xff]
      %v397 = vld [vmem:[#allocation2 + $0xf0] sm:$0xff]
      %v398 = vld [vmem:[#allocation2 + $0xf8] sm:$0xff]
      %v399 = vld [vmem:[#allocation2 + $0x108] sm:$0xff]
      %v400 = vld [vmem:[#allocation2 + $0x110] sm:$0xff]
      %v401 = vld [vmem:[#allocation2 + $0x120] sm:$0xff]
      %v402 = vld [vmem:[#allocation2 + $0x128] sm:$0xff]
      %v403 = vld [vmem:[#allocation2 + $0x138] sm:$0xff]
      %v404 = vld [vmem:[#allocation2 + $0x140] sm:$0xff]
      %v405 = vld [vmem:[#allocation2 + $0x150] sm:$0xff]
      %v406 = vld [vmem:[#allocation2 + $0x158] sm:$0xff]
      %v407 = vld [vmem:[#allocation2 + $0x168] sm:$0xff]
      %v408 = vld [vmem:[#allocation2 + $0x170] sm:$0xff]
      %v409 = vld [vmem:[#allocation2 + $0x1] sm:$0xff]
      %v410 = vld [vmem:[#allocation2 + $0x9] sm:$0xff]
      %v411 = vld [vmem:[#allocation2 + $0x19] sm:$0xff]
      %v412 = vld [vmem:[#allocation2 + $0x21] sm:$0xff]
      %v413 = vld [vmem:[#allocation2 + $0x31] sm:$0xff]
      %v414 = vld [vmem:[#allocation2 + $0x39] sm:$0xff]
      %v415 = vld [vmem:[#allocation2 + $0x49] sm:$0xff]
      %v416 = vld [vmem:[#allocation2 + $0x51] sm:$0xff]
      %v417 = vld [vmem:[#allocation2 + $0x61] sm:$0xff]
      %v418 = vld [vmem:[#allocation2 + $0x69] sm:$0xff]
      %v419 = vld [vmem:[#allocation2 + $0x79] sm:$0xff]
      %v420 = vld [vmem:[#allocation2 + $0x81] sm:$0xff]
      %v421 = vld [vmem:[#allocation2 + $0x91] sm:$0xff]
      %v422 = vld [vmem:[#allocation2 + $0x99] sm:$0xff]
      %v423 = vld [vmem:[#allocation2 + $0xa9] sm:$0xff]
      %v424 = vld [vmem:[#allocation2 + $0xb1] sm:$0xff]
      %v425 = vld [vmem:[#allocation2 + $0xc1] sm:$0xff]
      %v426 = vld [vmem:[#allocation2 + $0xc9] sm:$0xff]
      %v427 = vld [vmem:[#allocation2 + $0xd9] sm:$0xff]
      %v428 = vld [vmem:[#allocation2 + $0xe1] sm:$0xff]
      %v429 = vld [vmem:[#allocation2 + $0xf1] sm:$0xff]
      %v430 = vld [vmem:[#allocation2 + $0xf9] sm:$0xff]
      %v431 = vld [vmem:[#allocation2 + $0x109] sm:$0xff]
      %v432 = vld [vmem:[#allocation2 + $0x111] sm:$0xff]
      %v433 = vld [vmem:[#allocation2 + $0x121] sm:$0xff]
      %v434 = vld [vmem:[#allocation2 + $0x129] sm:$0xff]
      %v435 = vld [vmem:[#allocation2 + $0x139] sm:$0xff]
      %v436 = vld [vmem:[#allocation2 + $0x141] sm:$0xff]
      %v437 = vld [vmem:[#allocation2 + $0x151] sm:$0xff]
      %v438 = vld [vmem:[#allocation2 + $0x159] sm:$0xff]
      %v439 = vld [vmem:[#allocation2 + $0x169] sm:$0xff]
      %v440 = vld [vmem:[#allocation2 + $0x171] sm:$0xff]
      %v441 = vld [vmem:[#allocation2 + $0x2] sm:$0xff]
      %v442 = vld [vmem:[#allocation2 + $0xa] sm:$0xff]
      %v443 = vld [vmem:[#allocation2 + $0x1a] sm:$0xff]
      %v444 = vld [vmem:[#allocation2 + $0x22] sm:$0xff]
      %v445 = vld [vmem:[#allocation2 + $0x32] sm:$0xff]
      %v446 = vld [vmem:[#allocation2 + $0x3a] sm:$0xff]
      %v447 = vld [vmem:[#allocation2 + $0x4a] sm:$0xff]
      %v448 = vld [vmem:[#allocation2 + $0x52] sm:$0xff]
      %v449 = vld [vmem:[#allocation2 + $0x62] sm:$0xff]
      %v450 = vld [vmem:[#allocation2 + $0x6a] sm:$0xff]
      %v451 = vld [vmem:[#allocation2 + $0x7a] sm:$0xff]
      %v452 = vld [vmem:[#allocation2 + $0x82] sm:$0xff]
      %v453 = vld [vmem:[#allocation2 + $0x92] sm:$0xff]
      %v454 = vld [vmem:[#allocation2 + $0x9a] sm:$0xff]
      %v455 = vld [vmem:[#allocation2 + $0xaa] sm:$0xff]
      %v456 = vld [vmem:[#allocation2 + $0xb2] sm:$0xff]
      %v457 = vld [vmem:[#allocation2 + $0xc2] sm:$0xff]
      %v458 = vld [vmem:[#allocation2 + $0xca] sm:$0xff]
      %v459 = vld [vmem:[#allocation2 + $0xda] sm:$0xff]
      %v460 = vld [vmem:[#allocation2 + $0xe2] sm:$0xff]
      %v461 = vld [vmem:[#allocation2 + $0xf2] sm:$0xff]
      %v462 = vld [vmem:[#allocation2 + $0xfa] sm:$0xff]
      %v463 = vld [vmem:[#allocation2 + $0x10a] sm:$0xff]
      %v464 = vld [vmem:[#allocation2 + $0x112] sm:$0xff]
      %v465 = vld [vmem:[#allocation2 + $0x122] sm:$0xff]
      %v466 = vld [vmem:[#allocation2 + $0x12a] sm:$0xff]
      %v467 = vld [vmem:[#allocation2 + $0x13a] sm:$0xff]
      %v468 = vld [vmem:[#allocation2 + $0x142] sm:$0xff]
      %v469 = vld [vmem:[#allocation2 + $0x152] sm:$0xff]
      %v470 = vld [vmem:[#allocation2 + $0x15a] sm:$0xff]
      %v471 = vld [vmem:[#allocation2 + $0x16a] sm:$0xff]
      %v472 = vld [vmem:[#allocation2 + $0x172] sm:$0xff]
      %v473 = vpack.c.bf16 %v378, %v377
      %v474 = vpack.c.bf16 %v410, %v409
      %v475 = vpack.c.bf16 %v442, %v441
      %v476 = vpack.c.bf16 %v380, %v379
      %v477 = vpack.c.bf16 %v412, %v411
      %v478 = vpack.c.bf16 %v444, %v443
      %v479 = vpack.c.bf16 %v382, %v381
      %v480 = vpack.c.bf16 %v414, %v413
      %v481 = vpack.c.bf16 %v446, %v445
      %v482 = vpack.c.bf16 %v384, %v383
      %v483 = vpack.c.bf16 %v416, %v415
      %v484 = vpack.c.bf16 %v448, %v447
      %v485 = vpack.c.bf16 %v386, %v385
      %v486 = vpack.c.bf16 %v418, %v417
      %v487 = vpack.c.bf16 %v450, %v449
      %v488 = vpack.c.bf16 %v388, %v387
      %v489 = vpack.c.bf16 %v420, %v419
      %v490 = vpack.c.bf16 %v452, %v451
      %v491 = vpack.c.bf16 %v390, %v389
      %v492 = vpack.c.bf16 %v422, %v421
      %v493 = vpack.c.bf16 %v454, %v453
      %v494 = vpack.c.bf16 %v392, %v391
      %v495 = vpack.c.bf16 %v424, %v423
      %v496 = vpack.c.bf16 %v456, %v455
      %v497 = vpack.c.bf16 %v394, %v393
      %v498 = vpack.c.bf16 %v426, %v425
      %v499 = vpack.c.bf16 %v458, %v457
      %v500 = vpack.c.bf16 %v396, %v395
      %v501 = vpack.c.bf16 %v428, %v427
      %v502 = vpack.c.bf16 %v460, %v459
      %v503 = vpack.c.bf16 %v398, %v397
      %v504 = vpack.c.bf16 %v430, %v429
      %v505 = vpack.c.bf16 %v462, %v461
      %v506 = vpack.c.bf16 %v400, %v399
      %v507 = vpack.c.bf16 %v432, %v431
      %v508 = vpack.c.bf16 %v464, %v463
      %v509 = vpack.c.bf16 %v402, %v401
      %v510 = vpack.c.bf16 %v434, %v433
      %v511 = vpack.c.bf16 %v466, %v465
      %v512 = vpack.c.bf16 %v404, %v403
      %v513 = vpack.c.bf16 %v436, %v435
      %v514 = vpack.c.bf16 %v468, %v467
      %v515 = vpack.c.bf16 %v406, %v405
      %v516 = vpack.c.bf16 %v438, %v437
      %v517 = vpack.c.bf16 %v470, %v469
      %v518 = vpack.c.bf16 %v408, %v407
      %v519 = vpack.c.bf16 %v440, %v439
      %v520 = vpack.c.bf16 %v472, %v471
      %v521 = vld [vmem:[%s1] sm:$0xf]
      %v522 = vld [vmem:[%s1 + $0x4] sm:$0xf]
      %v523 = vld [vmem:[%s1 + $0x8] sm:$0xf]
      %v524 = vld [vmem:[%s1 + $0xc] sm:$0xf]
      %v525 = vld [vmem:[%s1 + $0x10] sm:$0xf]
      %v526 = vld [vmem:[%s1 + $0x14] sm:$0xf]
      %v527 = vld [vmem:[%s1 + $0x18] sm:$0xf]
      %v528 = vld [vmem:[%s1 + $0x1c] sm:$0xf]
      %v529 = vld [vmem:[%s1 + $0x20] sm:$0xf]
      %v530 = vld [vmem:[%s1 + $0x24] sm:$0xf]
      %v531 = vld [vmem:[%s1 + $0x28] sm:$0xf]
      %v532 = vld [vmem:[%s1 + $0x2c] sm:$0xf]
      %v533 = vld [vmem:[%s1 + $0x30] sm:$0xf]
      %v534 = vld [vmem:[%s1 + $0x34] sm:$0xf]
      %v535 = vld [vmem:[%s1 + $0x38] sm:$0xf]
      %v536 = vld [vmem:[%s1 + $0x3c] sm:$0xf]
      %v537 = vld [vmem:[%s1 + $0x40] sm:$0xf]
      %v538 = vld [vmem:[%s1 + $0x44] sm:$0xf]
      %v539 = vld [vmem:[%s1 + $0x48] sm:$0xf]
      %v540 = vld [vmem:[%s1 + $0x4c] sm:$0xf]
      %v541 = vld [vmem:[%s1 + $0x50] sm:$0xf]
      %v542 = vld [vmem:[%s1 + $0x54] sm:$0xf]
      %v543 = vld [vmem:[%s1 + $0x58] sm:$0xf]
      %v544 = vld [vmem:[%s1 + $0x5c] sm:$0xf]
      %v545 = vld [vmem:[%s1 + $0x60] sm:$0xf]
      %v546 = vld [vmem:[%s1 + $0x64] sm:$0xf]
      %v547 = vld [vmem:[%s1 + $0x68] sm:$0xf]
      %v548 = vld [vmem:[%s1 + $0x6c] sm:$0xf]
      %v549 = vld [vmem:[%s1 + $0x70] sm:$0xf]
      %v550 = vld [vmem:[%s1 + $0x74] sm:$0xf]
      %v551 = vld [vmem:[%s1 + $0x78] sm:$0xf]
      %v552 = vld [vmem:[%s1 + $0x7c] sm:$0xf]
      %v553 = vld [vmem:[%s1 + $0x80] sm:$0xf]
      %v554 = vld [vmem:[%s1 + $0x84] sm:$0xf]
      %v555 = vld [vmem:[%s1 + $0x88] sm:$0xf]
      %v556 = vld [vmem:[%s1 + $0x8c] sm:$0xf]
      %v557 = vld [vmem:[%s1 + $0x90] sm:$0xf]
      %v558 = vld [vmem:[%s1 + $0x94] sm:$0xf]
      %v559 = vld [vmem:[%s1 + $0x98] sm:$0xf]
      %v560 = vld [vmem:[%s1 + $0x9c] sm:$0xf]
      %v561 = vld [vmem:[%s1 + $0xa0] sm:$0xf]
      %v562 = vld [vmem:[%s1 + $0xa4] sm:$0xf]
      %v563 = vld [vmem:[%s1 + $0xa8] sm:$0xf]
      %v564 = vld [vmem:[%s1 + $0xac] sm:$0xf]
      %v565 = vld [vmem:[%s1 + $0xb0] sm:$0xf]
      %v566 = vld [vmem:[%s1 + $0xb4] sm:$0xf]
      %v567 = vld [vmem:[%s1 + $0xb8] sm:$0xf]
      %v568 = vld [vmem:[%s1 + $0xbc] sm:$0xf]
      %v569 = vld [vmem:[%s343] sm:$0xff]
      %v570 = vld [vmem:[%s343 + $0x8] sm:$0xff]
      %v571 = vld [vmem:[%s343 + $0x18] sm:$0xff]
      %v572 = vld [vmem:[%s343 + $0x20] sm:$0xff]
      %v573 = vld [vmem:[%s343 + $0x30] sm:$0xff]
      %v574 = vld [vmem:[%s343 + $0x38] sm:$0xff]
      %v575 = vld [vmem:[%s343 + $0x48] sm:$0xff]
      %v576 = vld [vmem:[%s343 + $0x50] sm:$0xff]
      %v577 = vld [vmem:[%s343 + $0x60] sm:$0xff]
      %v578 = vld [vmem:[%s343 + $0x68] sm:$0xff]
      %v579 = vld [vmem:[%s343 + $0x78] sm:$0xff]
      %v580 = vld [vmem:[%s343 + $0x80] sm:$0xff]
      %v581 = vld [vmem:[%s343 + $0x90] sm:$0xff]
      %v582 = vld [vmem:[%s343 + $0x98] sm:$0xff]
      %v583 = vld [vmem:[%s343 + $0xa8] sm:$0xff]
      %v584 = vld [vmem:[%s343 + $0xb0] sm:$0xff]
      %v585 = vld [vmem:[%s343 + $0xc0] sm:$0xff]
      %v586 = vld [vmem:[%s343 + $0xc8] sm:$0xff]
      %v587 = vld [vmem:[%s343 + $0xd8] sm:$0xff]
      %v588 = vld [vmem:[%s343 + $0xe0] sm:$0xff]
      %v589 = vld [vmem:[%s343 + $0xf0] sm:$0xff]
      %v590 = vld [vmem:[%s343 + $0xf8] sm:$0xff]
      %v591 = vld [vmem:[%s343 + $0x108] sm:$0xff]
      %v592 = vld [vmem:[%s343 + $0x110] sm:$0xff]
      %v593 = vld [vmem:[%s343 + $0x120] sm:$0xff]
      %v594 = vld [vmem:[%s343 + $0x128] sm:$0xff]
      %v595 = vld [vmem:[%s343 + $0x138] sm:$0xff]
      %v596 = vld [vmem:[%s343 + $0x140] sm:$0xff]
      %v597 = vld [vmem:[%s343 + $0x150] sm:$0xff]
      %v598 = vld [vmem:[%s343 + $0x158] sm:$0xff]
      %v599 = vld [vmem:[%s343 + $0x168] sm:$0xff]
      %v600 = vld [vmem:[%s343 + $0x170] sm:$0xff]
      %v601 = vld [vmem:[%s343 + $0x1] sm:$0xff]
      %v602 = vld [vmem:[%s343 + $0x9] sm:$0xff]
      %v603 = vld [vmem:[%s343 + $0x19] sm:$0xff]
      %v604 = vld [vmem:[%s343 + $0x21] sm:$0xff]
      %v605 = vld [vmem:[%s343 + $0x31] sm:$0xff]
      %v606 = vld [vmem:[%s343 + $0x39] sm:$0xff]
      %v607 = vld [vmem:[%s343 + $0x49] sm:$0xff]
      %v608 = vld [vmem:[%s343 + $0x51] sm:$0xff]
      %v609 = vld [vmem:[%s343 + $0x61] sm:$0xff]
      %v610 = vld [vmem:[%s343 + $0x69] sm:$0xff]
      %v611 = vld [vmem:[%s343 + $0x79] sm:$0xff]
      %v612 = vld [vmem:[%s343 + $0x81] sm:$0xff]
      %v613 = vld [vmem:[%s343 + $0x91] sm:$0xff]
      %v614 = vld [vmem:[%s343 + $0x99] sm:$0xff]
      %v615 = vld [vmem:[%s343 + $0xa9] sm:$0xff]
      %v616 = vld [vmem:[%s343 + $0xb1] sm:$0xff]
      %v617 = vld [vmem:[%s343 + $0xc1] sm:$0xff]
      %v618 = vld [vmem:[%s343 + $0xc9] sm:$0xff]
      %v619 = vld [vmem:[%s343 + $0xd9] sm:$0xff]
      %v620 = vld [vmem:[%s343 + $0xe1] sm:$0xff]
      %v621 = vld [vmem:[%s343 + $0xf1] sm:$0xff]
      %v622 = vld [vmem:[%s343 + $0xf9] sm:$0xff]
      %v623 = vld [vmem:[%s343 + $0x109] sm:$0xff]
      %v624 = vld [vmem:[%s343 + $0x111] sm:$0xff]
      %v625 = vld [vmem:[%s343 + $0x121] sm:$0xff]
      %v626 = vld [vmem:[%s343 + $0x129] sm:$0xff]
      %v627 = vld [vmem:[%s343 + $0x139] sm:$0xff]
      %v628 = vld [vmem:[%s343 + $0x141] sm:$0xff]
      %v629 = vld [vmem:[%s343 + $0x151] sm:$0xff]
      %v630 = vld [vmem:[%s343 + $0x159] sm:$0xff]
      %v631 = vld [vmem:[%s343 + $0x169] sm:$0xff]
      %v632 = vld [vmem:[%s343 + $0x171] sm:$0xff]
      %v633 = vld [vmem:[%s343 + $0x2] sm:$0xff]
      %v634 = vld [vmem:[%s343 + $0xa] sm:$0xff]
      %v635 = vld [vmem:[%s343 + $0x1a] sm:$0xff]
      %v636 = vld [vmem:[%s343 + $0x22] sm:$0xff]
      %v637 = vld [vmem:[%s343 + $0x32] sm:$0xff]
      %v638 = vld [vmem:[%s343 + $0x3a] sm:$0xff]
      %v639 = vld [vmem:[%s343 + $0x4a] sm:$0xff]
      %v640 = vld [vmem:[%s343 + $0x52] sm:$0xff]
      %v641 = vld [vmem:[%s343 + $0x62] sm:$0xff]
      %v642 = vld [vmem:[%s343 + $0x6a] sm:$0xff]
      %v643 = vld [vmem:[%s343 + $0x7a] sm:$0xff]
      %v644 = vld [vmem:[%s343 + $0x82] sm:$0xff]
      %v645 = vld [vmem:[%s343 + $0x92] sm:$0xff]
      %v646 = vld [vmem:[%s343 + $0x9a] sm:$0xff]
      %v647 = vld [vmem:[%s343 + $0xaa] sm:$0xff]
      %v648 = vld [vmem:[%s343 + $0xb2] sm:$0xff]
      %v649 = vld [vmem:[%s343 + $0xc2] sm:$0xff]
      %v650 = vld [vmem:[%s343 + $0xca] sm:$0xff]
      %v651 = vld [vmem:[%s343 + $0xda] sm:$0xff]
      %v652 = vld [vmem:[%s343 + $0xe2] sm:$0xff]
      %v653 = vld [vmem:[%s343 + $0xf2] sm:$0xff]
      %v654 = vld [vmem:[%s343 + $0xfa] sm:$0xff]
      %v655 = vld [vmem:[%s343 + $0x10a] sm:$0xff]
      %v656 = vld [vmem:[%s343 + $0x112] sm:$0xff]
      %v657 = vld [vmem:[%s343 + $0x122] sm:$0xff]
      %v658 = vld [vmem:[%s343 + $0x12a] sm:$0xff]
      %v659 = vld [vmem:[%s343 + $0x13a] sm:$0xff]
      %v660 = vld [vmem:[%s343 + $0x142] sm:$0xff]
      %v661 = vld [vmem:[%s343 + $0x152] sm:$0xff]
      %v662 = vld [vmem:[%s343 + $0x15a] sm:$0xff]
      %v663 = vld [vmem:[%s343 + $0x16a] sm:$0xff]
      %v664 = vld [vmem:[%s343 + $0x172] sm:$0xff]
      %v665 = vpack.c.bf16 %v570, %v569
      %v666 = vpack.c.bf16 %v602, %v601
      %v667 = vpack.c.bf16 %v634, %v633
      %v668 = vpack.c.bf16 %v572, %v571
      %v669 = vpack.c.bf16 %v604, %v603
      %v670 = vpack.c.bf16 %v636, %v635
      %v671 = vpack.c.bf16 %v574, %v573
      %v672 = vpack.c.bf16 %v606, %v605
      %v673 = vpack.c.bf16 %v638, %v637
      %v674 = vpack.c.bf16 %v576, %v575
      %v675 = vpack.c.bf16 %v608, %v607
      %v676 = vpack.c.bf16 %v640, %v639
      %v677 = vpack.c.bf16 %v578, %v577
      %v678 = vpack.c.bf16 %v610, %v609
      %v679 = vpack.c.bf16 %v642, %v641
      %v680 = vpack.c.bf16 %v580, %v579
      %v681 = vpack.c.bf16 %v612, %v611
      %v682 = vpack.c.bf16 %v644, %v643
      %v683 = vpack.c.bf16 %v582, %v581
      %v684 = vpack.c.bf16 %v614, %v613
      %v685 = vpack.c.bf16 %v646, %v645
      %v686 = vpack.c.bf16 %v584, %v583
      %v687 = vpack.c.bf16 %v616, %v615
      %v688 = vpack.c.bf16 %v648, %v647
      %v689 = vpack.c.bf16 %v586, %v585
      %v690 = vpack.c.bf16 %v618, %v617
      %v691 = vpack.c.bf16 %v650, %v649
      %v692 = vpack.c.bf16 %v588, %v587
      %v693 = vpack.c.bf16 %v620, %v619
      %v694 = vpack.c.bf16 %v652, %v651
      %v695 = vpack.c.bf16 %v590, %v589
      %v696 = vpack.c.bf16 %v622, %v621
      %v697 = vpack.c.bf16 %v654, %v653
      %v698 = vpack.c.bf16 %v592, %v591
      %v699 = vpack.c.bf16 %v624, %v623
      %v700 = vpack.c.bf16 %v656, %v655
      %v701 = vpack.c.bf16 %v594, %v593
      %v702 = vpack.c.bf16 %v626, %v625
      %v703 = vpack.c.bf16 %v658, %v657
      %v704 = vpack.c.bf16 %v596, %v595
      %v705 = vpack.c.bf16 %v628, %v627
      %v706 = vpack.c.bf16 %v660, %v659
      %v707 = vpack.c.bf16 %v598, %v597
      %v708 = vpack.c.bf16 %v630, %v629
      %v709 = vpack.c.bf16 %v662, %v661
      %v710 = vpack.c.bf16 %v600, %v599
      %v711 = vpack.c.bf16 %v632, %v631
      %v712 = vpack.c.bf16 %v664, %v663
      %s713 = scalar_lea.vmem %s1, 192
      %v714 = vld [vmem:[%s713] sm:$0xf]
      %v715 = vld [vmem:[%s713 + $0x4] sm:$0xf]
      %v716 = vld [vmem:[%s713 + $0x8] sm:$0xf]
      %v717 = vld [vmem:[%s713 + $0xc] sm:$0xf]
      %v718 = vld [vmem:[%s713 + $0x10] sm:$0xf]
      %v719 = vld [vmem:[%s713 + $0x14] sm:$0xf]
      %v720 = vld [vmem:[%s713 + $0x18] sm:$0xf]
      %v721 = vld [vmem:[%s713 + $0x1c] sm:$0xf]
      %v722 = vld [vmem:[%s713 + $0x20] sm:$0xf]
      %v723 = vld [vmem:[%s713 + $0x24] sm:$0xf]
      %v724 = vld [vmem:[%s713 + $0x28] sm:$0xf]
      %v725 = vld [vmem:[%s713 + $0x2c] sm:$0xf]
      %v726 = vld [vmem:[%s713 + $0x30] sm:$0xf]
      %v727 = vld [vmem:[%s713 + $0x34] sm:$0xf]
      %v728 = vld [vmem:[%s713 + $0x38] sm:$0xf]
      %v729 = vld [vmem:[%s713 + $0x3c] sm:$0xf]
      %v730 = vld [vmem:[%s713 + $0x40] sm:$0xf]
      %v731 = vld [vmem:[%s713 + $0x44] sm:$0xf]
      %v732 = vld [vmem:[%s713 + $0x48] sm:$0xf]
      %v733 = vld [vmem:[%s713 + $0x4c] sm:$0xf]
      %v734 = vld [vmem:[%s713 + $0x50] sm:$0xf]
      %v735 = vld [vmem:[%s713 + $0x54] sm:$0xf]
      %v736 = vld [vmem:[%s713 + $0x58] sm:$0xf]
      %v737 = vld [vmem:[%s713 + $0x5c] sm:$0xf]
      %v738 = vld [vmem:[%s713 + $0x60] sm:$0xf]
      %v739 = vld [vmem:[%s713 + $0x64] sm:$0xf]
      %v740 = vld [vmem:[%s713 + $0x68] sm:$0xf]
      %v741 = vld [vmem:[%s713 + $0x6c] sm:$0xf]
      %v742 = vld [vmem:[%s713 + $0x70] sm:$0xf]
      %v743 = vld [vmem:[%s713 + $0x74] sm:$0xf]
      %v744 = vld [vmem:[%s713 + $0x78] sm:$0xf]
      %v745 = vld [vmem:[%s713 + $0x7c] sm:$0xf]
      %v746 = vld [vmem:[%s713 + $0x80] sm:$0xf]
      %v747 = vld [vmem:[%s713 + $0x84] sm:$0xf]
      %v748 = vld [vmem:[%s713 + $0x88] sm:$0xf]
      %v749 = vld [vmem:[%s713 + $0x8c] sm:$0xf]
      %v750 = vld [vmem:[%s713 + $0x90] sm:$0xf]
      %v751 = vld [vmem:[%s713 + $0x94] sm:$0xf]
      %v752 = vld [vmem:[%s713 + $0x98] sm:$0xf]
      %v753 = vld [vmem:[%s713 + $0x9c] sm:$0xf]
      %v754 = vld [vmem:[%s713 + $0xa0] sm:$0xf]
      %v755 = vld [vmem:[%s713 + $0xa4] sm:$0xf]
      %v756 = vld [vmem:[%s713 + $0xa8] sm:$0xf]
      %v757 = vld [vmem:[%s713 + $0xac] sm:$0xf]
      %v758 = vld [vmem:[%s713 + $0xb0] sm:$0xf]
      %v759 = vld [vmem:[%s713 + $0xb4] sm:$0xf]
      %v760 = vld [vmem:[%s713 + $0xb8] sm:$0xf]
      %v761 = vld [vmem:[%s713 + $0xbc] sm:$0xf]
      %v810 = vunpack.c.l.b16 %v714
      %v811 = vunpack.c.l.b16 %v715
      %v812 = vunpack.c.l.b16 %v716
      %v813 = vunpack.c.l.b16 %v717
      %v814 = vunpack.c.l.b16 %v718
      %v815 = vunpack.c.l.b16 %v719
      %v816 = vunpack.c.l.b16 %v720
      %v817 = vunpack.c.l.b16 %v721
      %v818 = vunpack.c.l.b16 %v722
      %v819 = vunpack.c.l.b16 %v723
      %v820 = vunpack.c.l.b16 %v724
      %v821 = vunpack.c.l.b16 %v725
      %v822 = vunpack.c.l.b16 %v726
      %v823 = vunpack.c.l.b16 %v727
      %v824 = vunpack.c.l.b16 %v728
      %v825 = vunpack.c.l.b16 %v729
      %v826 = vunpack.c.l.b16 %v730
      %v827 = vunpack.c.l.b16 %v731
      %v828 = vunpack.c.l.b16 %v732
      %v829 = vunpack.c.l.b16 %v733
      %v830 = vunpack.c.l.b16 %v734
      %v831 = vunpack.c.l.b16 %v735
      %v832 = vunpack.c.l.b16 %v736
      %v833 = vunpack.c.l.b16 %v737
      %v834 = vunpack.c.l.b16 %v738
      %v835 = vunpack.c.l.b16 %v739
      %v836 = vunpack.c.l.b16 %v740
      %v837 = vunpack.c.l.b16 %v741
      %v838 = vunpack.c.l.b16 %v742
      %v839 = vunpack.c.l.b16 %v743
      %v840 = vunpack.c.l.b16 %v744
      %v841 = vunpack.c.l.b16 %v745
      %v842 = vunpack.c.l.b16 %v746
      %v843 = vunpack.c.l.b16 %v747
      %v844 = vunpack.c.l.b16 %v748
      %v845 = vunpack.c.l.b16 %v749
      %v846 = vunpack.c.l.b16 %v750
      %v847 = vunpack.c.l.b16 %v751
      %v848 = vunpack.c.l.b16 %v752
      %v849 = vunpack.c.l.b16 %v753
      %v850 = vunpack.c.l.b16 %v754
      %v851 = vunpack.c.l.b16 %v755
      %v852 = vunpack.c.l.b16 %v756
      %v853 = vunpack.c.l.b16 %v757
      %v854 = vunpack.c.l.b16 %v758
      %v855 = vunpack.c.l.b16 %v759
      %v856 = vunpack.c.l.b16 %v760
      %v857 = vunpack.c.l.b16 %v761
      %v858 = vpack.c.b16 %v811, %v810
      %v859 = vpack.c.b16 %v813, %v812
      %v860 = vpack.c.b16 %v815, %v814
      %v861 = vpack.c.b16 %v817, %v816
      %v862 = vpack.c.b16 %v819, %v818
      %v863 = vpack.c.b16 %v821, %v820
      %v864 = vpack.c.b16 %v823, %v822
      %v865 = vpack.c.b16 %v825, %v824
      %v866 = vpack.c.b16 %v827, %v826
      %v867 = vpack.c.b16 %v829, %v828
      %v868 = vpack.c.b16 %v831, %v830
      %v869 = vpack.c.b16 %v833, %v832
      %v870 = vpack.c.b16 %v835, %v834
      %v871 = vpack.c.b16 %v837, %v836
      %v872 = vpack.c.b16 %v839, %v838
      %v873 = vpack.c.b16 %v841, %v840
      %v874 = vpack.c.b16 %v843, %v842
      %v875 = vpack.c.b16 %v845, %v844
      %v876 = vpack.c.b16 %v847, %v846
      %v877 = vpack.c.b16 %v849, %v848
      %v878 = vpack.c.b16 %v851, %v850
      %v879 = vpack.c.b16 %v853, %v852
      %v880 = vpack.c.b16 %v855, %v854
      %v881 = vpack.c.b16 %v857, %v856
      %906 = vmatpush.bf16.msra.mxu0 %v865
      %907 = vmatpush.bf16.msra.mxu0 %v864
      %908 = vmatpush.bf16.msra.mxu0 %v863
      %909 = vmatpush.bf16.msra.mxu0 %v862
      %910 = vmatpush.bf16.msra.mxu0 %v861
      %911 = vmatpush.bf16.msra.mxu0 %v860
      %912 = vmatpush.bf16.msra.mxu0 %v859
      %913 = vmatpush.bf16.msra.mxu0 %v858
      %914 = vmatmul.bf16.gmra.mxu0 %v665
      %v915 = vpop.f32.mrf.mxu0
      %v916 = vadd.f32 0.0, %v915
      %v917 = vpop.f32.mrf.mxu0
      %v918 = vadd.f32 0.0, %v917
      %919 = vmatmul.bf16.gmra.mxu0 %v668
      %v920 = vpop.f32.mrf.mxu0
      %v921 = vadd.f32 0.0, %v920
      %v922 = vpop.f32.mrf.mxu0
      %v923 = vadd.f32 0.0, %v922
      %924 = vmatmul.bf16.gmra.mxu0 %v671
      %v925 = vpop.f32.mrf.mxu0
      %v926 = vadd.f32 0.0, %v925
      %v927 = vpop.f32.mrf.mxu0
      %v928 = vadd.f32 0.0, %v927
      %929 = vmatmul.bf16.gmra.mxu0 %v674
      %v930 = vpop.f32.mrf.mxu0
      %v931 = vadd.f32 0.0, %v930
      %v932 = vpop.f32.mrf.mxu0
      %v933 = vadd.f32 0.0, %v932
      %934 = vmatmul.bf16.gmra.mxu0 %v677
      %v935 = vpop.f32.mrf.mxu0
      %v936 = vadd.f32 0.0, %v935
      %v937 = vpop.f32.mrf.mxu0
      %v938 = vadd.f32 0.0, %v937
      %939 = vmatmul.bf16.gmra.mxu0 %v680
      %v940 = vpop.f32.mrf.mxu0
      %v941 = vadd.f32 0.0, %v940
      %v942 = vpop.f32.mrf.mxu0
      %v943 = vadd.f32 0.0, %v942
      %944 = vmatmul.bf16.gmra.mxu0 %v683
      %v945 = vpop.f32.mrf.mxu0
      %v946 = vadd.f32 0.0, %v945
      %v947 = vpop.f32.mrf.mxu0
      %v948 = vadd.f32 0.0, %v947
      %949 = vmatmul.bf16.gmra.mxu0 %v686
      %v950 = vpop.f32.mrf.mxu0
      %v951 = vadd.f32 0.0, %v950
      %v952 = vpop.f32.mrf.mxu0
      %v953 = vadd.f32 0.0, %v952
      %954 = vmatmul.bf16.gmra.mxu0 %v689
      %v955 = vpop.f32.mrf.mxu0
      %v956 = vadd.f32 0.0, %v955
      %v957 = vpop.f32.mrf.mxu0
      %v958 = vadd.f32 0.0, %v957
      %959 = vmatmul.bf16.gmra.mxu0 %v692
      %v960 = vpop.f32.mrf.mxu0
      %v961 = vadd.f32 0.0, %v960
      %v962 = vpop.f32.mrf.mxu0
      %v963 = vadd.f32 0.0, %v962
      %964 = vmatmul.bf16.gmra.mxu0 %v695
      %v965 = vpop.f32.mrf.mxu0
      %v966 = vadd.f32 0.0, %v965
      %v967 = vpop.f32.mrf.mxu0
      %v968 = vadd.f32 0.0, %v967
      %969 = vmatmul.bf16.gmra.mxu0 %v698
      %v970 = vpop.f32.mrf.mxu0
      %v971 = vadd.f32 0.0, %v970
      %v972 = vpop.f32.mrf.mxu0
      %v973 = vadd.f32 0.0, %v972
      %974 = vmatmul.bf16.gmra.mxu0 %v701
      %v975 = vpop.f32.mrf.mxu0
      %v976 = vadd.f32 0.0, %v975
      %v977 = vpop.f32.mrf.mxu0
      %v978 = vadd.f32 0.0, %v977
      %979 = vmatmul.bf16.gmra.mxu0 %v704
      %v980 = vpop.f32.mrf.mxu0
      %v981 = vadd.f32 0.0, %v980
      %v982 = vpop.f32.mrf.mxu0
      %v983 = vadd.f32 0.0, %v982
      %984 = vmatmul.bf16.gmra.mxu0 %v707
      %v985 = vpop.f32.mrf.mxu0
      %v986 = vadd.f32 0.0, %v985
      %v987 = vpop.f32.mrf.mxu0
      %v988 = vadd.f32 0.0, %v987
      %989 = vmatmul.bf16.gmra.mxu0 %v710
      %v990 = vpop.f32.mrf.mxu0
      %v991 = vadd.f32 0.0, %v990
      %v992 = vpop.f32.mrf.mxu0
      %v993 = vadd.f32 0.0, %v992
      %994 = vdwg.mxu0
      %995 = vmatpush.bf16.msra.mxu0 %v873
      %996 = vmatpush.bf16.msra.mxu0 %v872
      %997 = vmatpush.bf16.msra.mxu0 %v871
      %998 = vmatpush.bf16.msra.mxu0 %v870
      %999 = vmatpush.bf16.msra.mxu0 %v869
      %1000 = vmatpush.bf16.msra.mxu0 %v868
      %1001 = vmatpush.bf16.msra.mxu0 %v867
      %1002 = vmatpush.bf16.msra.mxu0 %v866
      %1003 = vmatmul.bf16.gmra.mxu0 %v666
      %v1004 = vpop.f32.mrf.mxu0
      %v1005 = vadd.f32 %v916, %v1004
      %v1006 = vpop.f32.mrf.mxu0
      %v1007 = vadd.f32 %v918, %v1006
      %1008 = vmatmul.bf16.gmra.mxu0 %v669
      %v1009 = vpop.f32.mrf.mxu0
      %v1010 = vadd.f32 %v921, %v1009
      %v1011 = vpop.f32.mrf.mxu0
      %v1012 = vadd.f32 %v923, %v1011
      %1013 = vmatmul.bf16.gmra.mxu0 %v672
      %v1014 = vpop.f32.mrf.mxu0
      %v1015 = vadd.f32 %v926, %v1014
      %v1016 = vpop.f32.mrf.mxu0
      %v1017 = vadd.f32 %v928, %v1016
      %1018 = vmatmul.bf16.gmra.mxu0 %v675
      %v1019 = vpop.f32.mrf.mxu0
      %v1020 = vadd.f32 %v931, %v1019
      %v1021 = vpop.f32.mrf.mxu0
      %v1022 = vadd.f32 %v933, %v1021
      %1023 = vmatmul.bf16.gmra.mxu0 %v678
      %v1024 = vpop.f32.mrf.mxu0
      %v1025 = vadd.f32 %v936, %v1024
      %v1026 = vpop.f32.mrf.mxu0
      %v1027 = vadd.f32 %v938, %v1026
      %1028 = vmatmul.bf16.gmra.mxu0 %v681
      %v1029 = vpop.f32.mrf.mxu0
      %v1030 = vadd.f32 %v941, %v1029
      %v1031 = vpop.f32.mrf.mxu0
      %v1032 = vadd.f32 %v943, %v1031
      %1033 = vmatmul.bf16.gmra.mxu0 %v684
      %v1034 = vpop.f32.mrf.mxu0
      %v1035 = vadd.f32 %v946, %v1034
      %v1036 = vpop.f32.mrf.mxu0
      %v1037 = vadd.f32 %v948, %v1036
      %1038 = vmatmul.bf16.gmra.mxu0 %v687
      %v1039 = vpop.f32.mrf.mxu0
      %v1040 = vadd.f32 %v951, %v1039
      %v1041 = vpop.f32.mrf.mxu0
      %v1042 = vadd.f32 %v953, %v1041
      %1043 = vmatmul.bf16.gmra.mxu0 %v690
      %v1044 = vpop.f32.mrf.mxu0
      %v1045 = vadd.f32 %v956, %v1044
      %v1046 = vpop.f32.mrf.mxu0
      %v1047 = vadd.f32 %v958, %v1046
      %1048 = vmatmul.bf16.gmra.mxu0 %v693
      %v1049 = vpop.f32.mrf.mxu0
      %v1050 = vadd.f32 %v961, %v1049
      %v1051 = vpop.f32.mrf.mxu0
      %v1052 = vadd.f32 %v963, %v1051
      %1053 = vmatmul.bf16.gmra.mxu0 %v696
      %v1054 = vpop.f32.mrf.mxu0
      %v1055 = vadd.f32 %v966, %v1054
      %v1056 = vpop.f32.mrf.mxu0
      %v1057 = vadd.f32 %v968, %v1056
      %1058 = vmatmul.bf16.gmra.mxu0 %v699
      %v1059 = vpop.f32.mrf.mxu0
      %v1060 = vadd.f32 %v971, %v1059
      %v1061 = vpop.f32.mrf.mxu0
      %v1062 = vadd.f32 %v973, %v1061
      %1063 = vmatmul.bf16.gmra.mxu0 %v702
      %v1064 = vpop.f32.mrf.mxu0
      %v1065 = vadd.f32 %v976, %v1064
      %v1066 = vpop.f32.mrf.mxu0
      %v1067 = vadd.f32 %v978, %v1066
      %1068 = vmatmul.bf16.gmra.mxu0 %v705
      %v1069 = vpop.f32.mrf.mxu0
      %v1070 = vadd.f32 %v981, %v1069
      %v1071 = vpop.f32.mrf.mxu0
      %v1072 = vadd.f32 %v983, %v1071
      %1073 = vmatmul.bf16.gmra.mxu0 %v708
      %v1074 = vpop.f32.mrf.mxu0
      %v1075 = vadd.f32 %v986, %v1074
      %v1076 = vpop.f32.mrf.mxu0
      %v1077 = vadd.f32 %v988, %v1076
      %1078 = vmatmul.bf16.gmra.mxu0 %v711
      %v1079 = vpop.f32.mrf.mxu0
      %v1080 = vadd.f32 %v991, %v1079
      %v1081 = vpop.f32.mrf.mxu0
      %v1082 = vadd.f32 %v993, %v1081
      %1083 = vdwg.mxu0
      %1084 = vmatpush.bf16.msra.mxu0 %v881
      %1085 = vmatpush.bf16.msra.mxu0 %v880
      %1086 = vmatpush.bf16.msra.mxu0 %v879
      %1087 = vmatpush.bf16.msra.mxu0 %v878
      %1088 = vmatpush.bf16.msra.mxu0 %v877
      %1089 = vmatpush.bf16.msra.mxu0 %v876
      %1090 = vmatpush.bf16.msra.mxu0 %v875
      %1091 = vmatpush.bf16.msra.mxu0 %v874
      %1092 = vmatmul.bf16.gmra.mxu0 %v667
      %v1093 = vpop.f32.mrf.mxu0
      %v1094 = vadd.f32 %v1005, %v1093
      %v1095 = vpop.f32.mrf.mxu0
      %v1096 = vadd.f32 %v1007, %v1095
      %1097 = vmatmul.bf16.gmra.mxu0 %v670
      %v1098 = vpop.f32.mrf.mxu0
      %v1099 = vadd.f32 %v1010, %v1098
      %v1100 = vpop.f32.mrf.mxu0
      %v1101 = vadd.f32 %v1012, %v1100
      %1102 = vmatmul.bf16.gmra.mxu0 %v673
      %v1103 = vpop.f32.mrf.mxu0
      %v1104 = vadd.f32 %v1015, %v1103
      %v1105 = vpop.f32.mrf.mxu0
      %v1106 = vadd.f32 %v1017, %v1105
      %1107 = vmatmul.bf16.gmra.mxu0 %v676
      %v1108 = vpop.f32.mrf.mxu0
      %v1109 = vadd.f32 %v1020, %v1108
      %v1110 = vpop.f32.mrf.mxu0
      %v1111 = vadd.f32 %v1022, %v1110
      %1112 = vmatmul.bf16.gmra.mxu0 %v679
      %v1113 = vpop.f32.mrf.mxu0
      %v1114 = vadd.f32 %v1025, %v1113
      %v1115 = vpop.f32.mrf.mxu0
      %v1116 = vadd.f32 %v1027, %v1115
      %1117 = vmatmul.bf16.gmra.mxu0 %v682
      %v1118 = vpop.f32.mrf.mxu0
      %v1119 = vadd.f32 %v1030, %v1118
      %v1120 = vpop.f32.mrf.mxu0
      %v1121 = vadd.f32 %v1032, %v1120
      %1122 = vmatmul.bf16.gmra.mxu0 %v685
      %v1123 = vpop.f32.mrf.mxu0
      %v1124 = vadd.f32 %v1035, %v1123
      %v1125 = vpop.f32.mrf.mxu0
      %v1126 = vadd.f32 %v1037, %v1125
      %1127 = vmatmul.bf16.gmra.mxu0 %v688
      %v1128 = vpop.f32.mrf.mxu0
      %v1129 = vadd.f32 %v1040, %v1128
      %v1130 = vpop.f32.mrf.mxu0
      %v1131 = vadd.f32 %v1042, %v1130
      %1132 = vmatmul.bf16.gmra.mxu0 %v691
      %v1133 = vpop.f32.mrf.mxu0
      %v1134 = vadd.f32 %v1045, %v1133
      %v1135 = vpop.f32.mrf.mxu0
      %v1136 = vadd.f32 %v1047, %v1135
      %1137 = vmatmul.bf16.gmra.mxu0 %v694
      %v1138 = vpop.f32.mrf.mxu0
      %v1139 = vadd.f32 %v1050, %v1138
      %v1140 = vpop.f32.mrf.mxu0
      %v1141 = vadd.f32 %v1052, %v1140
      %1142 = vmatmul.bf16.gmra.mxu0 %v697
      %v1143 = vpop.f32.mrf.mxu0
      %v1144 = vadd.f32 %v1055, %v1143
      %v1145 = vpop.f32.mrf.mxu0
      %v1146 = vadd.f32 %v1057, %v1145
      %1147 = vmatmul.bf16.gmra.mxu0 %v700
      %v1148 = vpop.f32.mrf.mxu0
      %v1149 = vadd.f32 %v1060, %v1148
      %v1150 = vpop.f32.mrf.mxu0
      %v1151 = vadd.f32 %v1062, %v1150
      %1152 = vmatmul.bf16.gmra.mxu0 %v703
      %v1153 = vpop.f32.mrf.mxu0
      %v1154 = vadd.f32 %v1065, %v1153
      %v1155 = vpop.f32.mrf.mxu0
      %v1156 = vadd.f32 %v1067, %v1155
      %1157 = vmatmul.bf16.gmra.mxu0 %v706
      %v1158 = vpop.f32.mrf.mxu0
      %v1159 = vadd.f32 %v1070, %v1158
      %v1160 = vpop.f32.mrf.mxu0
      %v1161 = vadd.f32 %v1072, %v1160
      %1162 = vmatmul.bf16.gmra.mxu0 %v709
      %v1163 = vpop.f32.mrf.mxu0
      %v1164 = vadd.f32 %v1075, %v1163
      %v1165 = vpop.f32.mrf.mxu0
      %v1166 = vadd.f32 %v1077, %v1165
      %1167 = vmatmul.bf16.gmra.mxu0 %v712
      %v1168 = vpop.f32.mrf.mxu0
      %v1169 = vadd.f32 %v1080, %v1168
      %v1170 = vpop.f32.mrf.mxu0
      %v1171 = vadd.f32 %v1082, %v1170
      %1172 = vdwg.mxu0
      %v1221 = vunpack.c.l.b16 %v521
      %v1222 = vunpack.c.l.b16 %v522
      %v1223 = vunpack.c.l.b16 %v523
      %v1224 = vunpack.c.l.b16 %v524
      %v1225 = vunpack.c.l.b16 %v525
      %v1226 = vunpack.c.l.b16 %v526
      %v1227 = vunpack.c.l.b16 %v527
      %v1228 = vunpack.c.l.b16 %v528
      %v1229 = vunpack.c.l.b16 %v529
      %v1230 = vunpack.c.l.b16 %v530
      %v1231 = vunpack.c.l.b16 %v531
      %v1232 = vunpack.c.l.b16 %v532
      %v1233 = vunpack.c.l.b16 %v533
      %v1234 = vunpack.c.l.b16 %v534
      %v1235 = vunpack.c.l.b16 %v535
      %v1236 = vunpack.c.l.b16 %v536
      %v1237 = vunpack.c.l.b16 %v537
      %v1238 = vunpack.c.l.b16 %v538
      %v1239 = vunpack.c.l.b16 %v539
      %v1240 = vunpack.c.l.b16 %v540
      %v1241 = vunpack.c.l.b16 %v541
      %v1242 = vunpack.c.l.b16 %v542
      %v1243 = vunpack.c.l.b16 %v543
      %v1244 = vunpack.c.l.b16 %v544
      %v1245 = vunpack.c.l.b16 %v545
      %v1246 = vunpack.c.l.b16 %v546
      %v1247 = vunpack.c.l.b16 %v547
      %v1248 = vunpack.c.l.b16 %v548
      %v1249 = vunpack.c.l.b16 %v549
      %v1250 = vunpack.c.l.b16 %v550
      %v1251 = vunpack.c.l.b16 %v551
      %v1252 = vunpack.c.l.b16 %v552
      %v1253 = vunpack.c.l.b16 %v553
      %v1254 = vunpack.c.l.b16 %v554
      %v1255 = vunpack.c.l.b16 %v555
      %v1256 = vunpack.c.l.b16 %v556
      %v1257 = vunpack.c.l.b16 %v557
      %v1258 = vunpack.c.l.b16 %v558
      %v1259 = vunpack.c.l.b16 %v559
      %v1260 = vunpack.c.l.b16 %v560
      %v1261 = vunpack.c.l.b16 %v561
      %v1262 = vunpack.c.l.b16 %v562
      %v1263 = vunpack.c.l.b16 %v563
      %v1264 = vunpack.c.l.b16 %v564
      %v1265 = vunpack.c.l.b16 %v565
      %v1266 = vunpack.c.l.b16 %v566
      %v1267 = vunpack.c.l.b16 %v567
      %v1268 = vunpack.c.l.b16 %v568
      %v1269 = vpack.c.b16 %v1222, %v1221
      %v1270 = vpack.c.b16 %v1224, %v1223
      %v1271 = vpack.c.b16 %v1226, %v1225
      %v1272 = vpack.c.b16 %v1228, %v1227
      %v1273 = vpack.c.b16 %v1230, %v1229
      %v1274 = vpack.c.b16 %v1232, %v1231
      %v1275 = vpack.c.b16 %v1234, %v1233
      %v1276 = vpack.c.b16 %v1236, %v1235
      %v1277 = vpack.c.b16 %v1238, %v1237
      %v1278 = vpack.c.b16 %v1240, %v1239
      %v1279 = vpack.c.b16 %v1242, %v1241
      %v1280 = vpack.c.b16 %v1244, %v1243
      %v1281 = vpack.c.b16 %v1246, %v1245
      %v1282 = vpack.c.b16 %v1248, %v1247
      %v1283 = vpack.c.b16 %v1250, %v1249
      %v1284 = vpack.c.b16 %v1252, %v1251
      %v1285 = vpack.c.b16 %v1254, %v1253
      %v1286 = vpack.c.b16 %v1256, %v1255
      %v1287 = vpack.c.b16 %v1258, %v1257
      %v1288 = vpack.c.b16 %v1260, %v1259
      %v1289 = vpack.c.b16 %v1262, %v1261
      %v1290 = vpack.c.b16 %v1264, %v1263
      %v1291 = vpack.c.b16 %v1266, %v1265
      %v1292 = vpack.c.b16 %v1268, %v1267
      %1317 = vmatpush.bf16.msra.mxu0 %v1276
      %1318 = vmatpush.bf16.msra.mxu0 %v1275
      %1319 = vmatpush.bf16.msra.mxu0 %v1274
      %1320 = vmatpush.bf16.msra.mxu0 %v1273
      %1321 = vmatpush.bf16.msra.mxu0 %v1272
      %1322 = vmatpush.bf16.msra.mxu0 %v1271
      %1323 = vmatpush.bf16.msra.mxu0 %v1270
      %1324 = vmatpush.bf16.msra.mxu0 %v1269
      %1325 = vmatmul.bf16.gmra.mxu0 %v473
      %v1326 = vpop.f32.mrf.mxu0
      %v1327 = vadd.f32 %v1094, %v1326
      %v1328 = vpop.f32.mrf.mxu0
      %v1329 = vadd.f32 %v1096, %v1328
      %1330 = vmatmul.bf16.gmra.mxu0 %v476
      %v1331 = vpop.f32.mrf.mxu0
      %v1332 = vadd.f32 %v1099, %v1331
      %v1333 = vpop.f32.mrf.mxu0
      %v1334 = vadd.f32 %v1101, %v1333
      %1335 = vmatmul.bf16.gmra.mxu0 %v479
      %v1336 = vpop.f32.mrf.mxu0
      %v1337 = vadd.f32 %v1104, %v1336
      %v1338 = vpop.f32.mrf.mxu0
      %v1339 = vadd.f32 %v1106, %v1338
      %1340 = vmatmul.bf16.gmra.mxu0 %v482
      %v1341 = vpop.f32.mrf.mxu0
      %v1342 = vadd.f32 %v1109, %v1341
      %v1343 = vpop.f32.mrf.mxu0
      %v1344 = vadd.f32 %v1111, %v1343
      %1345 = vmatmul.bf16.gmra.mxu0 %v485
      %v1346 = vpop.f32.mrf.mxu0
      %v1347 = vadd.f32 %v1114, %v1346
      %v1348 = vpop.f32.mrf.mxu0
      %v1349 = vadd.f32 %v1116, %v1348
      %1350 = vmatmul.bf16.gmra.mxu0 %v488
      %v1351 = vpop.f32.mrf.mxu0
      %v1352 = vadd.f32 %v1119, %v1351
      %v1353 = vpop.f32.mrf.mxu0
      %v1354 = vadd.f32 %v1121, %v1353
      %1355 = vmatmul.bf16.gmra.mxu0 %v491
      %v1356 = vpop.f32.mrf.mxu0
      %v1357 = vadd.f32 %v1124, %v1356
      %v1358 = vpop.f32.mrf.mxu0
      %v1359 = vadd.f32 %v1126, %v1358
      %1360 = vmatmul.bf16.gmra.mxu0 %v494
      %v1361 = vpop.f32.mrf.mxu0
      %v1362 = vadd.f32 %v1129, %v1361
      %v1363 = vpop.f32.mrf.mxu0
      %v1364 = vadd.f32 %v1131, %v1363
      %1365 = vmatmul.bf16.gmra.mxu0 %v497
      %v1366 = vpop.f32.mrf.mxu0
      %v1367 = vadd.f32 %v1134, %v1366
      %v1368 = vpop.f32.mrf.mxu0
      %v1369 = vadd.f32 %v1136, %v1368
      %1370 = vmatmul.bf16.gmra.mxu0 %v500
      %v1371 = vpop.f32.mrf.mxu0
      %v1372 = vadd.f32 %v1139, %v1371
      %v1373 = vpop.f32.mrf.mxu0
      %v1374 = vadd.f32 %v1141, %v1373
      %1375 = vmatmul.bf16.gmra.mxu0 %v503
      %v1376 = vpop.f32.mrf.mxu0
      %v1377 = vadd.f32 %v1144, %v1376
      %v1378 = vpop.f32.mrf.mxu0
      %v1379 = vadd.f32 %v1146, %v1378
      %1380 = vmatmul.bf16.gmra.mxu0 %v506
      %v1381 = vpop.f32.mrf.mxu0
      %v1382 = vadd.f32 %v1149, %v1381
      %v1383 = vpop.f32.mrf.mxu0
      %v1384 = vadd.f32 %v1151, %v1383
      %1385 = vmatmul.bf16.gmra.mxu0 %v509
      %v1386 = vpop.f32.mrf.mxu0
      %v1387 = vadd.f32 %v1154, %v1386
      %v1388 = vpop.f32.mrf.mxu0
      %v1389 = vadd.f32 %v1156, %v1388
      %1390 = vmatmul.bf16.gmra.mxu0 %v512
      %v1391 = vpop.f32.mrf.mxu0
      %v1392 = vadd.f32 %v1159, %v1391
      %v1393 = vpop.f32.mrf.mxu0
      %v1394 = vadd.f32 %v1161, %v1393
      %1395 = vmatmul.bf16.gmra.mxu0 %v515
      %v1396 = vpop.f32.mrf.mxu0
      %v1397 = vadd.f32 %v1164, %v1396
      %v1398 = vpop.f32.mrf.mxu0
      %v1399 = vadd.f32 %v1166, %v1398
      %1400 = vmatmul.bf16.gmra.mxu0 %v518
      %v1401 = vpop.f32.mrf.mxu0
      %v1402 = vadd.f32 %v1169, %v1401
      %v1403 = vpop.f32.mrf.mxu0
      %v1404 = vadd.f32 %v1171, %v1403
      %1405 = vdwg.mxu0
      %1406 = vmatpush.bf16.msra.mxu0 %v1284
      %1407 = vmatpush.bf16.msra.mxu0 %v1283
      %1408 = vmatpush.bf16.msra.mxu0 %v1282
      %1409 = vmatpush.bf16.msra.mxu0 %v1281
      %1410 = vmatpush.bf16.msra.mxu0 %v1280
      %1411 = vmatpush.bf16.msra.mxu0 %v1279
      %1412 = vmatpush.bf16.msra.mxu0 %v1278
      %1413 = vmatpush.bf16.msra.mxu0 %v1277
      %1414 = vmatmul.bf16.gmra.mxu0 %v474
      %v1415 = vpop.f32.mrf.mxu0
      %v1416 = vadd.f32 %v1327, %v1415
      %v1417 = vpop.f32.mrf.mxu0
      %v1418 = vadd.f32 %v1329, %v1417
      %1419 = vmatmul.bf16.gmra.mxu0 %v477
      %v1420 = vpop.f32.mrf.mxu0
      %v1421 = vadd.f32 %v1332, %v1420
      %v1422 = vpop.f32.mrf.mxu0
      %v1423 = vadd.f32 %v1334, %v1422
      %1424 = vmatmul.bf16.gmra.mxu0 %v480
      %v1425 = vpop.f32.mrf.mxu0
      %v1426 = vadd.f32 %v1337, %v1425
      %v1427 = vpop.f32.mrf.mxu0
      %v1428 = vadd.f32 %v1339, %v1427
      %1429 = vmatmul.bf16.gmra.mxu0 %v483
      %v1430 = vpop.f32.mrf.mxu0
      %v1431 = vadd.f32 %v1342, %v1430
      %v1432 = vpop.f32.mrf.mxu0
      %v1433 = vadd.f32 %v1344, %v1432
      %1434 = vmatmul.bf16.gmra.mxu0 %v486
      %v1435 = vpop.f32.mrf.mxu0
      %v1436 = vadd.f32 %v1347, %v1435
      %v1437 = vpop.f32.mrf.mxu0
      %v1438 = vadd.f32 %v1349, %v1437
      %1439 = vmatmul.bf16.gmra.mxu0 %v489
      %v1440 = vpop.f32.mrf.mxu0
      %v1441 = vadd.f32 %v1352, %v1440
      %v1442 = vpop.f32.mrf.mxu0
      %v1443 = vadd.f32 %v1354, %v1442
      %1444 = vmatmul.bf16.gmra.mxu0 %v492
      %v1445 = vpop.f32.mrf.mxu0
      %v1446 = vadd.f32 %v1357, %v1445
      %v1447 = vpop.f32.mrf.mxu0
      %v1448 = vadd.f32 %v1359, %v1447
      %1449 = vmatmul.bf16.gmra.mxu0 %v495
      %v1450 = vpop.f32.mrf.mxu0
      %v1451 = vadd.f32 %v1362, %v1450
      %v1452 = vpop.f32.mrf.mxu0
      %v1453 = vadd.f32 %v1364, %v1452
      %1454 = vmatmul.bf16.gmra.mxu0 %v498
      %v1455 = vpop.f32.mrf.mxu0
      %v1456 = vadd.f32 %v1367, %v1455
      %v1457 = vpop.f32.mrf.mxu0
      %v1458 = vadd.f32 %v1369, %v1457
      %1459 = vmatmul.bf16.gmra.mxu0 %v501
      %v1460 = vpop.f32.mrf.mxu0
      %v1461 = vadd.f32 %v1372, %v1460
      %v1462 = vpop.f32.mrf.mxu0
      %v1463 = vadd.f32 %v1374, %v1462
      %1464 = vmatmul.bf16.gmra.mxu0 %v504
      %v1465 = vpop.f32.mrf.mxu0
      %v1466 = vadd.f32 %v1377, %v1465
      %v1467 = vpop.f32.mrf.mxu0
      %v1468 = vadd.f32 %v1379, %v1467
      %1469 = vmatmul.bf16.gmra.mxu0 %v507
      %v1470 = vpop.f32.mrf.mxu0
      %v1471 = vadd.f32 %v1382, %v1470
      %v1472 = vpop.f32.mrf.mxu0
      %v1473 = vadd.f32 %v1384, %v1472
      %1474 = vmatmul.bf16.gmra.mxu0 %v510
      %v1475 = vpop.f32.mrf.mxu0
      %v1476 = vadd.f32 %v1387, %v1475
      %v1477 = vpop.f32.mrf.mxu0
      %v1478 = vadd.f32 %v1389, %v1477
      %1479 = vmatmul.bf16.gmra.mxu0 %v513
      %v1480 = vpop.f32.mrf.mxu0
      %v1481 = vadd.f32 %v1392, %v1480
      %v1482 = vpop.f32.mrf.mxu0
      %v1483 = vadd.f32 %v1394, %v1482
      %1484 = vmatmul.bf16.gmra.mxu0 %v516
      %v1485 = vpop.f32.mrf.mxu0
      %v1486 = vadd.f32 %v1397, %v1485
      %v1487 = vpop.f32.mrf.mxu0
      %v1488 = vadd.f32 %v1399, %v1487
      %1489 = vmatmul.bf16.gmra.mxu0 %v519
      %v1490 = vpop.f32.mrf.mxu0
      %v1491 = vadd.f32 %v1402, %v1490
      %v1492 = vpop.f32.mrf.mxu0
      %v1493 = vadd.f32 %v1404, %v1492
      %1494 = vdwg.mxu0
      %1495 = vmatpush.bf16.msra.mxu0 %v1292
      %1496 = vmatpush.bf16.msra.mxu0 %v1291
      %1497 = vmatpush.bf16.msra.mxu0 %v1290
      %1498 = vmatpush.bf16.msra.mxu0 %v1289
      %1499 = vmatpush.bf16.msra.mxu0 %v1288
      %1500 = vmatpush.bf16.msra.mxu0 %v1287
      %1501 = vmatpush.bf16.msra.mxu0 %v1286
      %1502 = vmatpush.bf16.msra.mxu0 %v1285
      %1503 = vmatmul.bf16.gmra.mxu0 %v475
      %v1504 = vpop.f32.mrf.mxu0
      %v1505 = vadd.f32 %v1416, %v1504
      %v1506 = vpop.f32.mrf.mxu0
      %v1507 = vadd.f32 %v1418, %v1506
      %1508 = vmatmul.bf16.gmra.mxu0 %v478
      %v1509 = vpop.f32.mrf.mxu0
      %v1510 = vadd.f32 %v1421, %v1509
      %v1511 = vpop.f32.mrf.mxu0
      %v1512 = vadd.f32 %v1423, %v1511
      %1513 = vmatmul.bf16.gmra.mxu0 %v481
      %v1514 = vpop.f32.mrf.mxu0
      %v1515 = vadd.f32 %v1426, %v1514
      %v1516 = vpop.f32.mrf.mxu0
      %v1517 = vadd.f32 %v1428, %v1516
      %1518 = vmatmul.bf16.gmra.mxu0 %v484
      %v1519 = vpop.f32.mrf.mxu0
      %v1520 = vadd.f32 %v1431, %v1519
      %v1521 = vpop.f32.mrf.mxu0
      %v1522 = vadd.f32 %v1433, %v1521
      %1523 = vmatmul.bf16.gmra.mxu0 %v487
      %v1524 = vpop.f32.mrf.mxu0
      %v1525 = vadd.f32 %v1436, %v1524
      %v1526 = vpop.f32.mrf.mxu0
      %v1527 = vadd.f32 %v1438, %v1526
      %1528 = vmatmul.bf16.gmra.mxu0 %v490
      %v1529 = vpop.f32.mrf.mxu0
      %v1530 = vadd.f32 %v1441, %v1529
      %v1531 = vpop.f32.mrf.mxu0
      %v1532 = vadd.f32 %v1443, %v1531
      %1533 = vmatmul.bf16.gmra.mxu0 %v493
      %v1534 = vpop.f32.mrf.mxu0
      %v1535 = vadd.f32 %v1446, %v1534
      %v1536 = vpop.f32.mrf.mxu0
      %v1537 = vadd.f32 %v1448, %v1536
      %1538 = vmatmul.bf16.gmra.mxu0 %v496
      %v1539 = vpop.f32.mrf.mxu0
      %v1540 = vadd.f32 %v1451, %v1539
      %v1541 = vpop.f32.mrf.mxu0
      %v1542 = vadd.f32 %v1453, %v1541
      %1543 = vmatmul.bf16.gmra.mxu0 %v499
      %v1544 = vpop.f32.mrf.mxu0
      %v1545 = vadd.f32 %v1456, %v1544
      %v1546 = vpop.f32.mrf.mxu0
      %v1547 = vadd.f32 %v1458, %v1546
      %1548 = vmatmul.bf16.gmra.mxu0 %v502
      %v1549 = vpop.f32.mrf.mxu0
      %v1550 = vadd.f32 %v1461, %v1549
      %v1551 = vpop.f32.mrf.mxu0
      %v1552 = vadd.f32 %v1463, %v1551
      %1553 = vmatmul.bf16.gmra.mxu0 %v505
      %v1554 = vpop.f32.mrf.mxu0
      %v1555 = vadd.f32 %v1466, %v1554
      %v1556 = vpop.f32.mrf.mxu0
      %v1557 = vadd.f32 %v1468, %v1556
      %1558 = vmatmul.bf16.gmra.mxu0 %v508
      %v1559 = vpop.f32.mrf.mxu0
      %v1560 = vadd.f32 %v1471, %v1559
      %v1561 = vpop.f32.mrf.mxu0
      %v1562 = vadd.f32 %v1473, %v1561
      %1563 = vmatmul.bf16.gmra.mxu0 %v511
      %v1564 = vpop.f32.mrf.mxu0
      %v1565 = vadd.f32 %v1476, %v1564
      %v1566 = vpop.f32.mrf.mxu0
      %v1567 = vadd.f32 %v1478, %v1566
      %1568 = vmatmul.bf16.gmra.mxu0 %v514
      %v1569 = vpop.f32.mrf.mxu0
      %v1570 = vadd.f32 %v1481, %v1569
      %v1571 = vpop.f32.mrf.mxu0
      %v1572 = vadd.f32 %v1483, %v1571
      %1573 = vmatmul.bf16.gmra.mxu0 %v517
      %v1574 = vpop.f32.mrf.mxu0
      %v1575 = vadd.f32 %v1486, %v1574
      %v1576 = vpop.f32.mrf.mxu0
      %v1577 = vadd.f32 %v1488, %v1576
      %1578 = vmatmul.bf16.gmra.mxu0 %v520
      %v1579 = vpop.f32.mrf.mxu0
      %v1580 = vadd.f32 %v1491, %v1579
      %v1581 = vpop.f32.mrf.mxu0
      %v1582 = vadd.f32 %v1493, %v1581
      %1583 = vdwg.mxu0
      %s1584 = scalar_lea.vmem [#allocation2], 48
      %v1585 = vld [vmem:[%s1584] sm:$0xff]
      %v1586 = vld [vmem:[%s1584 + $0x8] sm:$0xff]
      %v1587 = vld [vmem:[%s1584 + $0x18] sm:$0xff]
      %v1588 = vld [vmem:[%s1584 + $0x20] sm:$0xff]
      %v1589 = vld [vmem:[%s1584 + $0x30] sm:$0xff]
      %v1590 = vld [vmem:[%s1584 + $0x38] sm:$0xff]
      %v1591 = vld [vmem:[%s1584 + $0x48] sm:$0xff]
      %v1592 = vld [vmem:[%s1584 + $0x50] sm:$0xff]
      %v1593 = vld [vmem:[%s1584 + $0x60] sm:$0xff]
      %v1594 = vld [vmem:[%s1584 + $0x68] sm:$0xff]
      %v1595 = vld [vmem:[%s1584 + $0x78] sm:$0xff]
      %v1596 = vld [vmem:[%s1584 + $0x80] sm:$0xff]
      %v1597 = vld [vmem:[%s1584 + $0x90] sm:$0xff]
      %v1598 = vld [vmem:[%s1584 + $0x98] sm:$0xff]
      %v1599 = vld [vmem:[%s1584 + $0xa8] sm:$0xff]
      %v1600 = vld [vmem:[%s1584 + $0xb0] sm:$0xff]
      %v1601 = vld [vmem:[%s1584 + $0xc0] sm:$0xff]
      %v1602 = vld [vmem:[%s1584 + $0xc8] sm:$0xff]
      %v1603 = vld [vmem:[%s1584 + $0xd8] sm:$0xff]
      %v1604 = vld [vmem:[%s1584 + $0xe0] sm:$0xff]
      %v1605 = vld [vmem:[%s1584 + $0xf0] sm:$0xff]
      %v1606 = vld [vmem:[%s1584 + $0xf8] sm:$0xff]
      %v1607 = vld [vmem:[%s1584 + $0x108] sm:$0xff]
      %v1608 = vld [vmem:[%s1584 + $0x110] sm:$0xff]
      %v1609 = vld [vmem:[%s1584 + $0x120] sm:$0xff]
      %v1610 = vld [vmem:[%s1584 + $0x128] sm:$0xff]
      %v1611 = vld [vmem:[%s1584 + $0x138] sm:$0xff]
      %v1612 = vld [vmem:[%s1584 + $0x140] sm:$0xff]
      %v1613 = vld [vmem:[%s1584 + $0x150] sm:$0xff]
      %v1614 = vld [vmem:[%s1584 + $0x158] sm:$0xff]
      %v1615 = vld [vmem:[%s1584 + $0x168] sm:$0xff]
      %v1616 = vld [vmem:[%s1584 + $0x170] sm:$0xff]
      %v1617 = vld [vmem:[%s1584 + $0x1] sm:$0xff]
      %v1618 = vld [vmem:[%s1584 + $0x9] sm:$0xff]
      %v1619 = vld [vmem:[%s1584 + $0x19] sm:$0xff]
      %v1620 = vld [vmem:[%s1584 + $0x21] sm:$0xff]
      %v1621 = vld [vmem:[%s1584 + $0x31] sm:$0xff]
      %v1622 = vld [vmem:[%s1584 + $0x39] sm:$0xff]
      %v1623 = vld [vmem:[%s1584 + $0x49] sm:$0xff]
      %v1624 = vld [vmem:[%s1584 + $0x51] sm:$0xff]
      %v1625 = vld [vmem:[%s1584 + $0x61] sm:$0xff]
      %v1626 = vld [vmem:[%s1584 + $0x69] sm:$0xff]
      %v1627 = vld [vmem:[%s1584 + $0x79] sm:$0xff]
      %v1628 = vld [vmem:[%s1584 + $0x81] sm:$0xff]
      %v1629 = vld [vmem:[%s1584 + $0x91] sm:$0xff]
      %v1630 = vld [vmem:[%s1584 + $0x99] sm:$0xff]
      %v1631 = vld [vmem:[%s1584 + $0xa9] sm:$0xff]
      %v1632 = vld [vmem:[%s1584 + $0xb1] sm:$0xff]
      %v1633 = vld [vmem:[%s1584 + $0xc1] sm:$0xff]
      %v1634 = vld [vmem:[%s1584 + $0xc9] sm:$0xff]
      %v1635 = vld [vmem:[%s1584 + $0xd9] sm:$0xff]
      %v1636 = vld [vmem:[%s1584 + $0xe1] sm:$0xff]
      %v1637 = vld [vmem:[%s1584 + $0xf1] sm:$0xff]
      %v1638 = vld [vmem:[%s1584 + $0xf9] sm:$0xff]
      %v1639 = vld [vmem:[%s1584 + $0x109] sm:$0xff]
      %v1640 = vld [vmem:[%s1584 + $0x111] sm:$0xff]
      %v1641 = vld [vmem:[%s1584 + $0x121] sm:$0xff]
      %v1642 = vld [vmem:[%s1584 + $0x129] sm:$0xff]
      %v1643 = vld [vmem:[%s1584 + $0x139] sm:$0xff]
      %v1644 = vld [vmem:[%s1584 + $0x141] sm:$0xff]
      %v1645 = vld [vmem:[%s1584 + $0x151] sm:$0xff]
      %v1646 = vld [vmem:[%s1584 + $0x159] sm:$0xff]
      %v1647 = vld [vmem:[%s1584 + $0x169] sm:$0xff]
      %v1648 = vld [vmem:[%s1584 + $0x171] sm:$0xff]
      %v1649 = vld [vmem:[%s1584 + $0x2] sm:$0xff]
      %v1650 = vld [vmem:[%s1584 + $0xa] sm:$0xff]
      %v1651 = vld [vmem:[%s1584 + $0x1a] sm:$0xff]
      %v1652 = vld [vmem:[%s1584 + $0x22] sm:$0xff]
      %v1653 = vld [vmem:[%s1584 + $0x32] sm:$0xff]
      %v1654 = vld [vmem:[%s1584 + $0x3a] sm:$0xff]
      %v1655 = vld [vmem:[%s1584 + $0x4a] sm:$0xff]
      %v1656 = vld [vmem:[%s1584 + $0x52] sm:$0xff]
      %v1657 = vld [vmem:[%s1584 + $0x62] sm:$0xff]
      %v1658 = vld [vmem:[%s1584 + $0x6a] sm:$0xff]
      %v1659 = vld [vmem:[%s1584 + $0x7a] sm:$0xff]
      %v1660 = vld [vmem:[%s1584 + $0x82] sm:$0xff]
      %v1661 = vld [vmem:[%s1584 + $0x92] sm:$0xff]
      %v1662 = vld [vmem:[%s1584 + $0x9a] sm:$0xff]
      %v1663 = vld [vmem:[%s1584 + $0xaa] sm:$0xff]
      %v1664 = vld [vmem:[%s1584 + $0xb2] sm:$0xff]
      %v1665 = vld [vmem:[%s1584 + $0xc2] sm:$0xff]
      %v1666 = vld [vmem:[%s1584 + $0xca] sm:$0xff]
      %v1667 = vld [vmem:[%s1584 + $0xda] sm:$0xff]
      %v1668 = vld [vmem:[%s1584 + $0xe2] sm:$0xff]
      %v1669 = vld [vmem:[%s1584 + $0xf2] sm:$0xff]
      %v1670 = vld [vmem:[%s1584 + $0xfa] sm:$0xff]
      %v1671 = vld [vmem:[%s1584 + $0x10a] sm:$0xff]
      %v1672 = vld [vmem:[%s1584 + $0x112] sm:$0xff]
      %v1673 = vld [vmem:[%s1584 + $0x122] sm:$0xff]
      %v1674 = vld [vmem:[%s1584 + $0x12a] sm:$0xff]
      %v1675 = vld [vmem:[%s1584 + $0x13a] sm:$0xff]
      %v1676 = vld [vmem:[%s1584 + $0x142] sm:$0xff]
      %v1677 = vld [vmem:[%s1584 + $0x152] sm:$0xff]
      %v1678 = vld [vmem:[%s1584 + $0x15a] sm:$0xff]
      %v1679 = vld [vmem:[%s1584 + $0x16a] sm:$0xff]
      %v1680 = vld [vmem:[%s1584 + $0x172] sm:$0xff]
      %v1681 = vpack.c.bf16 %v1586, %v1585
      %v1682 = vpack.c.bf16 %v1618, %v1617
      %v1683 = vpack.c.bf16 %v1650, %v1649
      %v1684 = vpack.c.bf16 %v1588, %v1587
      %v1685 = vpack.c.bf16 %v1620, %v1619
      %v1686 = vpack.c.bf16 %v1652, %v1651
      %v1687 = vpack.c.bf16 %v1590, %v1589
      %v1688 = vpack.c.bf16 %v1622, %v1621
      %v1689 = vpack.c.bf16 %v1654, %v1653
      %v1690 = vpack.c.bf16 %v1592, %v1591
      %v1691 = vpack.c.bf16 %v1624, %v1623
      %v1692 = vpack.c.bf16 %v1656, %v1655
      %v1693 = vpack.c.bf16 %v1594, %v1593
      %v1694 = vpack.c.bf16 %v1626, %v1625
      %v1695 = vpack.c.bf16 %v1658, %v1657
      %v1696 = vpack.c.bf16 %v1596, %v1595
      %v1697 = vpack.c.bf16 %v1628, %v1627
      %v1698 = vpack.c.bf16 %v1660, %v1659
      %v1699 = vpack.c.bf16 %v1598, %v1597
      %v1700 = vpack.c.bf16 %v1630, %v1629
      %v1701 = vpack.c.bf16 %v1662, %v1661
      %v1702 = vpack.c.bf16 %v1600, %v1599
      %v1703 = vpack.c.bf16 %v1632, %v1631
      %v1704 = vpack.c.bf16 %v1664, %v1663
      %v1705 = vpack.c.bf16 %v1602, %v1601
      %v1706 = vpack.c.bf16 %v1634, %v1633
      %v1707 = vpack.c.bf16 %v1666, %v1665
      %v1708 = vpack.c.bf16 %v1604, %v1603
      %v1709 = vpack.c.bf16 %v1636, %v1635
      %v1710 = vpack.c.bf16 %v1668, %v1667
      %v1711 = vpack.c.bf16 %v1606, %v1605
      %v1712 = vpack.c.bf16 %v1638, %v1637
      %v1713 = vpack.c.bf16 %v1670, %v1669
      %v1714 = vpack.c.bf16 %v1608, %v1607
      %v1715 = vpack.c.bf16 %v1640, %v1639
      %v1716 = vpack.c.bf16 %v1672, %v1671
      %v1717 = vpack.c.bf16 %v1610, %v1609
      %v1718 = vpack.c.bf16 %v1642, %v1641
      %v1719 = vpack.c.bf16 %v1674, %v1673
      %v1720 = vpack.c.bf16 %v1612, %v1611
      %v1721 = vpack.c.bf16 %v1644, %v1643
      %v1722 = vpack.c.bf16 %v1676, %v1675
      %v1723 = vpack.c.bf16 %v1614, %v1613
      %v1724 = vpack.c.bf16 %v1646, %v1645
      %v1725 = vpack.c.bf16 %v1678, %v1677
      %v1726 = vpack.c.bf16 %v1616, %v1615
      %v1727 = vpack.c.bf16 %v1648, %v1647
      %v1728 = vpack.c.bf16 %v1680, %v1679
      %s1729 = scalar_lea.vmem %s1, 384
      %v1730 = vld [vmem:[%s1729] sm:$0xf]
      %v1731 = vld [vmem:[%s1729 + $0x4] sm:$0xf]
      %v1732 = vld [vmem:[%s1729 + $0x8] sm:$0xf]
      %v1733 = vld [vmem:[%s1729 + $0xc] sm:$0xf]
      %v1734 = vld [vmem:[%s1729 + $0x10] sm:$0xf]
      %v1735 = vld [vmem:[%s1729 + $0x14] sm:$0xf]
      %v1736 = vld [vmem:[%s1729 + $0x18] sm:$0xf]
      %v1737 = vld [vmem:[%s1729 + $0x1c] sm:$0xf]
      %v1738 = vld [vmem:[%s1729 + $0x20] sm:$0xf]
      %v1739 = vld [vmem:[%s1729 + $0x24] sm:$0xf]
      %v1740 = vld [vmem:[%s1729 + $0x28] sm:$0xf]
      %v1741 = vld [vmem:[%s1729 + $0x2c] sm:$0xf]
      %v1742 = vld [vmem:[%s1729 + $0x30] sm:$0xf]
      %v1743 = vld [vmem:[%s1729 + $0x34] sm:$0xf]
      %v1744 = vld [vmem:[%s1729 + $0x38] sm:$0xf]
      %v1745 = vld [vmem:[%s1729 + $0x3c] sm:$0xf]
      %v1746 = vld [vmem:[%s1729 + $0x40] sm:$0xf]
      %v1747 = vld [vmem:[%s1729 + $0x44] sm:$0xf]
      %v1748 = vld [vmem:[%s1729 + $0x48] sm:$0xf]
      %v1749 = vld [vmem:[%s1729 + $0x4c] sm:$0xf]
      %v1750 = vld [vmem:[%s1729 + $0x50] sm:$0xf]
      %v1751 = vld [vmem:[%s1729 + $0x54] sm:$0xf]
      %v1752 = vld [vmem:[%s1729 + $0x58] sm:$0xf]
      %v1753 = vld [vmem:[%s1729 + $0x5c] sm:$0xf]
      %v1754 = vld [vmem:[%s1729 + $0x60] sm:$0xf]
      %v1755 = vld [vmem:[%s1729 + $0x64] sm:$0xf]
      %v1756 = vld [vmem:[%s1729 + $0x68] sm:$0xf]
      %v1757 = vld [vmem:[%s1729 + $0x6c] sm:$0xf]
      %v1758 = vld [vmem:[%s1729 + $0x70] sm:$0xf]
      %v1759 = vld [vmem:[%s1729 + $0x74] sm:$0xf]
      %v1760 = vld [vmem:[%s1729 + $0x78] sm:$0xf]
      %v1761 = vld [vmem:[%s1729 + $0x7c] sm:$0xf]
      %v1762 = vld [vmem:[%s1729 + $0x80] sm:$0xf]
      %v1763 = vld [vmem:[%s1729 + $0x84] sm:$0xf]
      %v1764 = vld [vmem:[%s1729 + $0x88] sm:$0xf]
      %v1765 = vld [vmem:[%s1729 + $0x8c] sm:$0xf]
      %v1766 = vld [vmem:[%s1729 + $0x90] sm:$0xf]
      %v1767 = vld [vmem:[%s1729 + $0x94] sm:$0xf]
      %v1768 = vld [vmem:[%s1729 + $0x98] sm:$0xf]
      %v1769 = vld [vmem:[%s1729 + $0x9c] sm:$0xf]
      %v1770 = vld [vmem:[%s1729 + $0xa0] sm:$0xf]
      %v1771 = vld [vmem:[%s1729 + $0xa4] sm:$0xf]
      %v1772 = vld [vmem:[%s1729 + $0xa8] sm:$0xf]
      %v1773 = vld [vmem:[%s1729 + $0xac] sm:$0xf]
      %v1774 = vld [vmem:[%s1729 + $0xb0] sm:$0xf]
      %v1775 = vld [vmem:[%s1729 + $0xb4] sm:$0xf]
      %v1776 = vld [vmem:[%s1729 + $0xb8] sm:$0xf]
      %v1777 = vld [vmem:[%s1729 + $0xbc] sm:$0xf]
      %v1826 = vunpack.c.l.b16 %v1730
      %v1827 = vunpack.c.l.b16 %v1731
      %v1828 = vunpack.c.l.b16 %v1732
      %v1829 = vunpack.c.l.b16 %v1733
      %v1830 = vunpack.c.l.b16 %v1734
      %v1831 = vunpack.c.l.b16 %v1735
      %v1832 = vunpack.c.l.b16 %v1736
      %v1833 = vunpack.c.l.b16 %v1737
      %v1834 = vunpack.c.l.b16 %v1738
      %v1835 = vunpack.c.l.b16 %v1739
      %v1836 = vunpack.c.l.b16 %v1740
      %v1837 = vunpack.c.l.b16 %v1741
      %v1838 = vunpack.c.l.b16 %v1742
      %v1839 = vunpack.c.l.b16 %v1743
      %v1840 = vunpack.c.l.b16 %v1744
      %v1841 = vunpack.c.l.b16 %v1745
      %v1842 = vunpack.c.l.b16 %v1746
      %v1843 = vunpack.c.l.b16 %v1747
      %v1844 = vunpack.c.l.b16 %v1748
      %v1845 = vunpack.c.l.b16 %v1749
      %v1846 = vunpack.c.l.b16 %v1750
      %v1847 = vunpack.c.l.b16 %v1751
      %v1848 = vunpack.c.l.b16 %v1752
      %v1849 = vunpack.c.l.b16 %v1753
      %v1850 = vunpack.c.l.b16 %v1754
      %v1851 = vunpack.c.l.b16 %v1755
      %v1852 = vunpack.c.l.b16 %v1756
      %v1853 = vunpack.c.l.b16 %v1757
      %v1854 = vunpack.c.l.b16 %v1758
      %v1855 = vunpack.c.l.b16 %v1759
      %v1856 = vunpack.c.l.b16 %v1760
      %v1857 = vunpack.c.l.b16 %v1761
      %v1858 = vunpack.c.l.b16 %v1762
      %v1859 = vunpack.c.l.b16 %v1763
      %v1860 = vunpack.c.l.b16 %v1764
      %v1861 = vunpack.c.l.b16 %v1765
      %v1862 = vunpack.c.l.b16 %v1766
      %v1863 = vunpack.c.l.b16 %v1767
      %v1864 = vunpack.c.l.b16 %v1768
      %v1865 = vunpack.c.l.b16 %v1769
      %v1866 = vunpack.c.l.b16 %v1770
      %v1867 = vunpack.c.l.b16 %v1771
      %v1868 = vunpack.c.l.b16 %v1772
      %v1869 = vunpack.c.l.b16 %v1773
      %v1870 = vunpack.c.l.b16 %v1774
      %v1871 = vunpack.c.l.b16 %v1775
      %v1872 = vunpack.c.l.b16 %v1776
      %v1873 = vunpack.c.l.b16 %v1777
      %v1874 = vpack.c.b16 %v1827, %v1826
      %v1875 = vpack.c.b16 %v1829, %v1828
      %v1876 = vpack.c.b16 %v1831, %v1830
      %v1877 = vpack.c.b16 %v1833, %v1832
      %v1878 = vpack.c.b16 %v1835, %v1834
      %v1879 = vpack.c.b16 %v1837, %v1836
      %v1880 = vpack.c.b16 %v1839, %v1838
      %v1881 = vpack.c.b16 %v1841, %v1840
      %v1882 = vpack.c.b16 %v1843, %v1842
      %v1883 = vpack.c.b16 %v1845, %v1844
      %v1884 = vpack.c.b16 %v1847, %v1846
      %v1885 = vpack.c.b16 %v1849, %v1848
      %v1886 = vpack.c.b16 %v1851, %v1850
      %v1887 = vpack.c.b16 %v1853, %v1852
      %v1888 = vpack.c.b16 %v1855, %v1854
      %v1889 = vpack.c.b16 %v1857, %v1856
      %v1890 = vpack.c.b16 %v1859, %v1858
      %v1891 = vpack.c.b16 %v1861, %v1860
      %v1892 = vpack.c.b16 %v1863, %v1862
      %v1893 = vpack.c.b16 %v1865, %v1864
      %v1894 = vpack.c.b16 %v1867, %v1866
      %v1895 = vpack.c.b16 %v1869, %v1868
      %v1896 = vpack.c.b16 %v1871, %v1870
      %v1897 = vpack.c.b16 %v1873, %v1872
      %1922 = vmatpush.bf16.msra.mxu0 %v1881
      %1923 = vmatpush.bf16.msra.mxu0 %v1880
      %1924 = vmatpush.bf16.msra.mxu0 %v1879
      %1925 = vmatpush.bf16.msra.mxu0 %v1878
      %1926 = vmatpush.bf16.msra.mxu0 %v1877
      %1927 = vmatpush.bf16.msra.mxu0 %v1876
      %1928 = vmatpush.bf16.msra.mxu0 %v1875
      %1929 = vmatpush.bf16.msra.mxu0 %v1874
      %1930 = vmatmul.bf16.gmra.mxu0 %v1681
      %v1931 = vpop.f32.mrf.mxu0
      %v1932 = vadd.f32 0.0, %v1931
      %v1933 = vpop.f32.mrf.mxu0
      %v1934 = vadd.f32 0.0, %v1933
      %1935 = vmatmul.bf16.gmra.mxu0 %v1684
      %v1936 = vpop.f32.mrf.mxu0
      %v1937 = vadd.f32 0.0, %v1936
      %v1938 = vpop.f32.mrf.mxu0
      %v1939 = vadd.f32 0.0, %v1938
      %1940 = vmatmul.bf16.gmra.mxu0 %v1687
      %v1941 = vpop.f32.mrf.mxu0
      %v1942 = vadd.f32 0.0, %v1941
      %v1943 = vpop.f32.mrf.mxu0
      %v1944 = vadd.f32 0.0, %v1943
      %1945 = vmatmul.bf16.gmra.mxu0 %v1690
      %v1946 = vpop.f32.mrf.mxu0
      %v1947 = vadd.f32 0.0, %v1946
      %v1948 = vpop.f32.mrf.mxu0
      %v1949 = vadd.f32 0.0, %v1948
      %1950 = vmatmul.bf16.gmra.mxu0 %v1693
      %v1951 = vpop.f32.mrf.mxu0
      %v1952 = vadd.f32 0.0, %v1951
      %v1953 = vpop.f32.mrf.mxu0
      %v1954 = vadd.f32 0.0, %v1953
      %1955 = vmatmul.bf16.gmra.mxu0 %v1696
      %v1956 = vpop.f32.mrf.mxu0
      %v1957 = vadd.f32 0.0, %v1956
      %v1958 = vpop.f32.mrf.mxu0
      %v1959 = vadd.f32 0.0, %v1958
      %1960 = vmatmul.bf16.gmra.mxu0 %v1699
      %v1961 = vpop.f32.mrf.mxu0
      %v1962 = vadd.f32 0.0, %v1961
      %v1963 = vpop.f32.mrf.mxu0
      %v1964 = vadd.f32 0.0, %v1963
      %1965 = vmatmul.bf16.gmra.mxu0 %v1702
      %v1966 = vpop.f32.mrf.mxu0
      %v1967 = vadd.f32 0.0, %v1966
      %v1968 = vpop.f32.mrf.mxu0
      %v1969 = vadd.f32 0.0, %v1968
      %1970 = vmatmul.bf16.gmra.mxu0 %v1705
      %v1971 = vpop.f32.mrf.mxu0
      %v1972 = vadd.f32 0.0, %v1971
      %v1973 = vpop.f32.mrf.mxu0
      %v1974 = vadd.f32 0.0, %v1973
      %1975 = vmatmul.bf16.gmra.mxu0 %v1708
      %v1976 = vpop.f32.mrf.mxu0
      %v1977 = vadd.f32 0.0, %v1976
      %v1978 = vpop.f32.mrf.mxu0
      %v1979 = vadd.f32 0.0, %v1978
      %1980 = vmatmul.bf16.gmra.mxu0 %v1711
      %v1981 = vpop.f32.mrf.mxu0
      %v1982 = vadd.f32 0.0, %v1981
      %v1983 = vpop.f32.mrf.mxu0
      %v1984 = vadd.f32 0.0, %v1983
      %1985 = vmatmul.bf16.gmra.mxu0 %v1714
      %v1986 = vpop.f32.mrf.mxu0
      %v1987 = vadd.f32 0.0, %v1986
      %v1988 = vpop.f32.mrf.mxu0
      %v1989 = vadd.f32 0.0, %v1988
      %1990 = vmatmul.bf16.gmra.mxu0 %v1717
      %v1991 = vpop.f32.mrf.mxu0
      %v1992 = vadd.f32 0.0, %v1991
      %v1993 = vpop.f32.mrf.mxu0
      %v1994 = vadd.f32 0.0, %v1993
      %1995 = vmatmul.bf16.gmra.mxu0 %v1720
      %v1996 = vpop.f32.mrf.mxu0
      %v1997 = vadd.f32 0.0, %v1996
      %v1998 = vpop.f32.mrf.mxu0
      %v1999 = vadd.f32 0.0, %v1998
      %2000 = vmatmul.bf16.gmra.mxu0 %v1723
      %v2001 = vpop.f32.mrf.mxu0
      %v2002 = vadd.f32 0.0, %v2001
      %v2003 = vpop.f32.mrf.mxu0
      %v2004 = vadd.f32 0.0, %v2003
      %2005 = vmatmul.bf16.gmra.mxu0 %v1726
      %v2006 = vpop.f32.mrf.mxu0
      %v2007 = vadd.f32 0.0, %v2006
      %v2008 = vpop.f32.mrf.mxu0
      %v2009 = vadd.f32 0.0, %v2008
      %2010 = vdwg.mxu0
      %2011 = vmatpush.bf16.msra.mxu0 %v1889
      %2012 = vmatpush.bf16.msra.mxu0 %v1888
      %2013 = vmatpush.bf16.msra.mxu0 %v1887
      %2014 = vmatpush.bf16.msra.mxu0 %v1886
      %2015 = vmatpush.bf16.msra.mxu0 %v1885
      %2016 = vmatpush.bf16.msra.mxu0 %v1884
      %2017 = vmatpush.bf16.msra.mxu0 %v1883
      %2018 = vmatpush.bf16.msra.mxu0 %v1882
      %2019 = vmatmul.bf16.gmra.mxu0 %v1682
      %v2020 = vpop.f32.mrf.mxu0
      %v2021 = vadd.f32 %v1932, %v2020
      %v2022 = vpop.f32.mrf.mxu0
      %v2023 = vadd.f32 %v1934, %v2022
      %2024 = vmatmul.bf16.gmra.mxu0 %v1685
      %v2025 = vpop.f32.mrf.mxu0
      %v2026 = vadd.f32 %v1937, %v2025
      %v2027 = vpop.f32.mrf.mxu0
      %v2028 = vadd.f32 %v1939, %v2027
      %2029 = vmatmul.bf16.gmra.mxu0 %v1688
      %v2030 = vpop.f32.mrf.mxu0
      %v2031 = vadd.f32 %v1942, %v2030
      %v2032 = vpop.f32.mrf.mxu0
      %v2033 = vadd.f32 %v1944, %v2032
      %2034 = vmatmul.bf16.gmra.mxu0 %v1691
      %v2035 = vpop.f32.mrf.mxu0
      %v2036 = vadd.f32 %v1947, %v2035
      %v2037 = vpop.f32.mrf.mxu0
      %v2038 = vadd.f32 %v1949, %v2037
      %2039 = vmatmul.bf16.gmra.mxu0 %v1694
      %v2040 = vpop.f32.mrf.mxu0
      %v2041 = vadd.f32 %v1952, %v2040
      %v2042 = vpop.f32.mrf.mxu0
      %v2043 = vadd.f32 %v1954, %v2042
      %2044 = vmatmul.bf16.gmra.mxu0 %v1697
      %v2045 = vpop.f32.mrf.mxu0
      %v2046 = vadd.f32 %v1957, %v2045
      %v2047 = vpop.f32.mrf.mxu0
      %v2048 = vadd.f32 %v1959, %v2047
      %2049 = vmatmul.bf16.gmra.mxu0 %v1700
      %v2050 = vpop.f32.mrf.mxu0
      %v2051 = vadd.f32 %v1962, %v2050
      %v2052 = vpop.f32.mrf.mxu0
      %v2053 = vadd.f32 %v1964, %v2052
      %2054 = vmatmul.bf16.gmra.mxu0 %v1703
      %v2055 = vpop.f32.mrf.mxu0
      %v2056 = vadd.f32 %v1967, %v2055
      %v2057 = vpop.f32.mrf.mxu0
      %v2058 = vadd.f32 %v1969, %v2057
      %2059 = vmatmul.bf16.gmra.mxu0 %v1706
      %v2060 = vpop.f32.mrf.mxu0
      %v2061 = vadd.f32 %v1972, %v2060
      %v2062 = vpop.f32.mrf.mxu0
      %v2063 = vadd.f32 %v1974, %v2062
      %2064 = vmatmul.bf16.gmra.mxu0 %v1709
      %v2065 = vpop.f32.mrf.mxu0
      %v2066 = vadd.f32 %v1977, %v2065
      %v2067 = vpop.f32.mrf.mxu0
      %v2068 = vadd.f32 %v1979, %v2067
      %2069 = vmatmul.bf16.gmra.mxu0 %v1712
      %v2070 = vpop.f32.mrf.mxu0
      %v2071 = vadd.f32 %v1982, %v2070
      %v2072 = vpop.f32.mrf.mxu0
      %v2073 = vadd.f32 %v1984, %v2072
      %2074 = vmatmul.bf16.gmra.mxu0 %v1715
      %v2075 = vpop.f32.mrf.mxu0
      %v2076 = vadd.f32 %v1987, %v2075
      %v2077 = vpop.f32.mrf.mxu0
      %v2078 = vadd.f32 %v1989, %v2077
      %2079 = vmatmul.bf16.gmra.mxu0 %v1718
      %v2080 = vpop.f32.mrf.mxu0
      %v2081 = vadd.f32 %v1992, %v2080
      %v2082 = vpop.f32.mrf.mxu0
      %v2083 = vadd.f32 %v1994, %v2082
      %2084 = vmatmul.bf16.gmra.mxu0 %v1721
      %v2085 = vpop.f32.mrf.mxu0
      %v2086 = vadd.f32 %v1997, %v2085
      %v2087 = vpop.f32.mrf.mxu0
      %v2088 = vadd.f32 %v1999, %v2087
      %2089 = vmatmul.bf16.gmra.mxu0 %v1724
      %v2090 = vpop.f32.mrf.mxu0
      %v2091 = vadd.f32 %v2002, %v2090
      %v2092 = vpop.f32.mrf.mxu0
      %v2093 = vadd.f32 %v2004, %v2092
      %2094 = vmatmul.bf16.gmra.mxu0 %v1727
      %v2095 = vpop.f32.mrf.mxu0
      %v2096 = vadd.f32 %v2007, %v2095
      %v2097 = vpop.f32.mrf.mxu0
      %v2098 = vadd.f32 %v2009, %v2097
      %2099 = vdwg.mxu0
      %2100 = vmatpush.bf16.msra.mxu0 %v1897
      %2101 = vmatpush.bf16.msra.mxu0 %v1896
      %2102 = vmatpush.bf16.msra.mxu0 %v1895
      %2103 = vmatpush.bf16.msra.mxu0 %v1894
      %2104 = vmatpush.bf16.msra.mxu0 %v1893
      %2105 = vmatpush.bf16.msra.mxu0 %v1892
      %2106 = vmatpush.bf16.msra.mxu0 %v1891
      %2107 = vmatpush.bf16.msra.mxu0 %v1890
      %2108 = vmatmul.bf16.gmra.mxu0 %v1683
      %v2109 = vpop.f32.mrf.mxu0
      %v2110 = vadd.f32 %v2021, %v2109
      %v2111 = vpop.f32.mrf.mxu0
      %v2112 = vadd.f32 %v2023, %v2111
      %2113 = vmatmul.bf16.gmra.mxu0 %v1686
      %v2114 = vpop.f32.mrf.mxu0
      %v2115 = vadd.f32 %v2026, %v2114
      %v2116 = vpop.f32.mrf.mxu0
      %v2117 = vadd.f32 %v2028, %v2116
      %2118 = vmatmul.bf16.gmra.mxu0 %v1689
      %v2119 = vpop.f32.mrf.mxu0
      %v2120 = vadd.f32 %v2031, %v2119
      %v2121 = vpop.f32.mrf.mxu0
      %v2122 = vadd.f32 %v2033, %v2121
      %2123 = vmatmul.bf16.gmra.mxu0 %v1692
      %v2124 = vpop.f32.mrf.mxu0
      %v2125 = vadd.f32 %v2036, %v2124
      %v2126 = vpop.f32.mrf.mxu0
      %v2127 = vadd.f32 %v2038, %v2126
      %2128 = vmatmul.bf16.gmra.mxu0 %v1695
      %v2129 = vpop.f32.mrf.mxu0
      %v2130 = vadd.f32 %v2041, %v2129
      %v2131 = vpop.f32.mrf.mxu0
      %v2132 = vadd.f32 %v2043, %v2131
      %2133 = vmatmul.bf16.gmra.mxu0 %v1698
      %v2134 = vpop.f32.mrf.mxu0
      %v2135 = vadd.f32 %v2046, %v2134
      %v2136 = vpop.f32.mrf.mxu0
      %v2137 = vadd.f32 %v2048, %v2136
      %2138 = vmatmul.bf16.gmra.mxu0 %v1701
      %v2139 = vpop.f32.mrf.mxu0
      %v2140 = vadd.f32 %v2051, %v2139
      %v2141 = vpop.f32.mrf.mxu0
      %v2142 = vadd.f32 %v2053, %v2141
      %2143 = vmatmul.bf16.gmra.mxu0 %v1704
      %v2144 = vpop.f32.mrf.mxu0
      %v2145 = vadd.f32 %v2056, %v2144
      %v2146 = vpop.f32.mrf.mxu0
      %v2147 = vadd.f32 %v2058, %v2146
      %2148 = vmatmul.bf16.gmra.mxu0 %v1707
      %v2149 = vpop.f32.mrf.mxu0
      %v2150 = vadd.f32 %v2061, %v2149
      %v2151 = vpop.f32.mrf.mxu0
      %v2152 = vadd.f32 %v2063, %v2151
      %2153 = vmatmul.bf16.gmra.mxu0 %v1710
      %v2154 = vpop.f32.mrf.mxu0
      %v2155 = vadd.f32 %v2066, %v2154
      %v2156 = vpop.f32.mrf.mxu0
      %v2157 = vadd.f32 %v2068, %v2156
      %2158 = vmatmul.bf16.gmra.mxu0 %v1713
      %v2159 = vpop.f32.mrf.mxu0
      %v2160 = vadd.f32 %v2071, %v2159
      %v2161 = vpop.f32.mrf.mxu0
      %v2162 = vadd.f32 %v2073, %v2161
      %2163 = vmatmul.bf16.gmra.mxu0 %v1716
      %v2164 = vpop.f32.mrf.mxu0
      %v2165 = vadd.f32 %v2076, %v2164
      %v2166 = vpop.f32.mrf.mxu0
      %v2167 = vadd.f32 %v2078, %v2166
      %2168 = vmatmul.bf16.gmra.mxu0 %v1719
      %v2169 = vpop.f32.mrf.mxu0
      %v2170 = vadd.f32 %v2081, %v2169
      %v2171 = vpop.f32.mrf.mxu0
      %v2172 = vadd.f32 %v2083, %v2171
      %2173 = vmatmul.bf16.gmra.mxu0 %v1722
      %v2174 = vpop.f32.mrf.mxu0
      %v2175 = vadd.f32 %v2086, %v2174
      %v2176 = vpop.f32.mrf.mxu0
      %v2177 = vadd.f32 %v2088, %v2176
      %2178 = vmatmul.bf16.gmra.mxu0 %v1725
      %v2179 = vpop.f32.mrf.mxu0
      %v2180 = vadd.f32 %v2091, %v2179
      %v2181 = vpop.f32.mrf.mxu0
      %v2182 = vadd.f32 %v2093, %v2181
      %2183 = vmatmul.bf16.gmra.mxu0 %v1728
      %v2184 = vpop.f32.mrf.mxu0
      %v2185 = vadd.f32 %v2096, %v2184
      %v2186 = vpop.f32.mrf.mxu0
      %v2187 = vadd.f32 %v2098, %v2186
      %2188 = vdwg.mxu0
      %v2189 = vadd.f32 %v1505, %v2110
      %v2190 = vadd.f32 %v1507, %v2112
      %v2191 = vadd.f32 %v1510, %v2115
      %v2192 = vadd.f32 %v1512, %v2117
      %v2193 = vadd.f32 %v1515, %v2120
      %v2194 = vadd.f32 %v1517, %v2122
      %v2195 = vadd.f32 %v1520, %v2125
      %v2196 = vadd.f32 %v1522, %v2127
      %v2197 = vadd.f32 %v1525, %v2130
      %v2198 = vadd.f32 %v1527, %v2132
      %v2199 = vadd.f32 %v1530, %v2135
      %v2200 = vadd.f32 %v1532, %v2137
      %v2201 = vadd.f32 %v1535, %v2140
      %v2202 = vadd.f32 %v1537, %v2142
      %v2203 = vadd.f32 %v1540, %v2145
      %v2204 = vadd.f32 %v1542, %v2147
      %v2205 = vadd.f32 %v1545, %v2150
      %v2206 = vadd.f32 %v1547, %v2152
      %v2207 = vadd.f32 %v1550, %v2155
      %v2208 = vadd.f32 %v1552, %v2157
      %v2209 = vadd.f32 %v1555, %v2160
      %v2210 = vadd.f32 %v1557, %v2162
      %v2211 = vadd.f32 %v1560, %v2165
      %v2212 = vadd.f32 %v1562, %v2167
      %v2213 = vadd.f32 %v1565, %v2170
      %v2214 = vadd.f32 %v1567, %v2172
      %v2215 = vadd.f32 %v1570, %v2175
      %v2216 = vadd.f32 %v1572, %v2177
      %v2217 = vadd.f32 %v1575, %v2180
      %v2218 = vadd.f32 %v1577, %v2182
      %v2219 = vadd.f32 %v1580, %v2185
      %v2220 = vadd.f32 %v1582, %v2187
      %v2222 = vperm.slane %v376, 0
      %v2224 = vadd.f32 %v2189, %v2222
      %v2225 = vadd.f32 %v2190, %v2222
      %v2226 = vadd.f32 %v2191, %v2222
      %v2227 = vadd.f32 %v2192, %v2222
      %v2228 = vadd.f32 %v2193, %v2222
      %v2229 = vadd.f32 %v2194, %v2222
      %v2230 = vadd.f32 %v2195, %v2222
      %v2231 = vadd.f32 %v2196, %v2222
      %v2232 = vadd.f32 %v2197, %v2222
      %v2233 = vadd.f32 %v2198, %v2222
      %v2234 = vadd.f32 %v2199, %v2222
      %v2235 = vadd.f32 %v2200, %v2222
      %v2236 = vadd.f32 %v2201, %v2222
      %v2237 = vadd.f32 %v2202, %v2222
      %v2238 = vadd.f32 %v2203, %v2222
      %v2239 = vadd.f32 %v2204, %v2222
      %v2240 = vadd.f32 %v2205, %v2222
      %v2241 = vadd.f32 %v2206, %v2222
      %v2242 = vadd.f32 %v2207, %v2222
      %v2243 = vadd.f32 %v2208, %v2222
      %v2244 = vadd.f32 %v2209, %v2222
      %v2245 = vadd.f32 %v2210, %v2222
      %v2246 = vadd.f32 %v2211, %v2222
      %v2247 = vadd.f32 %v2212, %v2222
      %v2248 = vadd.f32 %v2213, %v2222
      %v2249 = vadd.f32 %v2214, %v2222
      %v2250 = vadd.f32 %v2215, %v2222
      %v2251 = vadd.f32 %v2216, %v2222
      %v2252 = vadd.f32 %v2217, %v2222
      %v2253 = vadd.f32 %v2218, %v2222
      %v2254 = vadd.f32 %v2219, %v2222
      %v2255 = vadd.f32 %v2220, %v2222
      %v2256 = vmax.f32 %v2224, 0.0
      %v2257 = vmax.f32 %v2225, 0.0
      %v2258 = vmax.f32 %v2226, 0.0
      %v2259 = vmax.f32 %v2227, 0.0
      %v2260 = vmax.f32 %v2228, 0.0
      %v2261 = vmax.f32 %v2229, 0.0
      %v2262 = vmax.f32 %v2230, 0.0
      %v2263 = vmax.f32 %v2231, 0.0
      %v2264 = vmax.f32 %v2232, 0.0
      %v2265 = vmax.f32 %v2233, 0.0
      %v2266 = vmax.f32 %v2234, 0.0
      %v2267 = vmax.f32 %v2235, 0.0
      %v2268 = vmax.f32 %v2236, 0.0
      %v2269 = vmax.f32 %v2237, 0.0
      %v2270 = vmax.f32 %v2238, 0.0
      %v2271 = vmax.f32 %v2239, 0.0
      %v2272 = vmax.f32 %v2240, 0.0
      %v2273 = vmax.f32 %v2241, 0.0
      %v2274 = vmax.f32 %v2242, 0.0
      %v2275 = vmax.f32 %v2243, 0.0
      %v2276 = vmax.f32 %v2244, 0.0
      %v2277 = vmax.f32 %v2245, 0.0
      %v2278 = vmax.f32 %v2246, 0.0
      %v2279 = vmax.f32 %v2247, 0.0
      %v2280 = vmax.f32 %v2248, 0.0
      %v2281 = vmax.f32 %v2249, 0.0
      %v2282 = vmax.f32 %v2250, 0.0
      %v2283 = vmax.f32 %v2251, 0.0
      %v2284 = vmax.f32 %v2252, 0.0
      %v2285 = vmax.f32 %v2253, 0.0
      %v2286 = vmax.f32 %v2254, 0.0
      %v2287 = vmax.f32 %v2255, 0.0
      %2288 = vst [vmem:[#allocation3] sm:$0xff] 0.0
      %2289 = vst [vmem:[#allocation3 + $0x8] sm:$0xff] 0.0
      %2290 = vst [vmem:[#allocation3 + $0x10] sm:$0x3] 0.0
      %2291 = vst [vmem:[#allocation3 + $0x18] sm:$0xff] 0.0
      %2292 = vst [vmem:[#allocation3 + $0x20] sm:$0xff] 0.0
      %2293 = vst [vmem:[#allocation3 + $0x28] sm:$0x3] 0.0
      %2294 = vst [vmem:[#allocation3 + $0x30] sm:$0xff] 0.0
      %2295 = vst [vmem:[#allocation3 + $0x38] sm:$0xff] 0.0
      %2296 = vst [vmem:[#allocation3 + $0x40] sm:$0x3] 0.0
      %2297 = vst [vmem:[#allocation3 + $0x48] sm:$0xff] 0.0
      %2298 = vst [vmem:[#allocation3 + $0x50] sm:$0xff] 0.0
      %2299 = vst [vmem:[#allocation3 + $0x58] sm:$0x3] 0.0
      %2300 = vst [vmem:[#allocation3 + $0x60] sm:$0xff] 0.0
      %2301 = vst [vmem:[#allocation3 + $0x68] sm:$0xff] 0.0
      %2302 = vst [vmem:[#allocation3 + $0x70] sm:$0x3] 0.0
      %2303 = vst [vmem:[#allocation3 + $0x78] sm:$0xff] 0.0
      %2304 = vst [vmem:[#allocation3 + $0x80] sm:$0xff] 0.0
      %2305 = vst [vmem:[#allocation3 + $0x88] sm:$0x3] 0.0
      %2306 = vst [vmem:[#allocation3 + $0x90] sm:$0xff] 0.0
      %2307 = vst [vmem:[#allocation3 + $0x98] sm:$0xff] 0.0
      %2308 = vst [vmem:[#allocation3 + $0xa0] sm:$0x3] 0.0
      %2309 = vst [vmem:[#allocation3 + $0xa8] sm:$0xff] 0.0
      %2310 = vst [vmem:[#allocation3 + $0xb0] sm:$0xff] 0.0
      %2311 = vst [vmem:[#allocation3 + $0xb8] sm:$0x3] 0.0
      %2312 = vst [vmem:[#allocation3 + $0xc0] sm:$0xff] 0.0
      %2313 = vst [vmem:[#allocation3 + $0xc8] sm:$0xff] 0.0
      %2314 = vst [vmem:[#allocation3 + $0xd0] sm:$0x3] 0.0
      %2315 = vst [vmem:[#allocation3 + $0xd8] sm:$0xff] 0.0
      %2316 = vst [vmem:[#allocation3 + $0xe0] sm:$0xff] 0.0
      %2317 = vst [vmem:[#allocation3 + $0xe8] sm:$0x3] 0.0
      %2318 = vst [vmem:[#allocation3 + $0xf0] sm:$0xff] 0.0
      %2319 = vst [vmem:[#allocation3 + $0xf8] sm:$0xff] 0.0
      %2320 = vst [vmem:[#allocation3 + $0x100] sm:$0x3] 0.0
      %2321 = vst [vmem:[#allocation3 + $0x108] sm:$0xff] 0.0
      %2322 = vst [vmem:[#allocation3 + $0x110] sm:$0xff] 0.0
      %2323 = vst [vmem:[#allocation3 + $0x118] sm:$0x3] 0.0
      %2324 = vst [vmem:[#allocation3 + $0x120] sm:$0xff] 0.0
      %2325 = vst [vmem:[#allocation3 + $0x128] sm:$0xff] 0.0
      %2326 = vst [vmem:[#allocation3 + $0x130] sm:$0x3] 0.0
      %2327 = vst [vmem:[#allocation3 + $0x138] sm:$0xff] 0.0
      %2328 = vst [vmem:[#allocation3 + $0x140] sm:$0xff] 0.0
      %2329 = vst [vmem:[#allocation3 + $0x148] sm:$0x3] 0.0
      %2330 = vst [vmem:[#allocation3 + $0x150] sm:$0xff] 0.0
      %2331 = vst [vmem:[#allocation3 + $0x158] sm:$0xff] 0.0
      %2332 = vst [vmem:[#allocation3 + $0x160] sm:$0x3] 0.0
      %2333 = vst [vmem:[#allocation3 + $0x168] sm:$0xff] 0.0
      %2334 = vst [vmem:[#allocation3 + $0x170] sm:$0xff] 0.0
      %2335 = vst [vmem:[#allocation3 + $0x178] sm:$0x3] 0.0
      %2336 = vst [vmem:[#allocation3 + $0x180] sm:$0xff] 0.0
      %2337 = vst [vmem:[#allocation3 + $0x188] sm:$0xff] 0.0
      %2338 = vst [vmem:[#allocation3 + $0x190] sm:$0x3] 0.0
      %2339 = vst [vmem:[#allocation3 + $0x198] sm:$0xff] 0.0
      %2340 = vst [vmem:[#allocation3 + $0x1a0] sm:$0xff] 0.0
      %2341 = vst [vmem:[#allocation3 + $0x1a8] sm:$0x3] 0.0
      %s2342 = scalar_lea.vmem [#allocation3], 24
      %2343 = vst [vmem:[%s2342 + $0x1] sm:$0xff] %v2256
      %2344 = vst [vmem:[%s2342 + $0x9] sm:$0xff] %v2257
      %2345 = vst [vmem:[%s2342 + $0x19] sm:$0xff] %v2258
      %2346 = vst [vmem:[%s2342 + $0x21] sm:$0xff] %v2259
      %2347 = vst [vmem:[%s2342 + $0x31] sm:$0xff] %v2260
      %2348 = vst [vmem:[%s2342 + $0x39] sm:$0xff] %v2261
      %2349 = vst [vmem:[%s2342 + $0x49] sm:$0xff] %v2262
      %2350 = vst [vmem:[%s2342 + $0x51] sm:$0xff] %v2263
      %2351 = vst [vmem:[%s2342 + $0x61] sm:$0xff] %v2264
      %2352 = vst [vmem:[%s2342 + $0x69] sm:$0xff] %v2265
      %2353 = vst [vmem:[%s2342 + $0x79] sm:$0xff] %v2266
      %2354 = vst [vmem:[%s2342 + $0x81] sm:$0xff] %v2267
      %2355 = vst [vmem:[%s2342 + $0x91] sm:$0xff] %v2268
      %2356 = vst [vmem:[%s2342 + $0x99] sm:$0xff] %v2269
      %2357 = vst [vmem:[%s2342 + $0xa9] sm:$0xff] %v2270
      %2358 = vst [vmem:[%s2342 + $0xb1] sm:$0xff] %v2271
      %2359 = vst [vmem:[%s2342 + $0xc1] sm:$0xff] %v2272
      %2360 = vst [vmem:[%s2342 + $0xc9] sm:$0xff] %v2273
      %2361 = vst [vmem:[%s2342 + $0xd9] sm:$0xff] %v2274
      %2362 = vst [vmem:[%s2342 + $0xe1] sm:$0xff] %v2275
      %2363 = vst [vmem:[%s2342 + $0xf1] sm:$0xff] %v2276
      %2364 = vst [vmem:[%s2342 + $0xf9] sm:$0xff] %v2277
      %2365 = vst [vmem:[%s2342 + $0x109] sm:$0xff] %v2278
      %2366 = vst [vmem:[%s2342 + $0x111] sm:$0xff] %v2279
      %2367 = vst [vmem:[%s2342 + $0x121] sm:$0xff] %v2280
      %2368 = vst [vmem:[%s2342 + $0x129] sm:$0xff] %v2281
      %2369 = vst [vmem:[%s2342 + $0x139] sm:$0xff] %v2282
      %2370 = vst [vmem:[%s2342 + $0x141] sm:$0xff] %v2283
      %2371 = vst [vmem:[%s2342 + $0x151] sm:$0xff] %v2284
      %2372 = vst [vmem:[%s2342 + $0x159] sm:$0xff] %v2285
      %2373 = vst [vmem:[%s2342 + $0x169] sm:$0xff] %v2286
      %2374 = vst [vmem:[%s2342 + $0x171] sm:$0xff] %v2287
      %v2375 = vld [vmem:[%s4] sm:$0x1]
      %v2376 = vld [vmem:[#allocation3] sm:$0xff]
      %v2377 = vld [vmem:[#allocation3 + $0x8] sm:$0xff]
      %v2378 = vld [vmem:[#allocation3 + $0x18] sm:$0xff]
      %v2379 = vld [vmem:[#allocation3 + $0x20] sm:$0xff]
      %v2380 = vld [vmem:[#allocation3 + $0x30] sm:$0xff]
      %v2381 = vld [vmem:[#allocation3 + $0x38] sm:$0xff]
      %v2382 = vld [vmem:[#allocation3 + $0x48] sm:$0xff]
      %v2383 = vld [vmem:[#allocation3 + $0x50] sm:$0xff]
      %v2384 = vld [vmem:[#allocation3 + $0x60] sm:$0xff]
      %v2385 = vld [vmem:[#allocation3 + $0x68] sm:$0xff]
      %v2386 = vld [vmem:[#allocation3 + $0x78] sm:$0xff]
      %v2387 = vld [vmem:[#allocation3 + $0x80] sm:$0xff]
      %v2388 = vld [vmem:[#allocation3 + $0x90] sm:$0xff]
      %v2389 = vld [vmem:[#allocation3 + $0x98] sm:$0xff]
      %v2390 = vld [vmem:[#allocation3 + $0xa8] sm:$0xff]
      %v2391 = vld [vmem:[#allocation3 + $0xb0] sm:$0xff]
      %v2392 = vld [vmem:[#allocation3 + $0xc0] sm:$0xff]
      %v2393 = vld [vmem:[#allocation3 + $0xc8] sm:$0xff]
      %v2394 = vld [vmem:[#allocation3 + $0xd8] sm:$0xff]
      %v2395 = vld [vmem:[#allocation3 + $0xe0] sm:$0xff]
      %v2396 = vld [vmem:[#allocation3 + $0xf0] sm:$0xff]
      %v2397 = vld [vmem:[#allocation3 + $0xf8] sm:$0xff]
      %v2398 = vld [vmem:[#allocation3 + $0x108] sm:$0xff]
      %v2399 = vld [vmem:[#allocation3 + $0x110] sm:$0xff]
      %v2400 = vld [vmem:[#allocation3 + $0x120] sm:$0xff]
      %v2401 = vld [vmem:[#allocation3 + $0x128] sm:$0xff]
      %v2402 = vld [vmem:[#allocation3 + $0x138] sm:$0xff]
      %v2403 = vld [vmem:[#allocation3 + $0x140] sm:$0xff]
      %v2404 = vld [vmem:[#allocation3 + $0x150] sm:$0xff]
      %v2405 = vld [vmem:[#allocation3 + $0x158] sm:$0xff]
      %v2406 = vld [vmem:[#allocation3 + $0x168] sm:$0xff]
      %v2407 = vld [vmem:[#allocation3 + $0x170] sm:$0xff]
      %v2408 = vld [vmem:[#allocation3 + $0x1] sm:$0xff]
      %v2409 = vld [vmem:[#allocation3 + $0x9] sm:$0xff]
      %v2410 = vld [vmem:[#allocation3 + $0x19] sm:$0xff]
      %v2411 = vld [vmem:[#allocation3 + $0x21] sm:$0xff]
      %v2412 = vld [vmem:[#allocation3 + $0x31] sm:$0xff]
      %v2413 = vld [vmem:[#allocation3 + $0x39] sm:$0xff]
      %v2414 = vld [vmem:[#allocation3 + $0x49] sm:$0xff]
      %v2415 = vld [vmem:[#allocation3 + $0x51] sm:$0xff]
      %v2416 = vld [vmem:[#allocation3 + $0x61] sm:$0xff]
      %v2417 = vld [vmem:[#allocation3 + $0x69] sm:$0xff]
      %v2418 = vld [vmem:[#allocation3 + $0x79] sm:$0xff]
      %v2419 = vld [vmem:[#allocation3 + $0x81] sm:$0xff]
      %v2420 = vld [vmem:[#allocation3 + $0x91] sm:$0xff]
      %v2421 = vld [vmem:[#allocation3 + $0x99] sm:$0xff]
      %v2422 = vld [vmem:[#allocation3 + $0xa9] sm:$0xff]
      %v2423 = vld [vmem:[#allocation3 + $0xb1] sm:$0xff]
      %v2424 = vld [vmem:[#allocation3 + $0xc1] sm:$0xff]
      %v2425 = vld [vmem:[#allocation3 + $0xc9] sm:$0xff]
      %v2426 = vld [vmem:[#allocation3 + $0xd9] sm:$0xff]
      %v2427 = vld [vmem:[#allocation3 + $0xe1] sm:$0xff]
      %v2428 = vld [vmem:[#allocation3 + $0xf1] sm:$0xff]
      %v2429 = vld [vmem:[#allocation3 + $0xf9] sm:$0xff]
      %v2430 = vld [vmem:[#allocation3 + $0x109] sm:$0xff]
      %v2431 = vld [vmem:[#allocation3 + $0x111] sm:$0xff]
      %v2432 = vld [vmem:[#allocation3 + $0x121] sm:$0xff]
      %v2433 = vld [vmem:[#allocation3 + $0x129] sm:$0xff]
      %v2434 = vld [vmem:[#allocation3 + $0x139] sm:$0xff]
      %v2435 = vld [vmem:[#allocation3 + $0x141] sm:$0xff]
      %v2436 = vld [vmem:[#allocation3 + $0x151] sm:$0xff]
      %v2437 = vld [vmem:[#allocation3 + $0x159] sm:$0xff]
      %v2438 = vld [vmem:[#allocation3 + $0x169] sm:$0xff]
      %v2439 = vld [vmem:[#allocation3 + $0x171] sm:$0xff]
      %v2440 = vld [vmem:[#allocation3 + $0x2] sm:$0xff]
      %v2441 = vld [vmem:[#allocation3 + $0xa] sm:$0xff]
      %v2442 = vld [vmem:[#allocation3 + $0x1a] sm:$0xff]
      %v2443 = vld [vmem:[#allocation3 + $0x22] sm:$0xff]
      %v2444 = vld [vmem:[#allocation3 + $0x32] sm:$0xff]
      %v2445 = vld [vmem:[#allocation3 + $0x3a] sm:$0xff]
      %v2446 = vld [vmem:[#allocation3 + $0x4a] sm:$0xff]
      %v2447 = vld [vmem:[#allocation3 + $0x52] sm:$0xff]
      %v2448 = vld [vmem:[#allocation3 + $0x62] sm:$0xff]
      %v2449 = vld [vmem:[#allocation3 + $0x6a] sm:$0xff]
      %v2450 = vld [vmem:[#allocation3 + $0x7a] sm:$0xff]
      %v2451 = vld [vmem:[#allocation3 + $0x82] sm:$0xff]
      %v2452 = vld [vmem:[#allocation3 + $0x92] sm:$0xff]
      %v2453 = vld [vmem:[#allocation3 + $0x9a] sm:$0xff]
      %v2454 = vld [vmem:[#allocation3 + $0xaa] sm:$0xff]
      %v2455 = vld [vmem:[#allocation3 + $0xb2] sm:$0xff]
      %v2456 = vld [vmem:[#allocation3 + $0xc2] sm:$0xff]
      %v2457 = vld [vmem:[#allocation3 + $0xca] sm:$0xff]
      %v2458 = vld [vmem:[#allocation3 + $0xda] sm:$0xff]
      %v2459 = vld [vmem:[#allocation3 + $0xe2] sm:$0xff]
      %v2460 = vld [vmem:[#allocation3 + $0xf2] sm:$0xff]
      %v2461 = vld [vmem:[#allocation3 + $0xfa] sm:$0xff]
      %v2462 = vld [vmem:[#allocation3 + $0x10a] sm:$0xff]
      %v2463 = vld [vmem:[#allocation3 + $0x112] sm:$0xff]
      %v2464 = vld [vmem:[#allocation3 + $0x122] sm:$0xff]
      %v2465 = vld [vmem:[#allocation3 + $0x12a] sm:$0xff]
      %v2466 = vld [vmem:[#allocation3 + $0x13a] sm:$0xff]
      %v2467 = vld [vmem:[#allocation3 + $0x142] sm:$0xff]
      %v2468 = vld [vmem:[#allocation3 + $0x152] sm:$0xff]
      %v2469 = vld [vmem:[#allocation3 + $0x15a] sm:$0xff]
      %v2470 = vld [vmem:[#allocation3 + $0x16a] sm:$0xff]
      %v2471 = vld [vmem:[#allocation3 + $0x172] sm:$0xff]
      %v2472 = vpack.c.bf16 %v2377, %v2376
      %v2473 = vpack.c.bf16 %v2409, %v2408
      %v2474 = vpack.c.bf16 %v2441, %v2440
      %v2475 = vpack.c.bf16 %v2379, %v2378
      %v2476 = vpack.c.bf16 %v2411, %v2410
      %v2477 = vpack.c.bf16 %v2443, %v2442
      %v2478 = vpack.c.bf16 %v2381, %v2380
      %v2479 = vpack.c.bf16 %v2413, %v2412
      %v2480 = vpack.c.bf16 %v2445, %v2444
      %v2481 = vpack.c.bf16 %v2383, %v2382
      %v2482 = vpack.c.bf16 %v2415, %v2414
      %v2483 = vpack.c.bf16 %v2447, %v2446
      %v2484 = vpack.c.bf16 %v2385, %v2384
      %v2485 = vpack.c.bf16 %v2417, %v2416
      %v2486 = vpack.c.bf16 %v2449, %v2448
      %v2487 = vpack.c.bf16 %v2387, %v2386
      %v2488 = vpack.c.bf16 %v2419, %v2418
      %v2489 = vpack.c.bf16 %v2451, %v2450
      %v2490 = vpack.c.bf16 %v2389, %v2388
      %v2491 = vpack.c.bf16 %v2421, %v2420
      %v2492 = vpack.c.bf16 %v2453, %v2452
      %v2493 = vpack.c.bf16 %v2391, %v2390
      %v2494 = vpack.c.bf16 %v2423, %v2422
      %v2495 = vpack.c.bf16 %v2455, %v2454
      %v2496 = vpack.c.bf16 %v2393, %v2392
      %v2497 = vpack.c.bf16 %v2425, %v2424
      %v2498 = vpack.c.bf16 %v2457, %v2456
      %v2499 = vpack.c.bf16 %v2395, %v2394
      %v2500 = vpack.c.bf16 %v2427, %v2426
      %v2501 = vpack.c.bf16 %v2459, %v2458
      %v2502 = vpack.c.bf16 %v2397, %v2396
      %v2503 = vpack.c.bf16 %v2429, %v2428
      %v2504 = vpack.c.bf16 %v2461, %v2460
      %v2505 = vpack.c.bf16 %v2399, %v2398
      %v2506 = vpack.c.bf16 %v2431, %v2430
      %v2507 = vpack.c.bf16 %v2463, %v2462
      %v2508 = vpack.c.bf16 %v2401, %v2400
      %v2509 = vpack.c.bf16 %v2433, %v2432
      %v2510 = vpack.c.bf16 %v2465, %v2464
      %v2511 = vpack.c.bf16 %v2403, %v2402
      %v2512 = vpack.c.bf16 %v2435, %v2434
      %v2513 = vpack.c.bf16 %v2467, %v2466
      %v2514 = vpack.c.bf16 %v2405, %v2404
      %v2515 = vpack.c.bf16 %v2437, %v2436
      %v2516 = vpack.c.bf16 %v2469, %v2468
      %v2517 = vpack.c.bf16 %v2407, %v2406
      %v2518 = vpack.c.bf16 %v2439, %v2438
      %v2519 = vpack.c.bf16 %v2471, %v2470
      %v2520 = vld [vmem:[%s3] sm:$0xf]
      %v2521 = vld [vmem:[%s3 + $0x4] sm:$0xf]
      %v2522 = vld [vmem:[%s3 + $0x8] sm:$0xf]
      %v2523 = vld [vmem:[%s3 + $0xc] sm:$0xf]
      %v2524 = vld [vmem:[%s3 + $0x10] sm:$0xf]
      %v2525 = vld [vmem:[%s3 + $0x14] sm:$0xf]
      %v2526 = vld [vmem:[%s3 + $0x18] sm:$0xf]
      %v2527 = vld [vmem:[%s3 + $0x1c] sm:$0xf]
      %v2528 = vld [vmem:[%s3 + $0x20] sm:$0xf]
      %v2529 = vld [vmem:[%s3 + $0x24] sm:$0xf]
      %v2530 = vld [vmem:[%s3 + $0x28] sm:$0xf]
      %v2531 = vld [vmem:[%s3 + $0x2c] sm:$0xf]
      %v2532 = vld [vmem:[%s3 + $0x30] sm:$0xf]
      %v2533 = vld [vmem:[%s3 + $0x34] sm:$0xf]
      %v2534 = vld [vmem:[%s3 + $0x38] sm:$0xf]
      %v2535 = vld [vmem:[%s3 + $0x3c] sm:$0xf]
      %v2536 = vld [vmem:[%s3 + $0x40] sm:$0xf]
      %v2537 = vld [vmem:[%s3 + $0x44] sm:$0xf]
      %v2538 = vld [vmem:[%s3 + $0x48] sm:$0xf]
      %v2539 = vld [vmem:[%s3 + $0x4c] sm:$0xf]
      %v2540 = vld [vmem:[%s3 + $0x50] sm:$0xf]
      %v2541 = vld [vmem:[%s3 + $0x54] sm:$0xf]
      %v2542 = vld [vmem:[%s3 + $0x58] sm:$0xf]
      %v2543 = vld [vmem:[%s3 + $0x5c] sm:$0xf]
      %v2544 = vld [vmem:[%s3 + $0x60] sm:$0xf]
      %v2545 = vld [vmem:[%s3 + $0x64] sm:$0xf]
      %v2546 = vld [vmem:[%s3 + $0x68] sm:$0xf]
      %v2547 = vld [vmem:[%s3 + $0x6c] sm:$0xf]
      %v2548 = vld [vmem:[%s3 + $0x70] sm:$0xf]
      %v2549 = vld [vmem:[%s3 + $0x74] sm:$0xf]
      %v2550 = vld [vmem:[%s3 + $0x78] sm:$0xf]
      %v2551 = vld [vmem:[%s3 + $0x7c] sm:$0xf]
      %v2552 = vld [vmem:[%s3 + $0x80] sm:$0xf]
      %v2553 = vld [vmem:[%s3 + $0x84] sm:$0xf]
      %v2554 = vld [vmem:[%s3 + $0x88] sm:$0xf]
      %v2555 = vld [vmem:[%s3 + $0x8c] sm:$0xf]
      %v2556 = vld [vmem:[%s3 + $0x90] sm:$0xf]
      %v2557 = vld [vmem:[%s3 + $0x94] sm:$0xf]
      %v2558 = vld [vmem:[%s3 + $0x98] sm:$0xf]
      %v2559 = vld [vmem:[%s3 + $0x9c] sm:$0xf]
      %v2560 = vld [vmem:[%s3 + $0xa0] sm:$0xf]
      %v2561 = vld [vmem:[%s3 + $0xa4] sm:$0xf]
      %v2562 = vld [vmem:[%s3 + $0xa8] sm:$0xf]
      %v2563 = vld [vmem:[%s3 + $0xac] sm:$0xf]
      %v2564 = vld [vmem:[%s3 + $0xb0] sm:$0xf]
      %v2565 = vld [vmem:[%s3 + $0xb4] sm:$0xf]
      %v2566 = vld [vmem:[%s3 + $0xb8] sm:$0xf]
      %v2567 = vld [vmem:[%s3 + $0xbc] sm:$0xf]
      %v2568 = vld [vmem:[%s2342] sm:$0xff]
      %v2569 = vld [vmem:[%s2342 + $0x8] sm:$0xff]
      %v2570 = vld [vmem:[%s2342 + $0x18] sm:$0xff]
      %v2571 = vld [vmem:[%s2342 + $0x20] sm:$0xff]
      %v2572 = vld [vmem:[%s2342 + $0x30] sm:$0xff]
      %v2573 = vld [vmem:[%s2342 + $0x38] sm:$0xff]
      %v2574 = vld [vmem:[%s2342 + $0x48] sm:$0xff]
      %v2575 = vld [vmem:[%s2342 + $0x50] sm:$0xff]
      %v2576 = vld [vmem:[%s2342 + $0x60] sm:$0xff]
      %v2577 = vld [vmem:[%s2342 + $0x68] sm:$0xff]
      %v2578 = vld [vmem:[%s2342 + $0x78] sm:$0xff]
      %v2579 = vld [vmem:[%s2342 + $0x80] sm:$0xff]
      %v2580 = vld [vmem:[%s2342 + $0x90] sm:$0xff]
      %v2581 = vld [vmem:[%s2342 + $0x98] sm:$0xff]
      %v2582 = vld [vmem:[%s2342 + $0xa8] sm:$0xff]
      %v2583 = vld [vmem:[%s2342 + $0xb0] sm:$0xff]
      %v2584 = vld [vmem:[%s2342 + $0xc0] sm:$0xff]
      %v2585 = vld [vmem:[%s2342 + $0xc8] sm:$0xff]
      %v2586 = vld [vmem:[%s2342 + $0xd8] sm:$0xff]
      %v2587 = vld [vmem:[%s2342 + $0xe0] sm:$0xff]
      %v2588 = vld [vmem:[%s2342 + $0xf0] sm:$0xff]
      %v2589 = vld [vmem:[%s2342 + $0xf8] sm:$0xff]
      %v2590 = vld [vmem:[%s2342 + $0x108] sm:$0xff]
      %v2591 = vld [vmem:[%s2342 + $0x110] sm:$0xff]
      %v2592 = vld [vmem:[%s2342 + $0x120] sm:$0xff]
      %v2593 = vld [vmem:[%s2342 + $0x128] sm:$0xff]
      %v2594 = vld [vmem:[%s2342 + $0x138] sm:$0xff]
      %v2595 = vld [vmem:[%s2342 + $0x140] sm:$0xff]
      %v2596 = vld [vmem:[%s2342 + $0x150] sm:$0xff]
      %v2597 = vld [vmem:[%s2342 + $0x158] sm:$0xff]
      %v2598 = vld [vmem:[%s2342 + $0x168] sm:$0xff]
      %v2599 = vld [vmem:[%s2342 + $0x170] sm:$0xff]
      %v2600 = vld [vmem:[%s2342 + $0x1] sm:$0xff]
      %v2601 = vld [vmem:[%s2342 + $0x9] sm:$0xff]
      %v2602 = vld [vmem:[%s2342 + $0x19] sm:$0xff]
      %v2603 = vld [vmem:[%s2342 + $0x21] sm:$0xff]
      %v2604 = vld [vmem:[%s2342 + $0x31] sm:$0xff]
      %v2605 = vld [vmem:[%s2342 + $0x39] sm:$0xff]
      %v2606 = vld [vmem:[%s2342 + $0x49] sm:$0xff]
      %v2607 = vld [vmem:[%s2342 + $0x51] sm:$0xff]
      %v2608 = vld [vmem:[%s2342 + $0x61] sm:$0xff]
      %v2609 = vld [vmem:[%s2342 + $0x69] sm:$0xff]
      %v2610 = vld [vmem:[%s2342 + $0x79] sm:$0xff]
      %v2611 = vld [vmem:[%s2342 + $0x81] sm:$0xff]
      %v2612 = vld [vmem:[%s2342 + $0x91] sm:$0xff]
      %v2613 = vld [vmem:[%s2342 + $0x99] sm:$0xff]
      %v2614 = vld [vmem:[%s2342 + $0xa9] sm:$0xff]
      %v2615 = vld [vmem:[%s2342 + $0xb1] sm:$0xff]
      %v2616 = vld [vmem:[%s2342 + $0xc1] sm:$0xff]
      %v2617 = vld [vmem:[%s2342 + $0xc9] sm:$0xff]
      %v2618 = vld [vmem:[%s2342 + $0xd9] sm:$0xff]
      %v2619 = vld [vmem:[%s2342 + $0xe1] sm:$0xff]
      %v2620 = vld [vmem:[%s2342 + $0xf1] sm:$0xff]
      %v2621 = vld [vmem:[%s2342 + $0xf9] sm:$0xff]
      %v2622 = vld [vmem:[%s2342 + $0x109] sm:$0xff]
      %v2623 = vld [vmem:[%s2342 + $0x111] sm:$0xff]
      %v2624 = vld [vmem:[%s2342 + $0x121] sm:$0xff]
      %v2625 = vld [vmem:[%s2342 + $0x129] sm:$0xff]
      %v2626 = vld [vmem:[%s2342 + $0x139] sm:$0xff]
      %v2627 = vld [vmem:[%s2342 + $0x141] sm:$0xff]
      %v2628 = vld [vmem:[%s2342 + $0x151] sm:$0xff]
      %v2629 = vld [vmem:[%s2342 + $0x159] sm:$0xff]
      %v2630 = vld [vmem:[%s2342 + $0x169] sm:$0xff]
      %v2631 = vld [vmem:[%s2342 + $0x171] sm:$0xff]
      %v2632 = vld [vmem:[%s2342 + $0x2] sm:$0xff]
      %v2633 = vld [vmem:[%s2342 + $0xa] sm:$0xff]
      %v2634 = vld [vmem:[%s2342 + $0x1a] sm:$0xff]
      %v2635 = vld [vmem:[%s2342 + $0x22] sm:$0xff]
      %v2636 = vld [vmem:[%s2342 + $0x32] sm:$0xff]
      %v2637 = vld [vmem:[%s2342 + $0x3a] sm:$0xff]
      %v2638 = vld [vmem:[%s2342 + $0x4a] sm:$0xff]
      %v2639 = vld [vmem:[%s2342 + $0x52] sm:$0xff]
      %v2640 = vld [vmem:[%s2342 + $0x62] sm:$0xff]
      %v2641 = vld [vmem:[%s2342 + $0x6a] sm:$0xff]
      %v2642 = vld [vmem:[%s2342 + $0x7a] sm:$0xff]
      %v2643 = vld [vmem:[%s2342 + $0x82] sm:$0xff]
      %v2644 = vld [vmem:[%s2342 + $0x92] sm:$0xff]
      %v2645 = vld [vmem:[%s2342 + $0x9a] sm:$0xff]
      %v2646 = vld [vmem:[%s2342 + $0xaa] sm:$0xff]
      %v2647 = vld [vmem:[%s2342 + $0xb2] sm:$0xff]
      %v2648 = vld [vmem:[%s2342 + $0xc2] sm:$0xff]
      %v2649 = vld [vmem:[%s2342 + $0xca] sm:$0xff]
      %v2650 = vld [vmem:[%s2342 + $0xda] sm:$0xff]
      %v2651 = vld [vmem:[%s2342 + $0xe2] sm:$0xff]
      %v2652 = vld [vmem:[%s2342 + $0xf2] sm:$0xff]
      %v2653 = vld [vmem:[%s2342 + $0xfa] sm:$0xff]
      %v2654 = vld [vmem:[%s2342 + $0x10a] sm:$0xff]
      %v2655 = vld [vmem:[%s2342 + $0x112] sm:$0xff]
      %v2656 = vld [vmem:[%s2342 + $0x122] sm:$0xff]
      %v2657 = vld [vmem:[%s2342 + $0x12a] sm:$0xff]
      %v2658 = vld [vmem:[%s2342 + $0x13a] sm:$0xff]
      %v2659 = vld [vmem:[%s2342 + $0x142] sm:$0xff]
      %v2660 = vld [vmem:[%s2342 + $0x152] sm:$0xff]
      %v2661 = vld [vmem:[%s2342 + $0x15a] sm:$0xff]
      %v2662 = vld [vmem:[%s2342 + $0x16a] sm:$0xff]
      %v2663 = vld [vmem:[%s2342 + $0x172] sm:$0xff]
      %v2664 = vpack.c.bf16 %v2569, %v2568
      %v2665 = vpack.c.bf16 %v2601, %v2600
      %v2666 = vpack.c.bf16 %v2633, %v2632
      %v2667 = vpack.c.bf16 %v2571, %v2570
      %v2668 = vpack.c.bf16 %v2603, %v2602
      %v2669 = vpack.c.bf16 %v2635, %v2634
      %v2670 = vpack.c.bf16 %v2573, %v2572
      %v2671 = vpack.c.bf16 %v2605, %v2604
      %v2672 = vpack.c.bf16 %v2637, %v2636
      %v2673 = vpack.c.bf16 %v2575, %v2574
      %v2674 = vpack.c.bf16 %v2607, %v2606
      %v2675 = vpack.c.bf16 %v2639, %v2638
      %v2676 = vpack.c.bf16 %v2577, %v2576
      %v2677 = vpack.c.bf16 %v2609, %v2608
      %v2678 = vpack.c.bf16 %v2641, %v2640
      %v2679 = vpack.c.bf16 %v2579, %v2578
      %v2680 = vpack.c.bf16 %v2611, %v2610
      %v2681 = vpack.c.bf16 %v2643, %v2642
      %v2682 = vpack.c.bf16 %v2581, %v2580
      %v2683 = vpack.c.bf16 %v2613, %v2612
      %v2684 = vpack.c.bf16 %v2645, %v2644
      %v2685 = vpack.c.bf16 %v2583, %v2582
      %v2686 = vpack.c.bf16 %v2615, %v2614
      %v2687 = vpack.c.bf16 %v2647, %v2646
      %v2688 = vpack.c.bf16 %v2585, %v2584
      %v2689 = vpack.c.bf16 %v2617, %v2616
      %v2690 = vpack.c.bf16 %v2649, %v2648
      %v2691 = vpack.c.bf16 %v2587, %v2586
      %v2692 = vpack.c.bf16 %v2619, %v2618
      %v2693 = vpack.c.bf16 %v2651, %v2650
      %v2694 = vpack.c.bf16 %v2589, %v2588
      %v2695 = vpack.c.bf16 %v2621, %v2620
      %v2696 = vpack.c.bf16 %v2653, %v2652
      %v2697 = vpack.c.bf16 %v2591, %v2590
      %v2698 = vpack.c.bf16 %v2623, %v2622
      %v2699 = vpack.c.bf16 %v2655, %v2654
      %v2700 = vpack.c.bf16 %v2593, %v2592
      %v2701 = vpack.c.bf16 %v2625, %v2624
      %v2702 = vpack.c.bf16 %v2657, %v2656
      %v2703 = vpack.c.bf16 %v2595, %v2594
      %v2704 = vpack.c.bf16 %v2627, %v2626
      %v2705 = vpack.c.bf16 %v2659, %v2658
      %v2706 = vpack.c.bf16 %v2597, %v2596
      %v2707 = vpack.c.bf16 %v2629, %v2628
      %v2708 = vpack.c.bf16 %v2661, %v2660
      %v2709 = vpack.c.bf16 %v2599, %v2598
      %v2710 = vpack.c.bf16 %v2631, %v2630
      %v2711 = vpack.c.bf16 %v2663, %v2662
      %s2712 = scalar_lea.vmem %s3, 192
      %v2713 = vld [vmem:[%s2712] sm:$0xf]
      %v2714 = vld [vmem:[%s2712 + $0x4] sm:$0xf]
      %v2715 = vld [vmem:[%s2712 + $0x8] sm:$0xf]
      %v2716 = vld [vmem:[%s2712 + $0xc] sm:$0xf]
      %v2717 = vld [vmem:[%s2712 + $0x10] sm:$0xf]
      %v2718 = vld [vmem:[%s2712 + $0x14] sm:$0xf]
      %v2719 = vld [vmem:[%s2712 + $0x18] sm:$0xf]
      %v2720 = vld [vmem:[%s2712 + $0x1c] sm:$0xf]
      %v2721 = vld [vmem:[%s2712 + $0x20] sm:$0xf]
      %v2722 = vld [vmem:[%s2712 + $0x24] sm:$0xf]
      %v2723 = vld [vmem:[%s2712 + $0x28] sm:$0xf]
      %v2724 = vld [vmem:[%s2712 + $0x2c] sm:$0xf]
      %v2725 = vld [vmem:[%s2712 + $0x30] sm:$0xf]
      %v2726 = vld [vmem:[%s2712 + $0x34] sm:$0xf]
      %v2727 = vld [vmem:[%s2712 + $0x38] sm:$0xf]
      %v2728 = vld [vmem:[%s2712 + $0x3c] sm:$0xf]
      %v2729 = vld [vmem:[%s2712 + $0x40] sm:$0xf]
      %v2730 = vld [vmem:[%s2712 + $0x44] sm:$0xf]
      %v2731 = vld [vmem:[%s2712 + $0x48] sm:$0xf]
      %v2732 = vld [vmem:[%s2712 + $0x4c] sm:$0xf]
      %v2733 = vld [vmem:[%s2712 + $0x50] sm:$0xf]
      %v2734 = vld [vmem:[%s2712 + $0x54] sm:$0xf]
      %v2735 = vld [vmem:[%s2712 + $0x58] sm:$0xf]
      %v2736 = vld [vmem:[%s2712 + $0x5c] sm:$0xf]
      %v2737 = vld [vmem:[%s2712 + $0x60] sm:$0xf]
      %v2738 = vld [vmem:[%s2712 + $0x64] sm:$0xf]
      %v2739 = vld [vmem:[%s2712 + $0x68] sm:$0xf]
      %v2740 = vld [vmem:[%s2712 + $0x6c] sm:$0xf]
      %v2741 = vld [vmem:[%s2712 + $0x70] sm:$0xf]
      %v2742 = vld [vmem:[%s2712 + $0x74] sm:$0xf]
      %v2743 = vld [vmem:[%s2712 + $0x78] sm:$0xf]
      %v2744 = vld [vmem:[%s2712 + $0x7c] sm:$0xf]
      %v2745 = vld [vmem:[%s2712 + $0x80] sm:$0xf]
      %v2746 = vld [vmem:[%s2712 + $0x84] sm:$0xf]
      %v2747 = vld [vmem:[%s2712 + $0x88] sm:$0xf]
      %v2748 = vld [vmem:[%s2712 + $0x8c] sm:$0xf]
      %v2749 = vld [vmem:[%s2712 + $0x90] sm:$0xf]
      %v2750 = vld [vmem:[%s2712 + $0x94] sm:$0xf]
      %v2751 = vld [vmem:[%s2712 + $0x98] sm:$0xf]
      %v2752 = vld [vmem:[%s2712 + $0x9c] sm:$0xf]
      %v2753 = vld [vmem:[%s2712 + $0xa0] sm:$0xf]
      %v2754 = vld [vmem:[%s2712 + $0xa4] sm:$0xf]
      %v2755 = vld [vmem:[%s2712 + $0xa8] sm:$0xf]
      %v2756 = vld [vmem:[%s2712 + $0xac] sm:$0xf]
      %v2757 = vld [vmem:[%s2712 + $0xb0] sm:$0xf]
      %v2758 = vld [vmem:[%s2712 + $0xb4] sm:$0xf]
      %v2759 = vld [vmem:[%s2712 + $0xb8] sm:$0xf]
      %v2760 = vld [vmem:[%s2712 + $0xbc] sm:$0xf]
      %v2809 = vunpack.c.l.b16 %v2713
      %v2810 = vunpack.c.l.b16 %v2714
      %v2811 = vunpack.c.l.b16 %v2715
      %v2812 = vunpack.c.l.b16 %v2716
      %v2813 = vunpack.c.l.b16 %v2717
      %v2814 = vunpack.c.l.b16 %v2718
      %v2815 = vunpack.c.l.b16 %v2719
      %v2816 = vunpack.c.l.b16 %v2720
      %v2817 = vunpack.c.l.b16 %v2721
      %v2818 = vunpack.c.l.b16 %v2722
      %v2819 = vunpack.c.l.b16 %v2723
      %v2820 = vunpack.c.l.b16 %v2724
      %v2821 = vunpack.c.l.b16 %v2725
      %v2822 = vunpack.c.l.b16 %v2726
      %v2823 = vunpack.c.l.b16 %v2727
      %v2824 = vunpack.c.l.b16 %v2728
      %v2825 = vunpack.c.l.b16 %v2729
      %v2826 = vunpack.c.l.b16 %v2730
      %v2827 = vunpack.c.l.b16 %v2731
      %v2828 = vunpack.c.l.b16 %v2732
      %v2829 = vunpack.c.l.b16 %v2733
      %v2830 = vunpack.c.l.b16 %v2734
      %v2831 = vunpack.c.l.b16 %v2735
      %v2832 = vunpack.c.l.b16 %v2736
      %v2833 = vunpack.c.l.b16 %v2737
      %v2834 = vunpack.c.l.b16 %v2738
      %v2835 = vunpack.c.l.b16 %v2739
      %v2836 = vunpack.c.l.b16 %v2740
      %v2837 = vunpack.c.l.b16 %v2741
      %v2838 = vunpack.c.l.b16 %v2742
      %v2839 = vunpack.c.l.b16 %v2743
      %v2840 = vunpack.c.l.b16 %v2744
      %v2841 = vunpack.c.l.b16 %v2745
      %v2842 = vunpack.c.l.b16 %v2746
      %v2843 = vunpack.c.l.b16 %v2747
      %v2844 = vunpack.c.l.b16 %v2748
      %v2845 = vunpack.c.l.b16 %v2749
      %v2846 = vunpack.c.l.b16 %v2750
      %v2847 = vunpack.c.l.b16 %v2751
      %v2848 = vunpack.c.l.b16 %v2752
      %v2849 = vunpack.c.l.b16 %v2753
      %v2850 = vunpack.c.l.b16 %v2754
      %v2851 = vunpack.c.l.b16 %v2755
      %v2852 = vunpack.c.l.b16 %v2756
      %v2853 = vunpack.c.l.b16 %v2757
      %v2854 = vunpack.c.l.b16 %v2758
      %v2855 = vunpack.c.l.b16 %v2759
      %v2856 = vunpack.c.l.b16 %v2760
      %v2857 = vpack.c.b16 %v2810, %v2809
      %v2858 = vpack.c.b16 %v2812, %v2811
      %v2859 = vpack.c.b16 %v2814, %v2813
      %v2860 = vpack.c.b16 %v2816, %v2815
      %v2861 = vpack.c.b16 %v2818, %v2817
      %v2862 = vpack.c.b16 %v2820, %v2819
      %v2863 = vpack.c.b16 %v2822, %v2821
      %v2864 = vpack.c.b16 %v2824, %v2823
      %v2865 = vpack.c.b16 %v2826, %v2825
      %v2866 = vpack.c.b16 %v2828, %v2827
      %v2867 = vpack.c.b16 %v2830, %v2829
      %v2868 = vpack.c.b16 %v2832, %v2831
      %v2869 = vpack.c.b16 %v2834, %v2833
      %v2870 = vpack.c.b16 %v2836, %v2835
      %v2871 = vpack.c.b16 %v2838, %v2837
      %v2872 = vpack.c.b16 %v2840, %v2839
      %v2873 = vpack.c.b16 %v2842, %v2841
      %v2874 = vpack.c.b16 %v2844, %v2843
      %v2875 = vpack.c.b16 %v2846, %v2845
      %v2876 = vpack.c.b16 %v2848, %v2847
      %v2877 = vpack.c.b16 %v2850, %v2849
      %v2878 = vpack.c.b16 %v2852, %v2851
      %v2879 = vpack.c.b16 %v2854, %v2853
      %v2880 = vpack.c.b16 %v2856, %v2855
      %2905 = vmatpush.bf16.msra.mxu0 %v2864
      %2906 = vmatpush.bf16.msra.mxu0 %v2863
      %2907 = vmatpush.bf16.msra.mxu0 %v2862
      %2908 = vmatpush.bf16.msra.mxu0 %v2861
      %2909 = vmatpush.bf16.msra.mxu0 %v2860
      %2910 = vmatpush.bf16.msra.mxu0 %v2859
      %2911 = vmatpush.bf16.msra.mxu0 %v2858
      %2912 = vmatpush.bf16.msra.mxu0 %v2857
      %2913 = vmatmul.bf16.gmra.mxu0 %v2664
      %v2914 = vpop.f32.mrf.mxu0
      %v2915 = vadd.f32 0.0, %v2914
      %v2916 = vpop.f32.mrf.mxu0
      %v2917 = vadd.f32 0.0, %v2916
      %2918 = vmatmul.bf16.gmra.mxu0 %v2667
      %v2919 = vpop.f32.mrf.mxu0
      %v2920 = vadd.f32 0.0, %v2919
      %v2921 = vpop.f32.mrf.mxu0
      %v2922 = vadd.f32 0.0, %v2921
      %2923 = vmatmul.bf16.gmra.mxu0 %v2670
      %v2924 = vpop.f32.mrf.mxu0
      %v2925 = vadd.f32 0.0, %v2924
      %v2926 = vpop.f32.mrf.mxu0
      %v2927 = vadd.f32 0.0, %v2926
      %2928 = vmatmul.bf16.gmra.mxu0 %v2673
      %v2929 = vpop.f32.mrf.mxu0
      %v2930 = vadd.f32 0.0, %v2929
      %v2931 = vpop.f32.mrf.mxu0
      %v2932 = vadd.f32 0.0, %v2931
      %2933 = vmatmul.bf16.gmra.mxu0 %v2676
      %v2934 = vpop.f32.mrf.mxu0
      %v2935 = vadd.f32 0.0, %v2934
      %v2936 = vpop.f32.mrf.mxu0
      %v2937 = vadd.f32 0.0, %v2936
      %2938 = vmatmul.bf16.gmra.mxu0 %v2679
      %v2939 = vpop.f32.mrf.mxu0
      %v2940 = vadd.f32 0.0, %v2939
      %v2941 = vpop.f32.mrf.mxu0
      %v2942 = vadd.f32 0.0, %v2941
      %2943 = vmatmul.bf16.gmra.mxu0 %v2682
      %v2944 = vpop.f32.mrf.mxu0
      %v2945 = vadd.f32 0.0, %v2944
      %v2946 = vpop.f32.mrf.mxu0
      %v2947 = vadd.f32 0.0, %v2946
      %2948 = vmatmul.bf16.gmra.mxu0 %v2685
      %v2949 = vpop.f32.mrf.mxu0
      %v2950 = vadd.f32 0.0, %v2949
      %v2951 = vpop.f32.mrf.mxu0
      %v2952 = vadd.f32 0.0, %v2951
      %2953 = vmatmul.bf16.gmra.mxu0 %v2688
      %v2954 = vpop.f32.mrf.mxu0
      %v2955 = vadd.f32 0.0, %v2954
      %v2956 = vpop.f32.mrf.mxu0
      %v2957 = vadd.f32 0.0, %v2956
      %2958 = vmatmul.bf16.gmra.mxu0 %v2691
      %v2959 = vpop.f32.mrf.mxu0
      %v2960 = vadd.f32 0.0, %v2959
      %v2961 = vpop.f32.mrf.mxu0
      %v2962 = vadd.f32 0.0, %v2961
      %2963 = vmatmul.bf16.gmra.mxu0 %v2694
      %v2964 = vpop.f32.mrf.mxu0
      %v2965 = vadd.f32 0.0, %v2964
      %v2966 = vpop.f32.mrf.mxu0
      %v2967 = vadd.f32 0.0, %v2966
      %2968 = vmatmul.bf16.gmra.mxu0 %v2697
      %v2969 = vpop.f32.mrf.mxu0
      %v2970 = vadd.f32 0.0, %v2969
      %v2971 = vpop.f32.mrf.mxu0
      %v2972 = vadd.f32 0.0, %v2971
      %2973 = vmatmul.bf16.gmra.mxu0 %v2700
      %v2974 = vpop.f32.mrf.mxu0
      %v2975 = vadd.f32 0.0, %v2974
      %v2976 = vpop.f32.mrf.mxu0
      %v2977 = vadd.f32 0.0, %v2976
      %2978 = vmatmul.bf16.gmra.mxu0 %v2703
      %v2979 = vpop.f32.mrf.mxu0
      %v2980 = vadd.f32 0.0, %v2979
      %v2981 = vpop.f32.mrf.mxu0
      %v2982 = vadd.f32 0.0, %v2981
      %2983 = vmatmul.bf16.gmra.mxu0 %v2706
      %v2984 = vpop.f32.mrf.mxu0
      %v2985 = vadd.f32 0.0, %v2984
      %v2986 = vpop.f32.mrf.mxu0
      %v2987 = vadd.f32 0.0, %v2986
      %2988 = vmatmul.bf16.gmra.mxu0 %v2709
      %v2989 = vpop.f32.mrf.mxu0
      %v2990 = vadd.f32 0.0, %v2989
      %v2991 = vpop.f32.mrf.mxu0
      %v2992 = vadd.f32 0.0, %v2991
      %2993 = vdwg.mxu0
      %2994 = vmatpush.bf16.msra.mxu0 %v2872
      %2995 = vmatpush.bf16.msra.mxu0 %v2871
      %2996 = vmatpush.bf16.msra.mxu0 %v2870
      %2997 = vmatpush.bf16.msra.mxu0 %v2869
      %2998 = vmatpush.bf16.msra.mxu0 %v2868
      %2999 = vmatpush.bf16.msra.mxu0 %v2867
      %3000 = vmatpush.bf16.msra.mxu0 %v2866
      %3001 = vmatpush.bf16.msra.mxu0 %v2865
      %3002 = vmatmul.bf16.gmra.mxu0 %v2665
      %v3003 = vpop.f32.mrf.mxu0
      %v3004 = vadd.f32 %v2915, %v3003
      %v3005 = vpop.f32.mrf.mxu0
      %v3006 = vadd.f32 %v2917, %v3005
      %3007 = vmatmul.bf16.gmra.mxu0 %v2668
      %v3008 = vpop.f32.mrf.mxu0
      %v3009 = vadd.f32 %v2920, %v3008
      %v3010 = vpop.f32.mrf.mxu0
      %v3011 = vadd.f32 %v2922, %v3010
      %3012 = vmatmul.bf16.gmra.mxu0 %v2671
      %v3013 = vpop.f32.mrf.mxu0
      %v3014 = vadd.f32 %v2925, %v3013
      %v3015 = vpop.f32.mrf.mxu0
      %v3016 = vadd.f32 %v2927, %v3015
      %3017 = vmatmul.bf16.gmra.mxu0 %v2674
      %v3018 = vpop.f32.mrf.mxu0
      %v3019 = vadd.f32 %v2930, %v3018
      %v3020 = vpop.f32.mrf.mxu0
      %v3021 = vadd.f32 %v2932, %v3020
      %3022 = vmatmul.bf16.gmra.mxu0 %v2677
      %v3023 = vpop.f32.mrf.mxu0
      %v3024 = vadd.f32 %v2935, %v3023
      %v3025 = vpop.f32.mrf.mxu0
      %v3026 = vadd.f32 %v2937, %v3025
      %3027 = vmatmul.bf16.gmra.mxu0 %v2680
      %v3028 = vpop.f32.mrf.mxu0
      %v3029 = vadd.f32 %v2940, %v3028
      %v3030 = vpop.f32.mrf.mxu0
      %v3031 = vadd.f32 %v2942, %v3030
      %3032 = vmatmul.bf16.gmra.mxu0 %v2683
      %v3033 = vpop.f32.mrf.mxu0
      %v3034 = vadd.f32 %v2945, %v3033
      %v3035 = vpop.f32.mrf.mxu0
      %v3036 = vadd.f32 %v2947, %v3035
      %3037 = vmatmul.bf16.gmra.mxu0 %v2686
      %v3038 = vpop.f32.mrf.mxu0
      %v3039 = vadd.f32 %v2950, %v3038
      %v3040 = vpop.f32.mrf.mxu0
      %v3041 = vadd.f32 %v2952, %v3040
      %3042 = vmatmul.bf16.gmra.mxu0 %v2689
      %v3043 = vpop.f32.mrf.mxu0
      %v3044 = vadd.f32 %v2955, %v3043
      %v3045 = vpop.f32.mrf.mxu0
      %v3046 = vadd.f32 %v2957, %v3045
      %3047 = vmatmul.bf16.gmra.mxu0 %v2692
      %v3048 = vpop.f32.mrf.mxu0
      %v3049 = vadd.f32 %v2960, %v3048
      %v3050 = vpop.f32.mrf.mxu0
      %v3051 = vadd.f32 %v2962, %v3050
      %3052 = vmatmul.bf16.gmra.mxu0 %v2695
      %v3053 = vpop.f32.mrf.mxu0
      %v3054 = vadd.f32 %v2965, %v3053
      %v3055 = vpop.f32.mrf.mxu0
      %v3056 = vadd.f32 %v2967, %v3055
      %3057 = vmatmul.bf16.gmra.mxu0 %v2698
      %v3058 = vpop.f32.mrf.mxu0
      %v3059 = vadd.f32 %v2970, %v3058
      %v3060 = vpop.f32.mrf.mxu0
      %v3061 = vadd.f32 %v2972, %v3060
      %3062 = vmatmul.bf16.gmra.mxu0 %v2701
      %v3063 = vpop.f32.mrf.mxu0
      %v3064 = vadd.f32 %v2975, %v3063
      %v3065 = vpop.f32.mrf.mxu0
      %v3066 = vadd.f32 %v2977, %v3065
      %3067 = vmatmul.bf16.gmra.mxu0 %v2704
      %v3068 = vpop.f32.mrf.mxu0
      %v3069 = vadd.f32 %v2980, %v3068
      %v3070 = vpop.f32.mrf.mxu0
      %v3071 = vadd.f32 %v2982, %v3070
      %3072 = vmatmul.bf16.gmra.mxu0 %v2707
      %v3073 = vpop.f32.mrf.mxu0
      %v3074 = vadd.f32 %v2985, %v3073
      %v3075 = vpop.f32.mrf.mxu0
      %v3076 = vadd.f32 %v2987, %v3075
      %3077 = vmatmul.bf16.gmra.mxu0 %v2710
      %v3078 = vpop.f32.mrf.mxu0
      %v3079 = vadd.f32 %v2990, %v3078
      %v3080 = vpop.f32.mrf.mxu0
      %v3081 = vadd.f32 %v2992, %v3080
      %3082 = vdwg.mxu0
      %3083 = vmatpush.bf16.msra.mxu0 %v2880
      %3084 = vmatpush.bf16.msra.mxu0 %v2879
      %3085 = vmatpush.bf16.msra.mxu0 %v2878
      %3086 = vmatpush.bf16.msra.mxu0 %v2877
      %3087 = vmatpush.bf16.msra.mxu0 %v2876
      %3088 = vmatpush.bf16.msra.mxu0 %v2875
      %3089 = vmatpush.bf16.msra.mxu0 %v2874
      %3090 = vmatpush.bf16.msra.mxu0 %v2873
      %3091 = vmatmul.bf16.gmra.mxu0 %v2666
      %v3092 = vpop.f32.mrf.mxu0
      %v3093 = vadd.f32 %v3004, %v3092
      %v3094 = vpop.f32.mrf.mxu0
      %v3095 = vadd.f32 %v3006, %v3094
      %3096 = vmatmul.bf16.gmra.mxu0 %v2669
      %v3097 = vpop.f32.mrf.mxu0
      %v3098 = vadd.f32 %v3009, %v3097
      %v3099 = vpop.f32.mrf.mxu0
      %v3100 = vadd.f32 %v3011, %v3099
      %3101 = vmatmul.bf16.gmra.mxu0 %v2672
      %v3102 = vpop.f32.mrf.mxu0
      %v3103 = vadd.f32 %v3014, %v3102
      %v3104 = vpop.f32.mrf.mxu0
      %v3105 = vadd.f32 %v3016, %v3104
      %3106 = vmatmul.bf16.gmra.mxu0 %v2675
      %v3107 = vpop.f32.mrf.mxu0
      %v3108 = vadd.f32 %v3019, %v3107
      %v3109 = vpop.f32.mrf.mxu0
      %v3110 = vadd.f32 %v3021, %v3109
      %3111 = vmatmul.bf16.gmra.mxu0 %v2678
      %v3112 = vpop.f32.mrf.mxu0
      %v3113 = vadd.f32 %v3024, %v3112
      %v3114 = vpop.f32.mrf.mxu0
      %v3115 = vadd.f32 %v3026, %v3114
      %3116 = vmatmul.bf16.gmra.mxu0 %v2681
      %v3117 = vpop.f32.mrf.mxu0
      %v3118 = vadd.f32 %v3029, %v3117
      %v3119 = vpop.f32.mrf.mxu0
      %v3120 = vadd.f32 %v3031, %v3119
      %3121 = vmatmul.bf16.gmra.mxu0 %v2684
      %v3122 = vpop.f32.mrf.mxu0
      %v3123 = vadd.f32 %v3034, %v3122
      %v3124 = vpop.f32.mrf.mxu0
      %v3125 = vadd.f32 %v3036, %v3124
      %3126 = vmatmul.bf16.gmra.mxu0 %v2687
      %v3127 = vpop.f32.mrf.mxu0
      %v3128 = vadd.f32 %v3039, %v3127
      %v3129 = vpop.f32.mrf.mxu0
      %v3130 = vadd.f32 %v3041, %v3129
      %3131 = vmatmul.bf16.gmra.mxu0 %v2690
      %v3132 = vpop.f32.mrf.mxu0
      %v3133 = vadd.f32 %v3044, %v3132
      %v3134 = vpop.f32.mrf.mxu0
      %v3135 = vadd.f32 %v3046, %v3134
      %3136 = vmatmul.bf16.gmra.mxu0 %v2693
      %v3137 = vpop.f32.mrf.mxu0
      %v3138 = vadd.f32 %v3049, %v3137
      %v3139 = vpop.f32.mrf.mxu0
      %v3140 = vadd.f32 %v3051, %v3139
      %3141 = vmatmul.bf16.gmra.mxu0 %v2696
      %v3142 = vpop.f32.mrf.mxu0
      %v3143 = vadd.f32 %v3054, %v3142
      %v3144 = vpop.f32.mrf.mxu0
      %v3145 = vadd.f32 %v3056, %v3144
      %3146 = vmatmul.bf16.gmra.mxu0 %v2699
      %v3147 = vpop.f32.mrf.mxu0
      %v3148 = vadd.f32 %v3059, %v3147
      %v3149 = vpop.f32.mrf.mxu0
      %v3150 = vadd.f32 %v3061, %v3149
      %3151 = vmatmul.bf16.gmra.mxu0 %v2702
      %v3152 = vpop.f32.mrf.mxu0
      %v3153 = vadd.f32 %v3064, %v3152
      %v3154 = vpop.f32.mrf.mxu0
      %v3155 = vadd.f32 %v3066, %v3154
      %3156 = vmatmul.bf16.gmra.mxu0 %v2705
      %v3157 = vpop.f32.mrf.mxu0
      %v3158 = vadd.f32 %v3069, %v3157
      %v3159 = vpop.f32.mrf.mxu0
      %v3160 = vadd.f32 %v3071, %v3159
      %3161 = vmatmul.bf16.gmra.mxu0 %v2708
      %v3162 = vpop.f32.mrf.mxu0
      %v3163 = vadd.f32 %v3074, %v3162
      %v3164 = vpop.f32.mrf.mxu0
      %v3165 = vadd.f32 %v3076, %v3164
      %3166 = vmatmul.bf16.gmra.mxu0 %v2711
      %v3167 = vpop.f32.mrf.mxu0
      %v3168 = vadd.f32 %v3079, %v3167
      %v3169 = vpop.f32.mrf.mxu0
      %v3170 = vadd.f32 %v3081, %v3169
      %3171 = vdwg.mxu0
      %v3220 = vunpack.c.l.b16 %v2520
      %v3221 = vunpack.c.l.b16 %v2521
      %v3222 = vunpack.c.l.b16 %v2522
      %v3223 = vunpack.c.l.b16 %v2523
      %v3224 = vunpack.c.l.b16 %v2524
      %v3225 = vunpack.c.l.b16 %v2525
      %v3226 = vunpack.c.l.b16 %v2526
      %v3227 = vunpack.c.l.b16 %v2527
      %v3228 = vunpack.c.l.b16 %v2528
      %v3229 = vunpack.c.l.b16 %v2529
      %v3230 = vunpack.c.l.b16 %v2530
      %v3231 = vunpack.c.l.b16 %v2531
      %v3232 = vunpack.c.l.b16 %v2532
      %v3233 = vunpack.c.l.b16 %v2533
      %v3234 = vunpack.c.l.b16 %v2534
      %v3235 = vunpack.c.l.b16 %v2535
      %v3236 = vunpack.c.l.b16 %v2536
      %v3237 = vunpack.c.l.b16 %v2537
      %v3238 = vunpack.c.l.b16 %v2538
      %v3239 = vunpack.c.l.b16 %v2539
      %v3240 = vunpack.c.l.b16 %v2540
      %v3241 = vunpack.c.l.b16 %v2541
      %v3242 = vunpack.c.l.b16 %v2542
      %v3243 = vunpack.c.l.b16 %v2543
      %v3244 = vunpack.c.l.b16 %v2544
      %v3245 = vunpack.c.l.b16 %v2545
      %v3246 = vunpack.c.l.b16 %v2546
      %v3247 = vunpack.c.l.b16 %v2547
      %v3248 = vunpack.c.l.b16 %v2548
      %v3249 = vunpack.c.l.b16 %v2549
      %v3250 = vunpack.c.l.b16 %v2550
      %v3251 = vunpack.c.l.b16 %v2551
      %v3252 = vunpack.c.l.b16 %v2552
      %v3253 = vunpack.c.l.b16 %v2553
      %v3254 = vunpack.c.l.b16 %v2554
      %v3255 = vunpack.c.l.b16 %v2555
      %v3256 = vunpack.c.l.b16 %v2556
      %v3257 = vunpack.c.l.b16 %v2557
      %v3258 = vunpack.c.l.b16 %v2558
      %v3259 = vunpack.c.l.b16 %v2559
      %v3260 = vunpack.c.l.b16 %v2560
      %v3261 = vunpack.c.l.b16 %v2561
      %v3262 = vunpack.c.l.b16 %v2562
      %v3263 = vunpack.c.l.b16 %v2563
      %v3264 = vunpack.c.l.b16 %v2564
      %v3265 = vunpack.c.l.b16 %v2565
      %v3266 = vunpack.c.l.b16 %v2566
      %v3267 = vunpack.c.l.b16 %v2567
      %v3268 = vpack.c.b16 %v3221, %v3220
      %v3269 = vpack.c.b16 %v3223, %v3222
      %v3270 = vpack.c.b16 %v3225, %v3224
      %v3271 = vpack.c.b16 %v3227, %v3226
      %v3272 = vpack.c.b16 %v3229, %v3228
      %v3273 = vpack.c.b16 %v3231, %v3230
      %v3274 = vpack.c.b16 %v3233, %v3232
      %v3275 = vpack.c.b16 %v3235, %v3234
      %v3276 = vpack.c.b16 %v3237, %v3236
      %v3277 = vpack.c.b16 %v3239, %v3238
      %v3278 = vpack.c.b16 %v3241, %v3240
      %v3279 = vpack.c.b16 %v3243, %v3242
      %v3280 = vpack.c.b16 %v3245, %v3244
      %v3281 = vpack.c.b16 %v3247, %v3246
      %v3282 = vpack.c.b16 %v3249, %v3248
      %v3283 = vpack.c.b16 %v3251, %v3250
      %v3284 = vpack.c.b16 %v3253, %v3252
      %v3285 = vpack.c.b16 %v3255, %v3254
      %v3286 = vpack.c.b16 %v3257, %v3256
      %v3287 = vpack.c.b16 %v3259, %v3258
      %v3288 = vpack.c.b16 %v3261, %v3260
      %v3289 = vpack.c.b16 %v3263, %v3262
      %v3290 = vpack.c.b16 %v3265, %v3264
      %v3291 = vpack.c.b16 %v3267, %v3266
      %3316 = vmatpush.bf16.msra.mxu0 %v3275
      %3317 = vmatpush.bf16.msra.mxu0 %v3274
      %3318 = vmatpush.bf16.msra.mxu0 %v3273
      %3319 = vmatpush.bf16.msra.mxu0 %v3272
      %3320 = vmatpush.bf16.msra.mxu0 %v3271
      %3321 = vmatpush.bf16.msra.mxu0 %v3270
      %3322 = vmatpush.bf16.msra.mxu0 %v3269
      %3323 = vmatpush.bf16.msra.mxu0 %v3268
      %3324 = vmatmul.bf16.gmra.mxu0 %v2472
      %v3325 = vpop.f32.mrf.mxu0
      %v3326 = vadd.f32 %v3093, %v3325
      %v3327 = vpop.f32.mrf.mxu0
      %v3328 = vadd.f32 %v3095, %v3327
      %3329 = vmatmul.bf16.gmra.mxu0 %v2475
      %v3330 = vpop.f32.mrf.mxu0
      %v3331 = vadd.f32 %v3098, %v3330
      %v3332 = vpop.f32.mrf.mxu0
      %v3333 = vadd.f32 %v3100, %v3332
      %3334 = vmatmul.bf16.gmra.mxu0 %v2478
      %v3335 = vpop.f32.mrf.mxu0
      %v3336 = vadd.f32 %v3103, %v3335
      %v3337 = vpop.f32.mrf.mxu0
      %v3338 = vadd.f32 %v3105, %v3337
      %3339 = vmatmul.bf16.gmra.mxu0 %v2481
      %v3340 = vpop.f32.mrf.mxu0
      %v3341 = vadd.f32 %v3108, %v3340
      %v3342 = vpop.f32.mrf.mxu0
      %v3343 = vadd.f32 %v3110, %v3342
      %3344 = vmatmul.bf16.gmra.mxu0 %v2484
      %v3345 = vpop.f32.mrf.mxu0
      %v3346 = vadd.f32 %v3113, %v3345
      %v3347 = vpop.f32.mrf.mxu0
      %v3348 = vadd.f32 %v3115, %v3347
      %3349 = vmatmul.bf16.gmra.mxu0 %v2487
      %v3350 = vpop.f32.mrf.mxu0
      %v3351 = vadd.f32 %v3118, %v3350
      %v3352 = vpop.f32.mrf.mxu0
      %v3353 = vadd.f32 %v3120, %v3352
      %3354 = vmatmul.bf16.gmra.mxu0 %v2490
      %v3355 = vpop.f32.mrf.mxu0
      %v3356 = vadd.f32 %v3123, %v3355
      %v3357 = vpop.f32.mrf.mxu0
      %v3358 = vadd.f32 %v3125, %v3357
      %3359 = vmatmul.bf16.gmra.mxu0 %v2493
      %v3360 = vpop.f32.mrf.mxu0
      %v3361 = vadd.f32 %v3128, %v3360
      %v3362 = vpop.f32.mrf.mxu0
      %v3363 = vadd.f32 %v3130, %v3362
      %3364 = vmatmul.bf16.gmra.mxu0 %v2496
      %v3365 = vpop.f32.mrf.mxu0
      %v3366 = vadd.f32 %v3133, %v3365
      %v3367 = vpop.f32.mrf.mxu0
      %v3368 = vadd.f32 %v3135, %v3367
      %3369 = vmatmul.bf16.gmra.mxu0 %v2499
      %v3370 = vpop.f32.mrf.mxu0
      %v3371 = vadd.f32 %v3138, %v3370
      %v3372 = vpop.f32.mrf.mxu0
      %v3373 = vadd.f32 %v3140, %v3372
      %3374 = vmatmul.bf16.gmra.mxu0 %v2502
      %v3375 = vpop.f32.mrf.mxu0
      %v3376 = vadd.f32 %v3143, %v3375
      %v3377 = vpop.f32.mrf.mxu0
      %v3378 = vadd.f32 %v3145, %v3377
      %3379 = vmatmul.bf16.gmra.mxu0 %v2505
      %v3380 = vpop.f32.mrf.mxu0
      %v3381 = vadd.f32 %v3148, %v3380
      %v3382 = vpop.f32.mrf.mxu0
      %v3383 = vadd.f32 %v3150, %v3382
      %3384 = vmatmul.bf16.gmra.mxu0 %v2508
      %v3385 = vpop.f32.mrf.mxu0
      %v3386 = vadd.f32 %v3153, %v3385
      %v3387 = vpop.f32.mrf.mxu0
      %v3388 = vadd.f32 %v3155, %v3387
      %3389 = vmatmul.bf16.gmra.mxu0 %v2511
      %v3390 = vpop.f32.mrf.mxu0
      %v3391 = vadd.f32 %v3158, %v3390
      %v3392 = vpop.f32.mrf.mxu0
      %v3393 = vadd.f32 %v3160, %v3392
      %3394 = vmatmul.bf16.gmra.mxu0 %v2514
      %v3395 = vpop.f32.mrf.mxu0
      %v3396 = vadd.f32 %v3163, %v3395
      %v3397 = vpop.f32.mrf.mxu0
      %v3398 = vadd.f32 %v3165, %v3397
      %3399 = vmatmul.bf16.gmra.mxu0 %v2517
      %v3400 = vpop.f32.mrf.mxu0
      %v3401 = vadd.f32 %v3168, %v3400
      %v3402 = vpop.f32.mrf.mxu0
      %v3403 = vadd.f32 %v3170, %v3402
      %3404 = vdwg.mxu0
      %3405 = vmatpush.bf16.msra.mxu0 %v3283
      %3406 = vmatpush.bf16.msra.mxu0 %v3282
      %3407 = vmatpush.bf16.msra.mxu0 %v3281
      %3408 = vmatpush.bf16.msra.mxu0 %v3280
      %3409 = vmatpush.bf16.msra.mxu0 %v3279
      %3410 = vmatpush.bf16.msra.mxu0 %v3278
      %3411 = vmatpush.bf16.msra.mxu0 %v3277
      %3412 = vmatpush.bf16.msra.mxu0 %v3276
      %3413 = vmatmul.bf16.gmra.mxu0 %v2473
      %v3414 = vpop.f32.mrf.mxu0
      %v3415 = vadd.f32 %v3326, %v3414
      %v3416 = vpop.f32.mrf.mxu0
      %v3417 = vadd.f32 %v3328, %v3416
      %3418 = vmatmul.bf16.gmra.mxu0 %v2476
      %v3419 = vpop.f32.mrf.mxu0
      %v3420 = vadd.f32 %v3331, %v3419
      %v3421 = vpop.f32.mrf.mxu0
      %v3422 = vadd.f32 %v3333, %v3421
      %3423 = vmatmul.bf16.gmra.mxu0 %v2479
      %v3424 = vpop.f32.mrf.mxu0
      %v3425 = vadd.f32 %v3336, %v3424
      %v3426 = vpop.f32.mrf.mxu0
      %v3427 = vadd.f32 %v3338, %v3426
      %3428 = vmatmul.bf16.gmra.mxu0 %v2482
      %v3429 = vpop.f32.mrf.mxu0
      %v3430 = vadd.f32 %v3341, %v3429
      %v3431 = vpop.f32.mrf.mxu0
      %v3432 = vadd.f32 %v3343, %v3431
      %3433 = vmatmul.bf16.gmra.mxu0 %v2485
      %v3434 = vpop.f32.mrf.mxu0
      %v3435 = vadd.f32 %v3346, %v3434
      %v3436 = vpop.f32.mrf.mxu0
      %v3437 = vadd.f32 %v3348, %v3436
      %3438 = vmatmul.bf16.gmra.mxu0 %v2488
      %v3439 = vpop.f32.mrf.mxu0
      %v3440 = vadd.f32 %v3351, %v3439
      %v3441 = vpop.f32.mrf.mxu0
      %v3442 = vadd.f32 %v3353, %v3441
      %3443 = vmatmul.bf16.gmra.mxu0 %v2491
      %v3444 = vpop.f32.mrf.mxu0
      %v3445 = vadd.f32 %v3356, %v3444
      %v3446 = vpop.f32.mrf.mxu0
      %v3447 = vadd.f32 %v3358, %v3446
      %3448 = vmatmul.bf16.gmra.mxu0 %v2494
      %v3449 = vpop.f32.mrf.mxu0
      %v3450 = vadd.f32 %v3361, %v3449
      %v3451 = vpop.f32.mrf.mxu0
      %v3452 = vadd.f32 %v3363, %v3451
      %3453 = vmatmul.bf16.gmra.mxu0 %v2497
      %v3454 = vpop.f32.mrf.mxu0
      %v3455 = vadd.f32 %v3366, %v3454
      %v3456 = vpop.f32.mrf.mxu0
      %v3457 = vadd.f32 %v3368, %v3456
      %3458 = vmatmul.bf16.gmra.mxu0 %v2500
      %v3459 = vpop.f32.mrf.mxu0
      %v3460 = vadd.f32 %v3371, %v3459
      %v3461 = vpop.f32.mrf.mxu0
      %v3462 = vadd.f32 %v3373, %v3461
      %3463 = vmatmul.bf16.gmra.mxu0 %v2503
      %v3464 = vpop.f32.mrf.mxu0
      %v3465 = vadd.f32 %v3376, %v3464
      %v3466 = vpop.f32.mrf.mxu0
      %v3467 = vadd.f32 %v3378, %v3466
      %3468 = vmatmul.bf16.gmra.mxu0 %v2506
      %v3469 = vpop.f32.mrf.mxu0
      %v3470 = vadd.f32 %v3381, %v3469
      %v3471 = vpop.f32.mrf.mxu0
      %v3472 = vadd.f32 %v3383, %v3471
      %3473 = vmatmul.bf16.gmra.mxu0 %v2509
      %v3474 = vpop.f32.mrf.mxu0
      %v3475 = vadd.f32 %v3386, %v3474
      %v3476 = vpop.f32.mrf.mxu0
      %v3477 = vadd.f32 %v3388, %v3476
      %3478 = vmatmul.bf16.gmra.mxu0 %v2512
      %v3479 = vpop.f32.mrf.mxu0
      %v3480 = vadd.f32 %v3391, %v3479
      %v3481 = vpop.f32.mrf.mxu0
      %v3482 = vadd.f32 %v3393, %v3481
      %3483 = vmatmul.bf16.gmra.mxu0 %v2515
      %v3484 = vpop.f32.mrf.mxu0
      %v3485 = vadd.f32 %v3396, %v3484
      %v3486 = vpop.f32.mrf.mxu0
      %v3487 = vadd.f32 %v3398, %v3486
      %3488 = vmatmul.bf16.gmra.mxu0 %v2518
      %v3489 = vpop.f32.mrf.mxu0
      %v3490 = vadd.f32 %v3401, %v3489
      %v3491 = vpop.f32.mrf.mxu0
      %v3492 = vadd.f32 %v3403, %v3491
      %3493 = vdwg.mxu0
      %3494 = vmatpush.bf16.msra.mxu0 %v3291
      %3495 = vmatpush.bf16.msra.mxu0 %v3290
      %3496 = vmatpush.bf16.msra.mxu0 %v3289
      %3497 = vmatpush.bf16.msra.mxu0 %v3288
      %3498 = vmatpush.bf16.msra.mxu0 %v3287
      %3499 = vmatpush.bf16.msra.mxu0 %v3286
      %3500 = vmatpush.bf16.msra.mxu0 %v3285
      %3501 = vmatpush.bf16.msra.mxu0 %v3284
      %3502 = vmatmul.bf16.gmra.mxu0 %v2474
      %v3503 = vpop.f32.mrf.mxu0
      %v3504 = vadd.f32 %v3415, %v3503
      %v3505 = vpop.f32.mrf.mxu0
      %v3506 = vadd.f32 %v3417, %v3505
      %3507 = vmatmul.bf16.gmra.mxu0 %v2477
      %v3508 = vpop.f32.mrf.mxu0
      %v3509 = vadd.f32 %v3420, %v3508
      %v3510 = vpop.f32.mrf.mxu0
      %v3511 = vadd.f32 %v3422, %v3510
      %3512 = vmatmul.bf16.gmra.mxu0 %v2480
      %v3513 = vpop.f32.mrf.mxu0
      %v3514 = vadd.f32 %v3425, %v3513
      %v3515 = vpop.f32.mrf.mxu0
      %v3516 = vadd.f32 %v3427, %v3515
      %3517 = vmatmul.bf16.gmra.mxu0 %v2483
      %v3518 = vpop.f32.mrf.mxu0
      %v3519 = vadd.f32 %v3430, %v3518
      %v3520 = vpop.f32.mrf.mxu0
      %v3521 = vadd.f32 %v3432, %v3520
      %3522 = vmatmul.bf16.gmra.mxu0 %v2486
      %v3523 = vpop.f32.mrf.mxu0
      %v3524 = vadd.f32 %v3435, %v3523
      %v3525 = vpop.f32.mrf.mxu0
      %v3526 = vadd.f32 %v3437, %v3525
      %3527 = vmatmul.bf16.gmra.mxu0 %v2489
      %v3528 = vpop.f32.mrf.mxu0
      %v3529 = vadd.f32 %v3440, %v3528
      %v3530 = vpop.f32.mrf.mxu0
      %v3531 = vadd.f32 %v3442, %v3530
      %3532 = vmatmul.bf16.gmra.mxu0 %v2492
      %v3533 = vpop.f32.mrf.mxu0
      %v3534 = vadd.f32 %v3445, %v3533
      %v3535 = vpop.f32.mrf.mxu0
      %v3536 = vadd.f32 %v3447, %v3535
      %3537 = vmatmul.bf16.gmra.mxu0 %v2495
      %v3538 = vpop.f32.mrf.mxu0
      %v3539 = vadd.f32 %v3450, %v3538
      %v3540 = vpop.f32.mrf.mxu0
      %v3541 = vadd.f32 %v3452, %v3540
      %3542 = vmatmul.bf16.gmra.mxu0 %v2498
      %v3543 = vpop.f32.mrf.mxu0
      %v3544 = vadd.f32 %v3455, %v3543
      %v3545 = vpop.f32.mrf.mxu0
      %v3546 = vadd.f32 %v3457, %v3545
      %3547 = vmatmul.bf16.gmra.mxu0 %v2501
      %v3548 = vpop.f32.mrf.mxu0
      %v3549 = vadd.f32 %v3460, %v3548
      %v3550 = vpop.f32.mrf.mxu0
      %v3551 = vadd.f32 %v3462, %v3550
      %3552 = vmatmul.bf16.gmra.mxu0 %v2504
      %v3553 = vpop.f32.mrf.mxu0
      %v3554 = vadd.f32 %v3465, %v3553
      %v3555 = vpop.f32.mrf.mxu0
      %v3556 = vadd.f32 %v3467, %v3555
      %3557 = vmatmul.bf16.gmra.mxu0 %v2507
      %v3558 = vpop.f32.mrf.mxu0
      %v3559 = vadd.f32 %v3470, %v3558
      %v3560 = vpop.f32.mrf.mxu0
      %v3561 = vadd.f32 %v3472, %v3560
      %3562 = vmatmul.bf16.gmra.mxu0 %v2510
      %v3563 = vpop.f32.mrf.mxu0
      %v3564 = vadd.f32 %v3475, %v3563
      %v3565 = vpop.f32.mrf.mxu0
      %v3566 = vadd.f32 %v3477, %v3565
      %3567 = vmatmul.bf16.gmra.mxu0 %v2513
      %v3568 = vpop.f32.mrf.mxu0
      %v3569 = vadd.f32 %v3480, %v3568
      %v3570 = vpop.f32.mrf.mxu0
      %v3571 = vadd.f32 %v3482, %v3570
      %3572 = vmatmul.bf16.gmra.mxu0 %v2516
      %v3573 = vpop.f32.mrf.mxu0
      %v3574 = vadd.f32 %v3485, %v3573
      %v3575 = vpop.f32.mrf.mxu0
      %v3576 = vadd.f32 %v3487, %v3575
      %3577 = vmatmul.bf16.gmra.mxu0 %v2519
      %v3578 = vpop.f32.mrf.mxu0
      %v3579 = vadd.f32 %v3490, %v3578
      %v3580 = vpop.f32.mrf.mxu0
      %v3581 = vadd.f32 %v3492, %v3580
      %3582 = vdwg.mxu0
      %s3583 = scalar_lea.vmem [#allocation3], 48
      %v3584 = vld [vmem:[%s3583] sm:$0xff]
      %v3585 = vld [vmem:[%s3583 + $0x8] sm:$0xff]
      %v3586 = vld [vmem:[%s3583 + $0x18] sm:$0xff]
      %v3587 = vld [vmem:[%s3583 + $0x20] sm:$0xff]
      %v3588 = vld [vmem:[%s3583 + $0x30] sm:$0xff]
      %v3589 = vld [vmem:[%s3583 + $0x38] sm:$0xff]
      %v3590 = vld [vmem:[%s3583 + $0x48] sm:$0xff]
      %v3591 = vld [vmem:[%s3583 + $0x50] sm:$0xff]
      %v3592 = vld [vmem:[%s3583 + $0x60] sm:$0xff]
      %v3593 = vld [vmem:[%s3583 + $0x68] sm:$0xff]
      %v3594 = vld [vmem:[%s3583 + $0x78] sm:$0xff]
      %v3595 = vld [vmem:[%s3583 + $0x80] sm:$0xff]
      %v3596 = vld [vmem:[%s3583 + $0x90] sm:$0xff]
      %v3597 = vld [vmem:[%s3583 + $0x98] sm:$0xff]
      %v3598 = vld [vmem:[%s3583 + $0xa8] sm:$0xff]
      %v3599 = vld [vmem:[%s3583 + $0xb0] sm:$0xff]
      %v3600 = vld [vmem:[%s3583 + $0xc0] sm:$0xff]
      %v3601 = vld [vmem:[%s3583 + $0xc8] sm:$0xff]
      %v3602 = vld [vmem:[%s3583 + $0xd8] sm:$0xff]
      %v3603 = vld [vmem:[%s3583 + $0xe0] sm:$0xff]
      %v3604 = vld [vmem:[%s3583 + $0xf0] sm:$0xff]
      %v3605 = vld [vmem:[%s3583 + $0xf8] sm:$0xff]
      %v3606 = vld [vmem:[%s3583 + $0x108] sm:$0xff]
      %v3607 = vld [vmem:[%s3583 + $0x110] sm:$0xff]
      %v3608 = vld [vmem:[%s3583 + $0x120] sm:$0xff]
      %v3609 = vld [vmem:[%s3583 + $0x128] sm:$0xff]
      %v3610 = vld [vmem:[%s3583 + $0x138] sm:$0xff]
      %v3611 = vld [vmem:[%s3583 + $0x140] sm:$0xff]
      %v3612 = vld [vmem:[%s3583 + $0x150] sm:$0xff]
      %v3613 = vld [vmem:[%s3583 + $0x158] sm:$0xff]
      %v3614 = vld [vmem:[%s3583 + $0x168] sm:$0xff]
      %v3615 = vld [vmem:[%s3583 + $0x170] sm:$0xff]
      %v3616 = vld [vmem:[%s3583 + $0x1] sm:$0xff]
      %v3617 = vld [vmem:[%s3583 + $0x9] sm:$0xff]
      %v3618 = vld [vmem:[%s3583 + $0x19] sm:$0xff]
      %v3619 = vld [vmem:[%s3583 + $0x21] sm:$0xff]
      %v3620 = vld [vmem:[%s3583 + $0x31] sm:$0xff]
      %v3621 = vld [vmem:[%s3583 + $0x39] sm:$0xff]
      %v3622 = vld [vmem:[%s3583 + $0x49] sm:$0xff]
      %v3623 = vld [vmem:[%s3583 + $0x51] sm:$0xff]
      %v3624 = vld [vmem:[%s3583 + $0x61] sm:$0xff]
      %v3625 = vld [vmem:[%s3583 + $0x69] sm:$0xff]
      %v3626 = vld [vmem:[%s3583 + $0x79] sm:$0xff]
      %v3627 = vld [vmem:[%s3583 + $0x81] sm:$0xff]
      %v3628 = vld [vmem:[%s3583 + $0x91] sm:$0xff]
      %v3629 = vld [vmem:[%s3583 + $0x99] sm:$0xff]
      %v3630 = vld [vmem:[%s3583 + $0xa9] sm:$0xff]
      %v3631 = vld [vmem:[%s3583 + $0xb1] sm:$0xff]
      %v3632 = vld [vmem:[%s3583 + $0xc1] sm:$0xff]
      %v3633 = vld [vmem:[%s3583 + $0xc9] sm:$0xff]
      %v3634 = vld [vmem:[%s3583 + $0xd9] sm:$0xff]
      %v3635 = vld [vmem:[%s3583 + $0xe1] sm:$0xff]
      %v3636 = vld [vmem:[%s3583 + $0xf1] sm:$0xff]
      %v3637 = vld [vmem:[%s3583 + $0xf9] sm:$0xff]
      %v3638 = vld [vmem:[%s3583 + $0x109] sm:$0xff]
      %v3639 = vld [vmem:[%s3583 + $0x111] sm:$0xff]
      %v3640 = vld [vmem:[%s3583 + $0x121] sm:$0xff]
      %v3641 = vld [vmem:[%s3583 + $0x129] sm:$0xff]
      %v3642 = vld [vmem:[%s3583 + $0x139] sm:$0xff]
      %v3643 = vld [vmem:[%s3583 + $0x141] sm:$0xff]
      %v3644 = vld [vmem:[%s3583 + $0x151] sm:$0xff]
      %v3645 = vld [vmem:[%s3583 + $0x159] sm:$0xff]
      %v3646 = vld [vmem:[%s3583 + $0x169] sm:$0xff]
      %v3647 = vld [vmem:[%s3583 + $0x171] sm:$0xff]
      %v3648 = vld [vmem:[%s3583 + $0x2] sm:$0xff]
      %v3649 = vld [vmem:[%s3583 + $0xa] sm:$0xff]
      %v3650 = vld [vmem:[%s3583 + $0x1a] sm:$0xff]
      %v3651 = vld [vmem:[%s3583 + $0x22] sm:$0xff]
      %v3652 = vld [vmem:[%s3583 + $0x32] sm:$0xff]
      %v3653 = vld [vmem:[%s3583 + $0x3a] sm:$0xff]
      %v3654 = vld [vmem:[%s3583 + $0x4a] sm:$0xff]
      %v3655 = vld [vmem:[%s3583 + $0x52] sm:$0xff]
      %v3656 = vld [vmem:[%s3583 + $0x62] sm:$0xff]
      %v3657 = vld [vmem:[%s3583 + $0x6a] sm:$0xff]
      %v3658 = vld [vmem:[%s3583 + $0x7a] sm:$0xff]
      %v3659 = vld [vmem:[%s3583 + $0x82] sm:$0xff]
      %v3660 = vld [vmem:[%s3583 + $0x92] sm:$0xff]
      %v3661 = vld [vmem:[%s3583 + $0x9a] sm:$0xff]
      %v3662 = vld [vmem:[%s3583 + $0xaa] sm:$0xff]
      %v3663 = vld [vmem:[%s3583 + $0xb2] sm:$0xff]
      %v3664 = vld [vmem:[%s3583 + $0xc2] sm:$0xff]
      %v3665 = vld [vmem:[%s3583 + $0xca] sm:$0xff]
      %v3666 = vld [vmem:[%s3583 + $0xda] sm:$0xff]
      %v3667 = vld [vmem:[%s3583 + $0xe2] sm:$0xff]
      %v3668 = vld [vmem:[%s3583 + $0xf2] sm:$0xff]
      %v3669 = vld [vmem:[%s3583 + $0xfa] sm:$0xff]
      %v3670 = vld [vmem:[%s3583 + $0x10a] sm:$0xff]
      %v3671 = vld [vmem:[%s3583 + $0x112] sm:$0xff]
      %v3672 = vld [vmem:[%s3583 + $0x122] sm:$0xff]
      %v3673 = vld [vmem:[%s3583 + $0x12a] sm:$0xff]
      %v3674 = vld [vmem:[%s3583 + $0x13a] sm:$0xff]
      %v3675 = vld [vmem:[%s3583 + $0x142] sm:$0xff]
      %v3676 = vld [vmem:[%s3583 + $0x152] sm:$0xff]
      %v3677 = vld [vmem:[%s3583 + $0x15a] sm:$0xff]
      %v3678 = vld [vmem:[%s3583 + $0x16a] sm:$0xff]
      %v3679 = vld [vmem:[%s3583 + $0x172] sm:$0xff]
      %v3680 = vpack.c.bf16 %v3585, %v3584
      %v3681 = vpack.c.bf16 %v3617, %v3616
      %v3682 = vpack.c.bf16 %v3649, %v3648
      %v3683 = vpack.c.bf16 %v3587, %v3586
      %v3684 = vpack.c.bf16 %v3619, %v3618
      %v3685 = vpack.c.bf16 %v3651, %v3650
      %v3686 = vpack.c.bf16 %v3589, %v3588
      %v3687 = vpack.c.bf16 %v3621, %v3620
      %v3688 = vpack.c.bf16 %v3653, %v3652
      %v3689 = vpack.c.bf16 %v3591, %v3590
      %v3690 = vpack.c.bf16 %v3623, %v3622
      %v3691 = vpack.c.bf16 %v3655, %v3654
      %v3692 = vpack.c.bf16 %v3593, %v3592
      %v3693 = vpack.c.bf16 %v3625, %v3624
      %v3694 = vpack.c.bf16 %v3657, %v3656
      %v3695 = vpack.c.bf16 %v3595, %v3594
      %v3696 = vpack.c.bf16 %v3627, %v3626
      %v3697 = vpack.c.bf16 %v3659, %v3658
      %v3698 = vpack.c.bf16 %v3597, %v3596
      %v3699 = vpack.c.bf16 %v3629, %v3628
      %v3700 = vpack.c.bf16 %v3661, %v3660
      %v3701 = vpack.c.bf16 %v3599, %v3598
      %v3702 = vpack.c.bf16 %v3631, %v3630
      %v3703 = vpack.c.bf16 %v3663, %v3662
      %v3704 = vpack.c.bf16 %v3601, %v3600
      %v3705 = vpack.c.bf16 %v3633, %v3632
      %v3706 = vpack.c.bf16 %v3665, %v3664
      %v3707 = vpack.c.bf16 %v3603, %v3602
      %v3708 = vpack.c.bf16 %v3635, %v3634
      %v3709 = vpack.c.bf16 %v3667, %v3666
      %v3710 = vpack.c.bf16 %v3605, %v3604
      %v3711 = vpack.c.bf16 %v3637, %v3636
      %v3712 = vpack.c.bf16 %v3669, %v3668
      %v3713 = vpack.c.bf16 %v3607, %v3606
      %v3714 = vpack.c.bf16 %v3639, %v3638
      %v3715 = vpack.c.bf16 %v3671, %v3670
      %v3716 = vpack.c.bf16 %v3609, %v3608
      %v3717 = vpack.c.bf16 %v3641, %v3640
      %v3718 = vpack.c.bf16 %v3673, %v3672
      %v3719 = vpack.c.bf16 %v3611, %v3610
      %v3720 = vpack.c.bf16 %v3643, %v3642
      %v3721 = vpack.c.bf16 %v3675, %v3674
      %v3722 = vpack.c.bf16 %v3613, %v3612
      %v3723 = vpack.c.bf16 %v3645, %v3644
      %v3724 = vpack.c.bf16 %v3677, %v3676
      %v3725 = vpack.c.bf16 %v3615, %v3614
      %v3726 = vpack.c.bf16 %v3647, %v3646
      %v3727 = vpack.c.bf16 %v3679, %v3678
      %s3728 = scalar_lea.vmem %s3, 384
      %v3729 = vld [vmem:[%s3728] sm:$0xf]
      %v3730 = vld [vmem:[%s3728 + $0x4] sm:$0xf]
      %v3731 = vld [vmem:[%s3728 + $0x8] sm:$0xf]
      %v3732 = vld [vmem:[%s3728 + $0xc] sm:$0xf]
      %v3733 = vld [vmem:[%s3728 + $0x10] sm:$0xf]
      %v3734 = vld [vmem:[%s3728 + $0x14] sm:$0xf]
      %v3735 = vld [vmem:[%s3728 + $0x18] sm:$0xf]
      %v3736 = vld [vmem:[%s3728 + $0x1c] sm:$0xf]
      %v3737 = vld [vmem:[%s3728 + $0x20] sm:$0xf]
      %v3738 = vld [vmem:[%s3728 + $0x24] sm:$0xf]
      %v3739 = vld [vmem:[%s3728 + $0x28] sm:$0xf]
      %v3740 = vld [vmem:[%s3728 + $0x2c] sm:$0xf]
      %v3741 = vld [vmem:[%s3728 + $0x30] sm:$0xf]
      %v3742 = vld [vmem:[%s3728 + $0x34] sm:$0xf]
      %v3743 = vld [vmem:[%s3728 + $0x38] sm:$0xf]
      %v3744 = vld [vmem:[%s3728 + $0x3c] sm:$0xf]
      %v3745 = vld [vmem:[%s3728 + $0x40] sm:$0xf]
      %v3746 = vld [vmem:[%s3728 + $0x44] sm:$0xf]
      %v3747 = vld [vmem:[%s3728 + $0x48] sm:$0xf]
      %v3748 = vld [vmem:[%s3728 + $0x4c] sm:$0xf]
      %v3749 = vld [vmem:[%s3728 + $0x50] sm:$0xf]
      %v3750 = vld [vmem:[%s3728 + $0x54] sm:$0xf]
      %v3751 = vld [vmem:[%s3728 + $0x58] sm:$0xf]
      %v3752 = vld [vmem:[%s3728 + $0x5c] sm:$0xf]
      %v3753 = vld [vmem:[%s3728 + $0x60] sm:$0xf]
      %v3754 = vld [vmem:[%s3728 + $0x64] sm:$0xf]
      %v3755 = vld [vmem:[%s3728 + $0x68] sm:$0xf]
      %v3756 = vld [vmem:[%s3728 + $0x6c] sm:$0xf]
      %v3757 = vld [vmem:[%s3728 + $0x70] sm:$0xf]
      %v3758 = vld [vmem:[%s3728 + $0x74] sm:$0xf]
      %v3759 = vld [vmem:[%s3728 + $0x78] sm:$0xf]
      %v3760 = vld [vmem:[%s3728 + $0x7c] sm:$0xf]
      %v3761 = vld [vmem:[%s3728 + $0x80] sm:$0xf]
      %v3762 = vld [vmem:[%s3728 + $0x84] sm:$0xf]
      %v3763 = vld [vmem:[%s3728 + $0x88] sm:$0xf]
      %v3764 = vld [vmem:[%s3728 + $0x8c] sm:$0xf]
      %v3765 = vld [vmem:[%s3728 + $0x90] sm:$0xf]
      %v3766 = vld [vmem:[%s3728 + $0x94] sm:$0xf]
      %v3767 = vld [vmem:[%s3728 + $0x98] sm:$0xf]
      %v3768 = vld [vmem:[%s3728 + $0x9c] sm:$0xf]
      %v3769 = vld [vmem:[%s3728 + $0xa0] sm:$0xf]
      %v3770 = vld [vmem:[%s3728 + $0xa4] sm:$0xf]
      %v3771 = vld [vmem:[%s3728 + $0xa8] sm:$0xf]
      %v3772 = vld [vmem:[%s3728 + $0xac] sm:$0xf]
      %v3773 = vld [vmem:[%s3728 + $0xb0] sm:$0xf]
      %v3774 = vld [vmem:[%s3728 + $0xb4] sm:$0xf]
      %v3775 = vld [vmem:[%s3728 + $0xb8] sm:$0xf]
      %v3776 = vld [vmem:[%s3728 + $0xbc] sm:$0xf]
      %v3825 = vunpack.c.l.b16 %v3729
      %v3826 = vunpack.c.l.b16 %v3730
      %v3827 = vunpack.c.l.b16 %v3731
      %v3828 = vunpack.c.l.b16 %v3732
      %v3829 = vunpack.c.l.b16 %v3733
      %v3830 = vunpack.c.l.b16 %v3734
      %v3831 = vunpack.c.l.b16 %v3735
      %v3832 = vunpack.c.l.b16 %v3736
      %v3833 = vunpack.c.l.b16 %v3737
      %v3834 = vunpack.c.l.b16 %v3738
      %v3835 = vunpack.c.l.b16 %v3739
      %v3836 = vunpack.c.l.b16 %v3740
      %v3837 = vunpack.c.l.b16 %v3741
      %v3838 = vunpack.c.l.b16 %v3742
      %v3839 = vunpack.c.l.b16 %v3743
      %v3840 = vunpack.c.l.b16 %v3744
      %v3841 = vunpack.c.l.b16 %v3745
      %v3842 = vunpack.c.l.b16 %v3746
      %v3843 = vunpack.c.l.b16 %v3747
      %v3844 = vunpack.c.l.b16 %v3748
      %v3845 = vunpack.c.l.b16 %v3749
      %v3846 = vunpack.c.l.b16 %v3750
      %v3847 = vunpack.c.l.b16 %v3751
      %v3848 = vunpack.c.l.b16 %v3752
      %v3849 = vunpack.c.l.b16 %v3753
      %v3850 = vunpack.c.l.b16 %v3754
      %v3851 = vunpack.c.l.b16 %v3755
      %v3852 = vunpack.c.l.b16 %v3756
      %v3853 = vunpack.c.l.b16 %v3757
      %v3854 = vunpack.c.l.b16 %v3758
      %v3855 = vunpack.c.l.b16 %v3759
      %v3856 = vunpack.c.l.b16 %v3760
      %v3857 = vunpack.c.l.b16 %v3761
      %v3858 = vunpack.c.l.b16 %v3762
      %v3859 = vunpack.c.l.b16 %v3763
      %v3860 = vunpack.c.l.b16 %v3764
      %v3861 = vunpack.c.l.b16 %v3765
      %v3862 = vunpack.c.l.b16 %v3766
      %v3863 = vunpack.c.l.b16 %v3767
      %v3864 = vunpack.c.l.b16 %v3768
      %v3865 = vunpack.c.l.b16 %v3769
      %v3866 = vunpack.c.l.b16 %v3770
      %v3867 = vunpack.c.l.b16 %v3771
      %v3868 = vunpack.c.l.b16 %v3772
      %v3869 = vunpack.c.l.b16 %v3773
      %v3870 = vunpack.c.l.b16 %v3774
      %v3871 = vunpack.c.l.b16 %v3775
      %v3872 = vunpack.c.l.b16 %v3776
      %v3873 = vpack.c.b16 %v3826, %v3825
      %v3874 = vpack.c.b16 %v3828, %v3827
      %v3875 = vpack.c.b16 %v3830, %v3829
      %v3876 = vpack.c.b16 %v3832, %v3831
      %v3877 = vpack.c.b16 %v3834, %v3833
      %v3878 = vpack.c.b16 %v3836, %v3835
      %v3879 = vpack.c.b16 %v3838, %v3837
      %v3880 = vpack.c.b16 %v3840, %v3839
      %v3881 = vpack.c.b16 %v3842, %v3841
      %v3882 = vpack.c.b16 %v3844, %v3843
      %v3883 = vpack.c.b16 %v3846, %v3845
      %v3884 = vpack.c.b16 %v3848, %v3847
      %v3885 = vpack.c.b16 %v3850, %v3849
      %v3886 = vpack.c.b16 %v3852, %v3851
      %v3887 = vpack.c.b16 %v3854, %v3853
      %v3888 = vpack.c.b16 %v3856, %v3855
      %v3889 = vpack.c.b16 %v3858, %v3857
      %v3890 = vpack.c.b16 %v3860, %v3859
      %v3891 = vpack.c.b16 %v3862, %v3861
      %v3892 = vpack.c.b16 %v3864, %v3863
      %v3893 = vpack.c.b16 %v3866, %v3865
      %v3894 = vpack.c.b16 %v3868, %v3867
      %v3895 = vpack.c.b16 %v3870, %v3869
      %v3896 = vpack.c.b16 %v3872, %v3871
      %3921 = vmatpush.bf16.msra.mxu0 %v3880
      %3922 = vmatpush.bf16.msra.mxu0 %v3879
      %3923 = vmatpush.bf16.msra.mxu0 %v3878
      %3924 = vmatpush.bf16.msra.mxu0 %v3877
      %3925 = vmatpush.bf16.msra.mxu0 %v3876
      %3926 = vmatpush.bf16.msra.mxu0 %v3875
      %3927 = vmatpush.bf16.msra.mxu0 %v3874
      %3928 = vmatpush.bf16.msra.mxu0 %v3873
      %3929 = vmatmul.bf16.gmra.mxu0 %v3680
      %v3930 = vpop.f32.mrf.mxu0
      %v3931 = vadd.f32 0.0, %v3930
      %v3932 = vpop.f32.mrf.mxu0
      %v3933 = vadd.f32 0.0, %v3932
      %3934 = vmatmul.bf16.gmra.mxu0 %v3683
      %v3935 = vpop.f32.mrf.mxu0
      %v3936 = vadd.f32 0.0, %v3935
      %v3937 = vpop.f32.mrf.mxu0
      %v3938 = vadd.f32 0.0, %v3937
      %3939 = vmatmul.bf16.gmra.mxu0 %v3686
      %v3940 = vpop.f32.mrf.mxu0
      %v3941 = vadd.f32 0.0, %v3940
      %v3942 = vpop.f32.mrf.mxu0
      %v3943 = vadd.f32 0.0, %v3942
      %3944 = vmatmul.bf16.gmra.mxu0 %v3689
      %v3945 = vpop.f32.mrf.mxu0
      %v3946 = vadd.f32 0.0, %v3945
      %v3947 = vpop.f32.mrf.mxu0
      %v3948 = vadd.f32 0.0, %v3947
      %3949 = vmatmul.bf16.gmra.mxu0 %v3692
      %v3950 = vpop.f32.mrf.mxu0
      %v3951 = vadd.f32 0.0, %v3950
      %v3952 = vpop.f32.mrf.mxu0
      %v3953 = vadd.f32 0.0, %v3952
      %3954 = vmatmul.bf16.gmra.mxu0 %v3695
      %v3955 = vpop.f32.mrf.mxu0
      %v3956 = vadd.f32 0.0, %v3955
      %v3957 = vpop.f32.mrf.mxu0
      %v3958 = vadd.f32 0.0, %v3957
      %3959 = vmatmul.bf16.gmra.mxu0 %v3698
      %v3960 = vpop.f32.mrf.mxu0
      %v3961 = vadd.f32 0.0, %v3960
      %v3962 = vpop.f32.mrf.mxu0
      %v3963 = vadd.f32 0.0, %v3962
      %3964 = vmatmul.bf16.gmra.mxu0 %v3701
      %v3965 = vpop.f32.mrf.mxu0
      %v3966 = vadd.f32 0.0, %v3965
      %v3967 = vpop.f32.mrf.mxu0
      %v3968 = vadd.f32 0.0, %v3967
      %3969 = vmatmul.bf16.gmra.mxu0 %v3704
      %v3970 = vpop.f32.mrf.mxu0
      %v3971 = vadd.f32 0.0, %v3970
      %v3972 = vpop.f32.mrf.mxu0
      %v3973 = vadd.f32 0.0, %v3972
      %3974 = vmatmul.bf16.gmra.mxu0 %v3707
      %v3975 = vpop.f32.mrf.mxu0
      %v3976 = vadd.f32 0.0, %v3975
      %v3977 = vpop.f32.mrf.mxu0
      %v3978 = vadd.f32 0.0, %v3977
      %3979 = vmatmul.bf16.gmra.mxu0 %v3710
      %v3980 = vpop.f32.mrf.mxu0
      %v3981 = vadd.f32 0.0, %v3980
      %v3982 = vpop.f32.mrf.mxu0
      %v3983 = vadd.f32 0.0, %v3982
      %3984 = vmatmul.bf16.gmra.mxu0 %v3713
      %v3985 = vpop.f32.mrf.mxu0
      %v3986 = vadd.f32 0.0, %v3985
      %v3987 = vpop.f32.mrf.mxu0
      %v3988 = vadd.f32 0.0, %v3987
      %3989 = vmatmul.bf16.gmra.mxu0 %v3716
      %v3990 = vpop.f32.mrf.mxu0
      %v3991 = vadd.f32 0.0, %v3990
      %v3992 = vpop.f32.mrf.mxu0
      %v3993 = vadd.f32 0.0, %v3992
      %3994 = vmatmul.bf16.gmra.mxu0 %v3719
      %v3995 = vpop.f32.mrf.mxu0
      %v3996 = vadd.f32 0.0, %v3995
      %v3997 = vpop.f32.mrf.mxu0
      %v3998 = vadd.f32 0.0, %v3997
      %3999 = vmatmul.bf16.gmra.mxu0 %v3722
      %v4000 = vpop.f32.mrf.mxu0
      %v4001 = vadd.f32 0.0, %v4000
      %v4002 = vpop.f32.mrf.mxu0
      %v4003 = vadd.f32 0.0, %v4002
      %4004 = vmatmul.bf16.gmra.mxu0 %v3725
      %v4005 = vpop.f32.mrf.mxu0
      %v4006 = vadd.f32 0.0, %v4005
      %v4007 = vpop.f32.mrf.mxu0
      %v4008 = vadd.f32 0.0, %v4007
      %4009 = vdwg.mxu0
      %4010 = vmatpush.bf16.msra.mxu0 %v3888
      %4011 = vmatpush.bf16.msra.mxu0 %v3887
      %4012 = vmatpush.bf16.msra.mxu0 %v3886
      %4013 = vmatpush.bf16.msra.mxu0 %v3885
      %4014 = vmatpush.bf16.msra.mxu0 %v3884
      %4015 = vmatpush.bf16.msra.mxu0 %v3883
      %4016 = vmatpush.bf16.msra.mxu0 %v3882
      %4017 = vmatpush.bf16.msra.mxu0 %v3881
      %4018 = vmatmul.bf16.gmra.mxu0 %v3681
      %v4019 = vpop.f32.mrf.mxu0
      %v4020 = vadd.f32 %v3931, %v4019
      %v4021 = vpop.f32.mrf.mxu0
      %v4022 = vadd.f32 %v3933, %v4021
      %4023 = vmatmul.bf16.gmra.mxu0 %v3684
      %v4024 = vpop.f32.mrf.mxu0
      %v4025 = vadd.f32 %v3936, %v4024
      %v4026 = vpop.f32.mrf.mxu0
      %v4027 = vadd.f32 %v3938, %v4026
      %4028 = vmatmul.bf16.gmra.mxu0 %v3687
      %v4029 = vpop.f32.mrf.mxu0
      %v4030 = vadd.f32 %v3941, %v4029
      %v4031 = vpop.f32.mrf.mxu0
      %v4032 = vadd.f32 %v3943, %v4031
      %4033 = vmatmul.bf16.gmra.mxu0 %v3690
      %v4034 = vpop.f32.mrf.mxu0
      %v4035 = vadd.f32 %v3946, %v4034
      %v4036 = vpop.f32.mrf.mxu0
      %v4037 = vadd.f32 %v3948, %v4036
      %4038 = vmatmul.bf16.gmra.mxu0 %v3693
      %v4039 = vpop.f32.mrf.mxu0
      %v4040 = vadd.f32 %v3951, %v4039
      %v4041 = vpop.f32.mrf.mxu0
      %v4042 = vadd.f32 %v3953, %v4041
      %4043 = vmatmul.bf16.gmra.mxu0 %v3696
      %v4044 = vpop.f32.mrf.mxu0
      %v4045 = vadd.f32 %v3956, %v4044
      %v4046 = vpop.f32.mrf.mxu0
      %v4047 = vadd.f32 %v3958, %v4046
      %4048 = vmatmul.bf16.gmra.mxu0 %v3699
      %v4049 = vpop.f32.mrf.mxu0
      %v4050 = vadd.f32 %v3961, %v4049
      %v4051 = vpop.f32.mrf.mxu0
      %v4052 = vadd.f32 %v3963, %v4051
      %4053 = vmatmul.bf16.gmra.mxu0 %v3702
      %v4054 = vpop.f32.mrf.mxu0
      %v4055 = vadd.f32 %v3966, %v4054
      %v4056 = vpop.f32.mrf.mxu0
      %v4057 = vadd.f32 %v3968, %v4056
      %4058 = vmatmul.bf16.gmra.mxu0 %v3705
      %v4059 = vpop.f32.mrf.mxu0
      %v4060 = vadd.f32 %v3971, %v4059
      %v4061 = vpop.f32.mrf.mxu0
      %v4062 = vadd.f32 %v3973, %v4061
      %4063 = vmatmul.bf16.gmra.mxu0 %v3708
      %v4064 = vpop.f32.mrf.mxu0
      %v4065 = vadd.f32 %v3976, %v4064
      %v4066 = vpop.f32.mrf.mxu0
      %v4067 = vadd.f32 %v3978, %v4066
      %4068 = vmatmul.bf16.gmra.mxu0 %v3711
      %v4069 = vpop.f32.mrf.mxu0
      %v4070 = vadd.f32 %v3981, %v4069
      %v4071 = vpop.f32.mrf.mxu0
      %v4072 = vadd.f32 %v3983, %v4071
      %4073 = vmatmul.bf16.gmra.mxu0 %v3714
      %v4074 = vpop.f32.mrf.mxu0
      %v4075 = vadd.f32 %v3986, %v4074
      %v4076 = vpop.f32.mrf.mxu0
      %v4077 = vadd.f32 %v3988, %v4076
      %4078 = vmatmul.bf16.gmra.mxu0 %v3717
      %v4079 = vpop.f32.mrf.mxu0
      %v4080 = vadd.f32 %v3991, %v4079
      %v4081 = vpop.f32.mrf.mxu0
      %v4082 = vadd.f32 %v3993, %v4081
      %4083 = vmatmul.bf16.gmra.mxu0 %v3720
      %v4084 = vpop.f32.mrf.mxu0
      %v4085 = vadd.f32 %v3996, %v4084
      %v4086 = vpop.f32.mrf.mxu0
      %v4087 = vadd.f32 %v3998, %v4086
      %4088 = vmatmul.bf16.gmra.mxu0 %v3723
      %v4089 = vpop.f32.mrf.mxu0
      %v4090 = vadd.f32 %v4001, %v4089
      %v4091 = vpop.f32.mrf.mxu0
      %v4092 = vadd.f32 %v4003, %v4091
      %4093 = vmatmul.bf16.gmra.mxu0 %v3726
      %v4094 = vpop.f32.mrf.mxu0
      %v4095 = vadd.f32 %v4006, %v4094
      %v4096 = vpop.f32.mrf.mxu0
      %v4097 = vadd.f32 %v4008, %v4096
      %4098 = vdwg.mxu0
      %4099 = vmatpush.bf16.msra.mxu0 %v3896
      %4100 = vmatpush.bf16.msra.mxu0 %v3895
      %4101 = vmatpush.bf16.msra.mxu0 %v3894
      %4102 = vmatpush.bf16.msra.mxu0 %v3893
      %4103 = vmatpush.bf16.msra.mxu0 %v3892
      %4104 = vmatpush.bf16.msra.mxu0 %v3891
      %4105 = vmatpush.bf16.msra.mxu0 %v3890
      %4106 = vmatpush.bf16.msra.mxu0 %v3889
      %4107 = vmatmul.bf16.gmra.mxu0 %v3682
      %v4108 = vpop.f32.mrf.mxu0
      %v4109 = vadd.f32 %v4020, %v4108
      %v4110 = vpop.f32.mrf.mxu0
      %v4111 = vadd.f32 %v4022, %v4110
      %4112 = vmatmul.bf16.gmra.mxu0 %v3685
      %v4113 = vpop.f32.mrf.mxu0
      %v4114 = vadd.f32 %v4025, %v4113
      %v4115 = vpop.f32.mrf.mxu0
      %v4116 = vadd.f32 %v4027, %v4115
      %4117 = vmatmul.bf16.gmra.mxu0 %v3688
      %v4118 = vpop.f32.mrf.mxu0
      %v4119 = vadd.f32 %v4030, %v4118
      %v4120 = vpop.f32.mrf.mxu0
      %v4121 = vadd.f32 %v4032, %v4120
      %4122 = vmatmul.bf16.gmra.mxu0 %v3691
      %v4123 = vpop.f32.mrf.mxu0
      %v4124 = vadd.f32 %v4035, %v4123
      %v4125 = vpop.f32.mrf.mxu0
      %v4126 = vadd.f32 %v4037, %v4125
      %4127 = vmatmul.bf16.gmra.mxu0 %v3694
      %v4128 = vpop.f32.mrf.mxu0
      %v4129 = vadd.f32 %v4040, %v4128
      %v4130 = vpop.f32.mrf.mxu0
      %v4131 = vadd.f32 %v4042, %v4130
      %4132 = vmatmul.bf16.gmra.mxu0 %v3697
      %v4133 = vpop.f32.mrf.mxu0
      %v4134 = vadd.f32 %v4045, %v4133
      %v4135 = vpop.f32.mrf.mxu0
      %v4136 = vadd.f32 %v4047, %v4135
      %4137 = vmatmul.bf16.gmra.mxu0 %v3700
      %v4138 = vpop.f32.mrf.mxu0
      %v4139 = vadd.f32 %v4050, %v4138
      %v4140 = vpop.f32.mrf.mxu0
      %v4141 = vadd.f32 %v4052, %v4140
      %4142 = vmatmul.bf16.gmra.mxu0 %v3703
      %v4143 = vpop.f32.mrf.mxu0
      %v4144 = vadd.f32 %v4055, %v4143
      %v4145 = vpop.f32.mrf.mxu0
      %v4146 = vadd.f32 %v4057, %v4145
      %4147 = vmatmul.bf16.gmra.mxu0 %v3706
      %v4148 = vpop.f32.mrf.mxu0
      %v4149 = vadd.f32 %v4060, %v4148
      %v4150 = vpop.f32.mrf.mxu0
      %v4151 = vadd.f32 %v4062, %v4150
      %4152 = vmatmul.bf16.gmra.mxu0 %v3709
      %v4153 = vpop.f32.mrf.mxu0
      %v4154 = vadd.f32 %v4065, %v4153
      %v4155 = vpop.f32.mrf.mxu0
      %v4156 = vadd.f32 %v4067, %v4155
      %4157 = vmatmul.bf16.gmra.mxu0 %v3712
      %v4158 = vpop.f32.mrf.mxu0
      %v4159 = vadd.f32 %v4070, %v4158
      %v4160 = vpop.f32.mrf.mxu0
      %v4161 = vadd.f32 %v4072, %v4160
      %4162 = vmatmul.bf16.gmra.mxu0 %v3715
      %v4163 = vpop.f32.mrf.mxu0
      %v4164 = vadd.f32 %v4075, %v4163
      %v4165 = vpop.f32.mrf.mxu0
      %v4166 = vadd.f32 %v4077, %v4165
      %4167 = vmatmul.bf16.gmra.mxu0 %v3718
      %v4168 = vpop.f32.mrf.mxu0
      %v4169 = vadd.f32 %v4080, %v4168
      %v4170 = vpop.f32.mrf.mxu0
      %v4171 = vadd.f32 %v4082, %v4170
      %4172 = vmatmul.bf16.gmra.mxu0 %v3721
      %v4173 = vpop.f32.mrf.mxu0
      %v4174 = vadd.f32 %v4085, %v4173
      %v4175 = vpop.f32.mrf.mxu0
      %v4176 = vadd.f32 %v4087, %v4175
      %4177 = vmatmul.bf16.gmra.mxu0 %v3724
      %v4178 = vpop.f32.mrf.mxu0
      %v4179 = vadd.f32 %v4090, %v4178
      %v4180 = vpop.f32.mrf.mxu0
      %v4181 = vadd.f32 %v4092, %v4180
      %4182 = vmatmul.bf16.gmra.mxu0 %v3727
      %v4183 = vpop.f32.mrf.mxu0
      %v4184 = vadd.f32 %v4095, %v4183
      %v4185 = vpop.f32.mrf.mxu0
      %v4186 = vadd.f32 %v4097, %v4185
      %4187 = vdwg.mxu0
      %v4188 = vadd.f32 %v3504, %v4109
      %v4189 = vadd.f32 %v3506, %v4111
      %v4190 = vadd.f32 %v3509, %v4114
      %v4191 = vadd.f32 %v3511, %v4116
      %v4192 = vadd.f32 %v3514, %v4119
      %v4193 = vadd.f32 %v3516, %v4121
      %v4194 = vadd.f32 %v3519, %v4124
      %v4195 = vadd.f32 %v3521, %v4126
      %v4196 = vadd.f32 %v3524, %v4129
      %v4197 = vadd.f32 %v3526, %v4131
      %v4198 = vadd.f32 %v3529, %v4134
      %v4199 = vadd.f32 %v3531, %v4136
      %v4200 = vadd.f32 %v3534, %v4139
      %v4201 = vadd.f32 %v3536, %v4141
      %v4202 = vadd.f32 %v3539, %v4144
      %v4203 = vadd.f32 %v3541, %v4146
      %v4204 = vadd.f32 %v3544, %v4149
      %v4205 = vadd.f32 %v3546, %v4151
      %v4206 = vadd.f32 %v3549, %v4154
      %v4207 = vadd.f32 %v3551, %v4156
      %v4208 = vadd.f32 %v3554, %v4159
      %v4209 = vadd.f32 %v3556, %v4161
      %v4210 = vadd.f32 %v3559, %v4164
      %v4211 = vadd.f32 %v3561, %v4166
      %v4212 = vadd.f32 %v3564, %v4169
      %v4213 = vadd.f32 %v3566, %v4171
      %v4214 = vadd.f32 %v3569, %v4174
      %v4215 = vadd.f32 %v3571, %v4176
      %v4216 = vadd.f32 %v3574, %v4179
      %v4217 = vadd.f32 %v3576, %v4181
      %v4218 = vadd.f32 %v3579, %v4184
      %v4219 = vadd.f32 %v3581, %v4186
      %v4221 = vperm.slane %v2375, 0
      %v4223 = vadd.f32 %v4188, %v4221
      %v4224 = vadd.f32 %v4189, %v4221
      %v4225 = vadd.f32 %v4190, %v4221
      %v4226 = vadd.f32 %v4191, %v4221
      %v4227 = vadd.f32 %v4192, %v4221
      %v4228 = vadd.f32 %v4193, %v4221
      %v4229 = vadd.f32 %v4194, %v4221
      %v4230 = vadd.f32 %v4195, %v4221
      %v4231 = vadd.f32 %v4196, %v4221
      %v4232 = vadd.f32 %v4197, %v4221
      %v4233 = vadd.f32 %v4198, %v4221
      %v4234 = vadd.f32 %v4199, %v4221
      %v4235 = vadd.f32 %v4200, %v4221
      %v4236 = vadd.f32 %v4201, %v4221
      %v4237 = vadd.f32 %v4202, %v4221
      %v4238 = vadd.f32 %v4203, %v4221
      %v4239 = vadd.f32 %v4204, %v4221
      %v4240 = vadd.f32 %v4205, %v4221
      %v4241 = vadd.f32 %v4206, %v4221
      %v4242 = vadd.f32 %v4207, %v4221
      %v4243 = vadd.f32 %v4208, %v4221
      %v4244 = vadd.f32 %v4209, %v4221
      %v4245 = vadd.f32 %v4210, %v4221
      %v4246 = vadd.f32 %v4211, %v4221
      %v4247 = vadd.f32 %v4212, %v4221
      %v4248 = vadd.f32 %v4213, %v4221
      %v4249 = vadd.f32 %v4214, %v4221
      %v4250 = vadd.f32 %v4215, %v4221
      %v4251 = vadd.f32 %v4216, %v4221
      %v4252 = vadd.f32 %v4217, %v4221
      %v4253 = vadd.f32 %v4218, %v4221
      %v4254 = vadd.f32 %v4219, %v4221
      %v4255 = vmax.f32 %v4223, 0.0
      %v4256 = vmax.f32 %v4224, 0.0
      %v4257 = vmax.f32 %v4225, 0.0
      %v4258 = vmax.f32 %v4226, 0.0
      %v4259 = vmax.f32 %v4227, 0.0
      %v4260 = vmax.f32 %v4228, 0.0
      %v4261 = vmax.f32 %v4229, 0.0
      %v4262 = vmax.f32 %v4230, 0.0
      %v4263 = vmax.f32 %v4231, 0.0
      %v4264 = vmax.f32 %v4232, 0.0
      %v4265 = vmax.f32 %v4233, 0.0
      %v4266 = vmax.f32 %v4234, 0.0
      %v4267 = vmax.f32 %v4235, 0.0
      %v4268 = vmax.f32 %v4236, 0.0
      %v4269 = vmax.f32 %v4237, 0.0
      %v4270 = vmax.f32 %v4238, 0.0
      %v4271 = vmax.f32 %v4239, 0.0
      %v4272 = vmax.f32 %v4240, 0.0
      %v4273 = vmax.f32 %v4241, 0.0
      %v4274 = vmax.f32 %v4242, 0.0
      %v4275 = vmax.f32 %v4243, 0.0
      %v4276 = vmax.f32 %v4244, 0.0
      %v4277 = vmax.f32 %v4245, 0.0
      %v4278 = vmax.f32 %v4246, 0.0
      %v4279 = vmax.f32 %v4247, 0.0
      %v4280 = vmax.f32 %v4248, 0.0
      %v4281 = vmax.f32 %v4249, 0.0
      %v4282 = vmax.f32 %v4250, 0.0
      %v4283 = vmax.f32 %v4251, 0.0
      %v4284 = vmax.f32 %v4252, 0.0
      %v4285 = vmax.f32 %v4253, 0.0
      %v4286 = vmax.f32 %v4254, 0.0
      %4287 = vst [vmem:[%s224] sm:$0xff] %v4255
      %4288 = vst [vmem:[%s224 + $0x8] sm:$0xff] %v4256
      %4289 = vst [vmem:[%s224 + $0x10] sm:$0xff] %v4257
      %4290 = vst [vmem:[%s224 + $0x18] sm:$0xff] %v4258
      %4291 = vst [vmem:[%s224 + $0x20] sm:$0xff] %v4259
      %4292 = vst [vmem:[%s224 + $0x28] sm:$0xff] %v4260
      %4293 = vst [vmem:[%s224 + $0x30] sm:$0xff] %v4261
      %4294 = vst [vmem:[%s224 + $0x38] sm:$0xff] %v4262
      %4295 = vst [vmem:[%s224 + $0x40] sm:$0xff] %v4263
      %4296 = vst [vmem:[%s224 + $0x48] sm:$0xff] %v4264
      %4297 = vst [vmem:[%s224 + $0x50] sm:$0xff] %v4265
      %4298 = vst [vmem:[%s224 + $0x58] sm:$0xff] %v4266
      %4299 = vst [vmem:[%s224 + $0x60] sm:$0xff] %v4267
      %4300 = vst [vmem:[%s224 + $0x68] sm:$0xff] %v4268
      %4301 = vst [vmem:[%s224 + $0x70] sm:$0xff] %v4269
      %4302 = vst [vmem:[%s224 + $0x78] sm:$0xff] %v4270
      %4303 = vst [vmem:[%s224 + $0x80] sm:$0xff] %v4271
      %4304 = vst [vmem:[%s224 + $0x88] sm:$0xff] %v4272
      %4305 = vst [vmem:[%s224 + $0x90] sm:$0xff] %v4273
      %4306 = vst [vmem:[%s224 + $0x98] sm:$0xff] %v4274
      %4307 = vst [vmem:[%s224 + $0xa0] sm:$0xff] %v4275
      %4308 = vst [vmem:[%s224 + $0xa8] sm:$0xff] %v4276
      %4309 = vst [vmem:[%s224 + $0xb0] sm:$0xff] %v4277
      %4310 = vst [vmem:[%s224 + $0xb8] sm:$0xff] %v4278
      %4311 = vst [vmem:[%s224 + $0xc0] sm:$0xff] %v4279
      %4312 = vst [vmem:[%s224 + $0xc8] sm:$0xff] %v4280
      %4313 = vst [vmem:[%s224 + $0xd0] sm:$0xff] %v4281
      %4314 = vst [vmem:[%s224 + $0xd8] sm:$0xff] %v4282
      %4315 = vst [vmem:[%s224 + $0xe0] sm:$0xff] %v4283
      %4316 = vst [vmem:[%s224 + $0xe8] sm:$0xff] %v4284
      %4317 = vst [vmem:[%s224 + $0xf0] sm:$0xff] %v4285
      %4318 = vst [vmem:[%s224 + $0xf8] sm:$0xff] %v4286
      %p4319 = scmp.lt.s32.totalorder %s16, 1
      %s4320 = scalar_select %p4319, %s16, 1
      %s4321 = smul.addr %s4320, 32
      %s4322 = smul.addr %s4321, 8
      %s4323 = scalar_lea.vmem %s5, %s4322
      // Predicated region
      $region41: #{double_conv.1} parent=39 // pred_check
        %p4324 = pneg %p144
      $region42: #{double_conv.1} parent=39 // pred_check_branch
        %4326 = sbr.rel (%p4324) target = $region44
      $region43: #{double_conv.1} parent=39 // pred_region
        _
      $region44: #{double_conv.1} parent=39 // pred_fallthru
        _
    $region40: #{double_conv.1} parent=5 // pred_fallthru
      _
    %p4327 = scmp.le.s32.totalorder 2, %s11
    // Predicated region
    $region45: #{double_conv.1} parent=5 // pred_check
      %p4328 = pneg %p4327
    $region46: #{double_conv.1} parent=5 // pred_check_branch
      %4330 = sbr.rel (%p4328) target = $region48
    $region47: #{double_conv.1} parent=5 // pred_region
      %s4331 = ssub.s32 %s11, 2
      // Predicated region
      $region49: #{double_conv.1} parent=47 // pred_check
        %p4332 = pneg %p150
      $region50: #{double_conv.1} parent=47 // pred_check_branch
        %4334 = sbr.rel (%p4332) target = $region52
      $region51: #{double_conv.1} parent=47 // pred_region
        %p4335 = scmp.lt.s32.totalorder %s17, 1
        %s4336 = scalar_select %p4335, %s17, 1
        %s4337 = smul.addr %s4336, 32
        %s4338 = smul.addr %s4337, 8
        %s4339 = scalar_lea.vmem %s5, %s4338
      $region52: #{double_conv.1} parent=47 // pred_fallthru
        _
    $region48: #{double_conv.1} parent=5 // pred_fallthru
      _
  $region6: #{double_conv.1} parent=0 // loop_footer
    %s15 = sadd.s32 1, %s11
  $region7: #{double_conv.1} parent=0 // loop_footer_branch
    %10 = sbr.rel target = $region3
  $region8: #{double_conv.1} parent=0 // loop_exit
    _

</llo_original>
